<compile_context>
chip_gen: v7x
topology: tpu7x:2x2x1
jax: 0.10.0
libtpu: 0.0.40
codegen_flags: <defaults>
</compile_context>

<pallas_src>
import functools

import jax
import jax.numpy as jnp
from jax.experimental import pallas as pl
from jax.experimental.pallas import tpu as pltpu

LANE = 128


def bottleneck_kernel(x_ref, mask_ref,
                      w1_ref, s1_ref, b1_ref,
                      w2_ref, s2_ref, b2_ref,
                      w3_ref, s3_ref, b3_ref,
                      ws_ref, ss_ref, bs_ref,
                      o_ref,
                      buf_ref, acc_ref, *, H, W):
    # x_ref:    (1, H*W, Cin_p) bf16
    # mask_ref: (2, H*W, P_p)   bf16   [0]=right-edge mask (dx=0), [1]=left (dx=2)
    # w1_ref:   (Cin_p, P_p)    bf16   conv1 1x1
    # w2_ref:   (3, 3*P_p, P_p) bf16   packed per dy; rows blocked by dx
    # w3_ref:   (P_p, Cout_p)   bf16   conv3 1x1
    # ws_ref:   (Cin_p, Cout_p) bf16   shortcut 1x1
    # s*/b*:    (1, C) f32             folded BatchNorm scale / bias
    # buf_ref:  VMEM ((H+2)*W, 3*P_p) bf16  dx-shifted, H-padded copies of h1
    # acc_ref:  VMEM (H*W, P_p) f32         conv2 accumulator
    HW = x_ref.shape[1]
    Pp = w1_ref.shape[1]

    x2 = x_ref[0]                                            # (HW, Cin_p) bf16

    # ---- conv1 (1x1) + bn1 + relu -------------------------------------------
    h1 = jnp.dot(x2, w1_ref[...], preferred_element_type=jnp.float32)
    h1 = jnp.maximum(h1 * s1_ref[...] + b1_ref[...], 0.0)
    h1b = h1.astype(jnp.bfloat16)

    # ---- build the three dx-shifted, H-padded copies of h1 ------------------
    # Lane-block dx of buf holds, at flat row i*W + x, the zero-padded h1 value
    # at (i-1, x+dx-1); the (dy, dx) window is then a pure leading-dim slice
    # buf[dy*W : dy*W + HW, dx*Pp:(dx+1)*Pp].  Border rows are re-zeroed every
    # step BEFORE the data stores (no cross-iteration state -> safe with a
    # "parallel" grid axis).
    zrow = jnp.zeros((W + 1, 3 * Pp), jnp.bfloat16)
    buf_ref[:W + 1, :] = zrow                         # top padding rows
    buf_ref[(H + 1) * W - 1:, :] = zrow               # bottom padding rows

    buf_ref[W + 1:W + 1 + HW, :Pp] = h1b * mask_ref[0]        # dx = 0 (left tap)
    buf_ref[W:W + HW, Pp:2 * Pp] = h1b                        # dx = 1 (center)
    buf_ref[W - 1:W - 1 + HW, 2 * Pp:] = h1b * mask_ref[1]    # dx = 2 (right tap)

    # ---- conv2 (3x3, pad=1, stride=1): 3 accumulating matmuls, K = 3*P_p ----
    for dy in range(3):
        win = buf_ref[dy * W:dy * W + HW, :]                  # (HW, 3*Pp) bf16
        contrib = jnp.dot(win, w2_ref[dy], preferred_element_type=jnp.float32)
        if dy == 0:
            acc_ref[...] = contrib
        else:
            acc_ref[...] += contrib

    h2 = jnp.maximum(acc_ref[...] * s2_ref[...] + b2_ref[...], 0.0)  # bn2+relu

    # ---- conv3 (1x1) + bn3, deferred shortcut conv, residual add, relu ------
    h3 = jnp.dot(h2.astype(jnp.bfloat16), w3_ref[...],
                 preferred_element_type=jnp.float32)
    h3 = h3 * s3_ref[...] + b3_ref[...]
    sc = jnp.dot(x2, ws_ref[...], preferred_element_type=jnp.float32)
    sc = sc * ss_ref[...] + bs_ref[...]
    out = jnp.maximum(h3 + sc, 0.0)
    o_ref[0] = out.astype(o_ref.dtype)                        # bf16 writeback


def fold_bn(gamma, beta, mean, var, eps=1e-5):
    scale = gamma / jnp.sqrt(var + eps)
    bias = beta - mean * scale
    return scale.reshape(1, -1), bias.reshape(1, -1)


def _round_up(x, m):
    return (x + m - 1) // m * m


def _vmem_limit_bytes(H, W, HW, Cin_p, Pp, Cout_p):
    """Per-step footprint (double-buffered inputs/outputs + scratch) + slack."""
    bf, f32 = 2, 4
    blocks = (HW * Cin_p * bf            # x
              + 2 * HW * Pp * bf         # masks
              + Cin_p * Pp * bf          # w1
              + 3 * 3 * Pp * Pp * bf     # w2 (packed)
              + Pp * Cout_p * bf         # w3
              + Cin_p * Cout_p * bf      # ws
              + 2 * (2 * Pp + 4 * Cout_p) * f32   # scales / biases
              + HW * Cout_p * bf)        # out
    scratch = (H + 2) * W * 3 * Pp * bf + HW * Pp * f32
    need = 2 * blocks + scratch + (8 << 20)       # headroom for compiler scratch
    return int(min(max(need, 32 << 20), 48 << 20))  # stay below v7x 64 MiB


@jax.jit
def bottleneck_forward(x_nchw, params):
    N, Cin, H, W = x_nchw.shape
    P = params["w1"].shape[1]
    Cout = params["w3"].shape[1]
    Cin_p = _round_up(Cin, LANE)
    P_p = _round_up(P, LANE)
    Cout_p = _round_up(Cout, LANE)
    HW = H * W

    # NCHW -> NHWC, zero-pad channels to lane multiples, flatten spatial,
    # cast activations/weights to bf16 once here (BN scale/bias stay f32).
    x = jnp.transpose(x_nchw, (0, 2, 3, 1))
    x = jnp.pad(x, ((0, 0), (0, 0), (0, 0), (0, Cin_p - Cin)))
    x = x.reshape(N, HW, Cin_p).astype(jnp.bfloat16)

    def padw(w, r, c):
        return jnp.pad(w, ((0, r - w.shape[0]),
                           (0, c - w.shape[1]))).astype(jnp.bfloat16)

    def padv(v, c):
        return jnp.pad(v, ((0, 0), (0, c - v.shape[1]))).astype(jnp.float32)

    w1 = padw(params["w1"], Cin_p, P_p)
    s1, b1 = padv(params["s1"], P_p), padv(params["b1"], P_p)
    # 3x3 taps packed per dy with dx stacked along rows -> K = 3*P_p matmuls.
    w2 = jnp.pad(params["w2"], ((0, 0), (0, 0), (0, P_p - P), (0, P_p - P)))
    w2 = w2.reshape(3, 3 * P_p, P_p).astype(jnp.bfloat16)
    s2, b2 = padv(params["s2"], P_p), padv(params["b2"], P_p)
    w3 = padw(params["w3"], P_p, Cout_p)
    s3, b3 = padv(params["s3"], Cout_p), padv(params["b3"], Cout_p)
    ws = padw(params["ws"], Cin_p, Cout_p)
    ss, bs = padv(params["ss"], Cout_p), padv(params["bs"], Cout_p)

    # Precomputed {0,1} bf16 wrap-around column masks (grid-invariant input).
    col = jnp.arange(HW, dtype=jnp.int32) % W
    mask_right = (col != W - 1).astype(jnp.bfloat16)      # for dx = 0 shift
    mask_left = (col != 0).astype(jnp.bfloat16)           # for dx = 2 shift
    masks = jnp.stack(
        [jnp.broadcast_to(mask_right[:, None], (HW, P_p)),
         jnp.broadcast_to(mask_left[:, None], (HW, P_p))], axis=0
    ).astype(jnp.bfloat16)

    kernel = functools.partial(bottleneck_kernel, H=H, W=W)

    out = pl.pallas_call(
        kernel,
        out_shape=jax.ShapeDtypeStruct((N, HW, Cout_p), jnp.bfloat16),
        grid_spec=pltpu.PrefetchScalarGridSpec(
            num_scalar_prefetch=0,
            grid=(N,),
            in_specs=[
                pl.BlockSpec((1, HW, Cin_p), lambda n: (n, 0, 0)),
                pl.BlockSpec((2, HW, P_p), lambda n: (0, 0, 0)),
                pl.BlockSpec((Cin_p, P_p), lambda n: (0, 0)),
                pl.BlockSpec((1, P_p), lambda n: (0, 0)),
                pl.BlockSpec((1, P_p), lambda n: (0, 0)),
                pl.BlockSpec((3, 3 * P_p, P_p), lambda n: (0, 0, 0)),
                pl.BlockSpec((1, P_p), lambda n: (0, 0)),
                pl.BlockSpec((1, P_p), lambda n: (0, 0)),
                pl.BlockSpec((P_p, Cout_p), lambda n: (0, 0)),
                pl.BlockSpec((1, Cout_p), lambda n: (0, 0)),
                pl.BlockSpec((1, Cout_p), lambda n: (0, 0)),
                pl.BlockSpec((Cin_p, Cout_p), lambda n: (0, 0)),
                pl.BlockSpec((1, Cout_p), lambda n: (0, 0)),
                pl.BlockSpec((1, Cout_p), lambda n: (0, 0)),
            ],
            out_specs=pl.BlockSpec((1, HW, Cout_p), lambda n: (n, 0, 0)),
            scratch_shapes=[
                pltpu.VMEM(((H + 2) * W, 3 * P_p), jnp.bfloat16),
                pltpu.VMEM((HW, P_p), jnp.float32),
            ],
        ),
        compiler_params=pltpu.CompilerParams(
            dimension_semantics=("parallel",),          # images are independent
            vmem_limit_bytes=_vmem_limit_bytes(H, W, HW, Cin_p, P_p, Cout_p),
        ),
    )(x, masks, w1, s1, b1, w2, s2, b2, w3, s3, b3, ws, ss, bs)

    out = out.reshape(N, H, W, Cout_p)[..., :Cout]      # drop channel padding
    return jnp.transpose(out, (0, 3, 1, 2))             # NHWC -> NCHW (bf16)


def reference_forward(x_nchw, params):
    """Pure-JAX reference mirroring the kernel's bf16-matmul / f32-epilogue math."""
    bf, f32 = jnp.bfloat16, jnp.float32
    x = jnp.transpose(x_nchw, (0, 2, 3, 1))
    N, H, W, Cin = x.shape
    P = params["w1"].shape[1]
    xb = x.astype(bf)

    def mm(a, w):
        return jnp.einsum("nhwc,cd->nhwd", a, w.astype(bf),
                          preferred_element_type=f32)

    h1 = jnp.maximum(mm(xb, params["w1"]) * params["s1"] + params["b1"], 0.0)
    h1b = h1.astype(bf)
    hp = jnp.pad(h1b, ((0, 0), (1, 1), (1, 1), (0, 0)))
    acc = jnp.zeros((N, H, W, P), f32)
    for dy in range(3):
        for dx in range(3):
            acc = acc + jnp.einsum("nhwc,cd->nhwd",
                                   hp[:, dy:dy + H, dx:dx + W, :],
                                   params["w2"][dy, dx].astype(bf),
                                   preferred_element_type=f32)
    h2 = jnp.maximum(acc * params["s2"] + params["b2"], 0.0)
    h3 = mm(h2.astype(bf), params["w3"]) * params["s3"] + params["b3"]
    sc = mm(xb, params["ws"]) * params["ss"] + params["bs"]
    out = jnp.maximum(h3 + sc, 0.0)
    return jnp.transpose(out, (0, 3, 1, 2))


def make_params(key, in_planes, planes, expansion=4):
    cout = expansion * planes
    ks = jax.random.split(key, 16)

    def bn(k, c):
        k1, k2, k3, k4 = jax.random.split(k, 4)
        gamma = 0.5 + jax.random.uniform(k1, (c,), jnp.float32)
        beta = 0.1 * jax.random.normal(k2, (c,), jnp.float32)
        mean = 0.1 * jax.random.normal(k3, (c,), jnp.float32)
        var = 0.5 + jax.random.uniform(k4, (c,), jnp.float32)
        return fold_bn(gamma, beta, mean, var)

    s1, b1 = bn(ks[1], planes)
    s2, b2 = bn(ks[3], planes)
    s3, b3 = bn(ks[5], cout)
    ss, bs = bn(ks[7], cout)
    return {
        # conv weights stored as (Cin, Cout) / (kh, kw, Cin, Cout) for NHWC matmuls
        "w1": 0.2 * jax.random.normal(ks[0], (in_planes, planes), jnp.float32),
        "s1": s1, "b1": b1,
        "w2": 0.2 * jax.random.normal(ks[2], (3, 3, planes, planes), jnp.float32),
        "s2": s2, "b2": b2,
        "w3": 0.2 * jax.random.normal(ks[4], (planes, cout), jnp.float32),
        "s3": s3, "b3": b3,
        "ws": 0.2 * jax.random.normal(ks[6], (in_planes, cout), jnp.float32),
        "ss": ss, "bs": bs,
    }


if __name__ == "__main__":
    key = jax.random.PRNGKey(0)
    kx, kp = jax.random.split(key)

    N, in_planes, H, W = 2, 4, 16, 16
    planes = 4            # expansion*planes = 16 != in_planes -> projection shortcut
    x = jax.random.normal(kx, (N, in_planes, H, W), jnp.float32)  # NCHW like PyTorch
    params = make_params(kp, in_planes, planes)

    out = jax.block_until_ready(bottleneck_forward(x, params))
    ref = reference_forward(x, params)

    assert out.shape == (N, 4 * planes, H, W)
    assert out.dtype == jnp.bfloat16
    out_f32 = out.astype(jnp.float32)
    assert bool(jnp.all(jnp.isfinite(out_f32)))
    # Kernel output is bf16 (per perf review); allow bf16 rounding of the result.
    assert bool(jnp.allclose(out_f32, ref, atol=3e-2, rtol=3e-2)), "mismatch vs reference"

    print("KERNEL_OK")
</pallas_src>

<mosaic_0001>
module attributes {stable_mosaic.version = 11 : i64} {
  func.func @bottleneck_kernel(%arg0: i32, %arg1: memref<1x256x128xbf16, #tpu.memory_space<vmem>>, %arg2: memref<2x256x128xbf16, #tpu.memory_space<vmem>>, %arg3: memref<128x128xbf16, #tpu.memory_space<vmem>>, %arg4: memref<1x128xf32, #tpu.memory_space<vmem>>, %arg5: memref<1x128xf32, #tpu.memory_space<vmem>>, %arg6: memref<3x384x128xbf16, #tpu.memory_space<vmem>>, %arg7: memref<1x128xf32, #tpu.memory_space<vmem>>, %arg8: memref<1x128xf32, #tpu.memory_space<vmem>>, %arg9: memref<128x128xbf16, #tpu.memory_space<vmem>>, %arg10: memref<1x128xf32, #tpu.memory_space<vmem>>, %arg11: memref<1x128xf32, #tpu.memory_space<vmem>>, %arg12: memref<128x128xbf16, #tpu.memory_space<vmem>>, %arg13: memref<1x128xf32, #tpu.memory_space<vmem>>, %arg14: memref<1x128xf32, #tpu.memory_space<vmem>>, %arg15: memref<1x256x128xbf16, #tpu.memory_space<vmem>>, %arg16: memref<288x384xbf16, #tpu.memory_space<vmem>>, %arg17: memref<256x128xf32, #tpu.memory_space<vmem>>) attributes {dimension_semantics = [#tpu.dimension_semantics<parallel>], iteration_bounds = array<i64: 2>, scalar_prefetch = 0 : i64, scratch_operands = 2 : i64, tpu.core_type = #tpu.core_type<tc>, window_params = [{transform_indices = @transform_0, window_bounds = array<i64: 1, 256, 128>}, {pipeline_mode = #tpu.pipeline_mode<synchronous>, transform_indices = @transform_1, window_bounds = array<i64: 2, 256, 128>}, {pipeline_mode = #tpu.pipeline_mode<synchronous>, transform_indices = @transform_2, window_bounds = array<i64: 128, 128>}, {pipeline_mode = #tpu.pipeline_mode<synchronous>, transform_indices = @transform_3, window_bounds = array<i64: 1, 128>}, {pipeline_mode = #tpu.pipeline_mode<synchronous>, transform_indices = @transform_4, window_bounds = array<i64: 1, 128>}, {pipeline_mode = #tpu.pipeline_mode<synchronous>, transform_indices = @transform_5, window_bounds = array<i64: 3, 384, 128>}, {pipeline_mode = #tpu.pipeline_mode<synchronous>, transform_indices = @transform_6, window_bounds = array<i64: 1, 128>}, {pipeline_mode = #tpu.pipeline_mode<synchronous>, transform_indices = @transform_7, window_bounds = array<i64: 1, 128>}, {pipeline_mode = #tpu.pipeline_mode<synchronous>, transform_indices = @transform_8, window_bounds = array<i64: 128, 128>}, {pipeline_mode = #tpu.pipeline_mode<synchronous>, transform_indices = @transform_9, window_bounds = array<i64: 1, 128>}, {pipeline_mode = #tpu.pipeline_mode<synchronous>, transform_indices = @transform_10, window_bounds = array<i64: 1, 128>}, {pipeline_mode = #tpu.pipeline_mode<synchronous>, transform_indices = @transform_11, window_bounds = array<i64: 128, 128>}, {pipeline_mode = #tpu.pipeline_mode<synchronous>, transform_indices = @transform_12, window_bounds = array<i64: 1, 128>}, {pipeline_mode = #tpu.pipeline_mode<synchronous>, transform_indices = @transform_13, window_bounds = array<i64: 1, 128>}, {transform_indices = @transform_14, window_bounds = array<i64: 1, 256, 128>}]} {
    %c0 = arith.constant 0 : index
    %c0_0 = arith.constant 0 : index
    %c0_1 = arith.constant 0 : index
    %0 = vector.load %arg1[%c0, %c0_0, %c0_1] : memref<1x256x128xbf16, #tpu.memory_space<vmem>>, vector<1x256x128xbf16>
    %1 = vector.shape_cast %0 : vector<1x256x128xbf16> to vector<256x128xbf16>
    %c0_2 = arith.constant 0 : index
    %c0_3 = arith.constant 0 : index
    %2 = vector.load %arg3[%c0_2, %c0_3] : memref<128x128xbf16, #tpu.memory_space<vmem>>, vector<128x128xbf16>
    %cst = arith.constant dense<0.000000e+00> : vector<256x128xf32>
    %3 = tpu.matmul %1, %2, %cst {dimension_numbers = #tpu.dot_dimension_numbers<[1], [0], [0], [1], [0, 0, 1, 1], [], []>} : vector<256x128xbf16>, vector<128x128xbf16>, vector<256x128xf32> -> vector<256x128xf32>
    %c0_4 = arith.constant 0 : index
    %c0_5 = arith.constant 0 : index
    %4 = vector.load %arg4[%c0_4, %c0_5] : memref<1x128xf32, #tpu.memory_space<vmem>>, vector<1x128xf32>
    %5 = vector.broadcast %4 : vector<1x128xf32> to vector<256x128xf32>
    %6 = arith.mulf %3, %5 : vector<256x128xf32>
    %c0_6 = arith.constant 0 : index
    %c0_7 = arith.constant 0 : index
    %7 = vector.load %arg5[%c0_6, %c0_7] : memref<1x128xf32, #tpu.memory_space<vmem>>, vector<1x128xf32>
    %8 = vector.broadcast %7 : vector<1x128xf32> to vector<256x128xf32>
    %9 = arith.addf %6, %8 : vector<256x128xf32>
    %cst_8 = arith.constant 0.000000e+00 : f32
    %10 = vector.broadcast %cst_8 : f32 to vector<256x128xf32>
    %11 = arith.maximumf %9, %10 : vector<256x128xf32>
    %12 = arith.truncf %11 : vector<256x128xf32> to vector<256x128xbf16>
    %cst_9 = arith.constant 0.000000e+00 : bf16
    %13 = vector.broadcast %cst_9 : bf16 to vector<17x384xbf16>
    %c0_10 = arith.constant 0 : index
    %c0_11 = arith.constant 0 : index
    %14 = vector.load %arg16[%c0_10, %c0_11] : memref<288x384xbf16, #tpu.memory_space<vmem>>, vector<17x384xbf16>
    tpu.vector_store %arg16[%c0_10, %c0_11], %13 {strides = array<i32>} : memref<288x384xbf16, #tpu.memory_space<vmem>>, vector<17x384xbf16>,
    %c271 = arith.constant 271 : index
    %c0_12 = arith.constant 0 : index
    %15 = vector.load %arg16[%c271, %c0_12] : memref<288x384xbf16, #tpu.memory_space<vmem>>, vector<17x384xbf16>
    tpu.vector_store %arg16[%c271, %c0_12], %13 {strides = array<i32>} : memref<288x384xbf16, #tpu.memory_space<vmem>>, vector<17x384xbf16>,
    %c0_13 = arith.constant 0 : index
    %c0_14 = arith.constant 0 : index
    %c0_15 = arith.constant 0 : index
    %16 = vector.load %arg2[%c0_13, %c0_14, %c0_15] : memref<2x256x128xbf16, #tpu.memory_space<vmem>>, vector<1x256x128xbf16>
    %17 = vector.shape_cast %16 : vector<1x256x128xbf16> to vector<256x128xbf16>
    %18 = arith.mulf %12, %17 : vector<256x128xbf16>
    %c17 = arith.constant 17 : index
    %c0_16 = arith.constant 0 : index
    %19 = vector.load %arg16[%c17, %c0_16] : memref<288x384xbf16, #tpu.memory_space<vmem>>, vector<256x128xbf16>
    tpu.vector_store %arg16[%c17, %c0_16], %18 {strides = array<i32>} : memref<288x384xbf16, #tpu.memory_space<vmem>>, vector<256x128xbf16>,
    %c16 = arith.constant 16 : index
    %c128 = arith.constant 128 : index
    %20 = vector.load %arg16[%c16, %c128] : memref<288x384xbf16, #tpu.memory_space<vmem>>, vector<256x128xbf16>
    tpu.vector_store %arg16[%c16, %c128], %12 {strides = array<i32>} : memref<288x384xbf16, #tpu.memory_space<vmem>>, vector<256x128xbf16>,
    %c1 = arith.constant 1 : index
    %c0_17 = arith.constant 0 : index
    %c0_18 = arith.constant 0 : index
    %21 = vector.load %arg2[%c1, %c0_17, %c0_18] : memref<2x256x128xbf16, #tpu.memory_space<vmem>>, vector<1x256x128xbf16>
    %22 = vector.shape_cast %21 : vector<1x256x128xbf16> to vector<256x128xbf16>
    %23 = arith.mulf %12, %22 : vector<256x128xbf16>
    %c15 = arith.constant 15 : index
    %c256 = arith.constant 256 : index
    %24 = vector.load %arg16[%c15, %c256] : memref<288x384xbf16, #tpu.memory_space<vmem>>, vector<256x128xbf16>
    tpu.vector_store %arg16[%c15, %c256], %23 {strides = array<i32>} : memref<288x384xbf16, #tpu.memory_space<vmem>>, vector<256x128xbf16>,
    %c0_19 = arith.constant 0 : index
    %c0_20 = arith.constant 0 : index
    %25 = vector.load %arg16[%c0_19, %c0_20] : memref<288x384xbf16, #tpu.memory_space<vmem>>, vector<256x384xbf16>
    %c0_21 = arith.constant 0 : index
    %c0_22 = arith.constant 0 : index
    %c0_23 = arith.constant 0 : index
    %26 = vector.load %arg6[%c0_21, %c0_22, %c0_23] : memref<3x384x128xbf16, #tpu.memory_space<vmem>>, vector<1x384x128xbf16>
    %27 = vector.shape_cast %26 : vector<1x384x128xbf16> to vector<384x128xbf16>
    %cst_24 = arith.constant dense<0.000000e+00> : vector<256x128xf32>
    %28 = tpu.matmul %25, %27, %cst_24 {dimension_numbers = #tpu.dot_dimension_numbers<[1], [0], [0], [1], [0, 0, 1, 1], [], []>} : vector<256x384xbf16>, vector<384x128xbf16>, vector<256x128xf32> -> vector<256x128xf32>
    %c0_25 = arith.constant 0 : index
    %c0_26 = arith.constant 0 : index
    %29 = vector.load %arg17[%c0_25, %c0_26] : memref<256x128xf32, #tpu.memory_space<vmem>>, vector<256x128xf32>
    tpu.vector_store %arg17[%c0_25, %c0_26], %28 {strides = array<i32>} : memref<256x128xf32, #tpu.memory_space<vmem>>, vector<256x128xf32>,
    %c16_27 = arith.constant 16 : index
    %c0_28 = arith.constant 0 : index
    %30 = vector.load %arg16[%c16_27, %c0_28] : memref<288x384xbf16, #tpu.memory_space<vmem>>, vector<256x384xbf16>
    %c1_29 = arith.constant 1 : index
    %c0_30 = arith.constant 0 : index
    %c0_31 = arith.constant 0 : index
    %31 = vector.load %arg6[%c1_29, %c0_30, %c0_31] : memref<3x384x128xbf16, #tpu.memory_space<vmem>>, vector<1x384x128xbf16>
    %32 = vector.shape_cast %31 : vector<1x384x128xbf16> to vector<384x128xbf16>
    %cst_32 = arith.constant dense<0.000000e+00> : vector<256x128xf32>
    %33 = tpu.matmul %30, %32, %cst_32 {dimension_numbers = #tpu.dot_dimension_numbers<[1], [0], [0], [1], [0, 0, 1, 1], [], []>} : vector<256x384xbf16>, vector<384x128xbf16>, vector<256x128xf32> -> vector<256x128xf32>
    %c0_33 = arith.constant 0 : index
    %c0_34 = arith.constant 0 : index
    %34 = vector.load %arg17[%c0_33, %c0_34] : memref<256x128xf32, #tpu.memory_space<vmem>>, vector<256x128xf32>
    %35 = arith.addf %34, %33 : vector<256x128xf32>
    %c0_35 = arith.constant 0 : index
    %c0_36 = arith.constant 0 : index
    %36 = vector.load %arg17[%c0_35, %c0_36] : memref<256x128xf32, #tpu.memory_space<vmem>>, vector<256x128xf32>
    tpu.vector_store %arg17[%c0_35, %c0_36], %35 {strides = array<i32>} : memref<256x128xf32, #tpu.memory_space<vmem>>, vector<256x128xf32>,
    %c32 = arith.constant 32 : index
    %c0_37 = arith.constant 0 : index
    %37 = vector.load %arg16[%c32, %c0_37] : memref<288x384xbf16, #tpu.memory_space<vmem>>, vector<256x384xbf16>
    %c2 = arith.constant 2 : index
    %c0_38 = arith.constant 0 : index
    %c0_39 = arith.constant 0 : index
    %38 = vector.load %arg6[%c2, %c0_38, %c0_39] : memref<3x384x128xbf16, #tpu.memory_space<vmem>>, vector<1x384x128xbf16>
    %39 = vector.shape_cast %38 : vector<1x384x128xbf16> to vector<384x128xbf16>
    %cst_40 = arith.constant dense<0.000000e+00> : vector<256x128xf32>
    %40 = tpu.matmul %37, %39, %cst_40 {dimension_numbers = #tpu.dot_dimension_numbers<[1], [0], [0], [1], [0, 0, 1, 1], [], []>} : vector<256x384xbf16>, vector<384x128xbf16>, vector<256x128xf32> -> vector<256x128xf32>
    %c0_41 = arith.constant 0 : index
    %c0_42 = arith.constant 0 : index
    %41 = vector.load %arg17[%c0_41, %c0_42] : memref<256x128xf32, #tpu.memory_space<vmem>>, vector<256x128xf32>
    %42 = arith.addf %41, %40 : vector<256x128xf32>
    %c0_43 = arith.constant 0 : index
    %c0_44 = arith.constant 0 : index
    %43 = vector.load %arg17[%c0_43, %c0_44] : memref<256x128xf32, #tpu.memory_space<vmem>>, vector<256x128xf32>
    tpu.vector_store %arg17[%c0_43, %c0_44], %42 {strides = array<i32>} : memref<256x128xf32, #tpu.memory_space<vmem>>, vector<256x128xf32>,
    %c0_45 = arith.constant 0 : index
    %c0_46 = arith.constant 0 : index
    %44 = vector.load %arg17[%c0_45, %c0_46] : memref<256x128xf32, #tpu.memory_space<vmem>>, vector<256x128xf32>
    %c0_47 = arith.constant 0 : index
    %c0_48 = arith.constant 0 : index
    %45 = vector.load %arg7[%c0_47, %c0_48] : memref<1x128xf32, #tpu.memory_space<vmem>>, vector<1x128xf32>
    %46 = vector.broadcast %45 : vector<1x128xf32> to vector<256x128xf32>
    %47 = arith.mulf %44, %46 : vector<256x128xf32>
    %c0_49 = arith.constant 0 : index
    %c0_50 = arith.constant 0 : index
    %48 = vector.load %arg8[%c0_49, %c0_50] : memref<1x128xf32, #tpu.memory_space<vmem>>, vector<1x128xf32>
    %49 = vector.broadcast %48 : vector<1x128xf32> to vector<256x128xf32>
    %50 = arith.addf %47, %49 : vector<256x128xf32>
    %cst_51 = arith.constant 0.000000e+00 : f32
    %51 = vector.broadcast %cst_51 : f32 to vector<256x128xf32>
    %52 = arith.maximumf %50, %51 : vector<256x128xf32>
    %53 = arith.truncf %52 : vector<256x128xf32> to vector<256x128xbf16>
    %c0_52 = arith.constant 0 : index
    %c0_53 = arith.constant 0 : index
    %54 = vector.load %arg9[%c0_52, %c0_53] : memref<128x128xbf16, #tpu.memory_space<vmem>>, vector<128x128xbf16>
    %cst_54 = arith.constant dense<0.000000e+00> : vector<256x128xf32>
    %55 = tpu.matmul %53, %54, %cst_54 {dimension_numbers = #tpu.dot_dimension_numbers<[1], [0], [0], [1], [0, 0, 1, 1], [], []>} : vector<256x128xbf16>, vector<128x128xbf16>, vector<256x128xf32> -> vector<256x128xf32>
    %c0_55 = arith.constant 0 : index
    %c0_56 = arith.constant 0 : index
    %56 = vector.load %arg10[%c0_55, %c0_56] : memref<1x128xf32, #tpu.memory_space<vmem>>, vector<1x128xf32>
    %57 = vector.broadcast %56 : vector<1x128xf32> to vector<256x128xf32>
    %58 = arith.mulf %55, %57 : vector<256x128xf32>
    %c0_57 = arith.constant 0 : index
    %c0_58 = arith.constant 0 : index
    %59 = vector.load %arg11[%c0_57, %c0_58] : memref<1x128xf32, #tpu.memory_space<vmem>>, vector<1x128xf32>
    %60 = vector.broadcast %59 : vector<1x128xf32> to vector<256x128xf32>
    %61 = arith.addf %58, %60 : vector<256x128xf32>
    %c0_59 = arith.constant 0 : index
    %c0_60 = arith.constant 0 : index
    %62 = vector.load %arg12[%c0_59, %c0_60] : memref<128x128xbf16, #tpu.memory_space<vmem>>, vector<128x128xbf16>
    %cst_61 = arith.constant dense<0.000000e+00> : vector<256x128xf32>
    %63 = tpu.matmul %1, %62, %cst_61 {dimension_numbers = #tpu.dot_dimension_numbers<[1], [0], [0], [1], [0, 0, 1, 1], [], []>} : vector<256x128xbf16>, vector<128x128xbf16>, vector<256x128xf32> -> vector<256x128xf32>
    %c0_62 = arith.constant 0 : index
    %c0_63 = arith.constant 0 : index
    %64 = vector.load %arg13[%c0_62, %c0_63] : memref<1x128xf32, #tpu.memory_space<vmem>>, vector<1x128xf32>
    %65 = vector.broadcast %64 : vector<1x128xf32> to vector<256x128xf32>
    %66 = arith.mulf %63, %65 : vector<256x128xf32>
    %c0_64 = arith.constant 0 : index
    %c0_65 = arith.constant 0 : index
    %67 = vector.load %arg14[%c0_64, %c0_65] : memref<1x128xf32, #tpu.memory_space<vmem>>, vector<1x128xf32>
    %68 = vector.broadcast %67 : vector<1x128xf32> to vector<256x128xf32>
    %69 = arith.addf %66, %68 : vector<256x128xf32>
    %70 = arith.addf %61, %69 : vector<256x128xf32>
    %cst_66 = arith.constant 0.000000e+00 : f32
    %71 = vector.broadcast %cst_66 : f32 to vector<256x128xf32>
    %72 = arith.maximumf %70, %71 : vector<256x128xf32>
    %73 = arith.truncf %72 : vector<256x128xf32> to vector<256x128xbf16>
    %c0_67 = arith.constant 0 : index
    %c0_68 = arith.constant 0 : index
    %c0_69 = arith.constant 0 : index
    %74 = vector.load %arg15[%c0_67, %c0_68, %c0_69] : memref<1x256x128xbf16, #tpu.memory_space<vmem>>, vector<1x256x128xbf16>
    %75 = vector.shape_cast %74 : vector<1x256x128xbf16> to vector<256x128xbf16>
    %76 = vector.shape_cast %73 : vector<256x128xbf16> to vector<1x256x128xbf16>
    tpu.vector_store %arg15[%c0_67, %c0_68, %c0_69], %76 {strides = array<i32>} : memref<1x256x128xbf16, #tpu.memory_space<vmem>>, vector<1x256x128xbf16>,
    return
  }
  func.func @transform_0(%arg0: i32) -> (i32, i32, i32) {
    %c0_i32 = arith.constant 0 : i32
    %c0_i32_0 = arith.constant 0 : i32
    %c0_i32_1 = arith.constant 0 : i32
    return %arg0, %c0_i32, %c0_i32_0 : i32, i32, i32
  }
  func.func @transform_1(%arg0: i32) -> (i32, i32, i32) {
    %c0_i32 = arith.constant 0 : i32
    %c0_i32_0 = arith.constant 0 : i32
    %c0_i32_1 = arith.constant 0 : i32
    %c0_i32_2 = arith.constant 0 : i32
    return %c0_i32, %c0_i32_0, %c0_i32_1 : i32, i32, i32
  }
  func.func @transform_2(%arg0: i32) -> (i32, i32) {
    %c0_i32 = arith.constant 0 : i32
    %c0_i32_0 = arith.constant 0 : i32
    %c0_i32_1 = arith.constant 0 : i32
    return %c0_i32, %c0_i32_0 : i32, i32
  }
  func.func @transform_3(%arg0: i32) -> (i32, i32) {
    %c0_i32 = arith.constant 0 : i32
    %c0_i32_0 = arith.constant 0 : i32
    %c0_i32_1 = arith.constant 0 : i32
    return %c0_i32, %c0_i32_0 : i32, i32
  }
  func.func @transform_4(%arg0: i32) -> (i32, i32) {
    %c0_i32 = arith.constant 0 : i32
    %c0_i32_0 = arith.constant 0 : i32
    %c0_i32_1 = arith.constant 0 : i32
    return %c0_i32, %c0_i32_0 : i32, i32
  }
  func.func @transform_5(%arg0: i32) -> (i32, i32, i32) {
    %c0_i32 = arith.constant 0 : i32
    %c0_i32_0 = arith.constant 0 : i32
    %c0_i32_1 = arith.constant 0 : i32
    %c0_i32_2 = arith.constant 0 : i32
    return %c0_i32, %c0_i32_0, %c0_i32_1 : i32, i32, i32
  }
  func.func @transform_6(%arg0: i32) -> (i32, i32) {
    %c0_i32 = arith.constant 0 : i32
    %c0_i32_0 = arith.constant 0 : i32
    %c0_i32_1 = arith.constant 0 : i32
    return %c0_i32, %c0_i32_0 : i32, i32
  }
  func.func @transform_7(%arg0: i32) -> (i32, i32) {
    %c0_i32 = arith.constant 0 : i32
    %c0_i32_0 = arith.constant 0 : i32
    %c0_i32_1 = arith.constant 0 : i32
    return %c0_i32, %c0_i32_0 : i32, i32
  }
  func.func @transform_8(%arg0: i32) -> (i32, i32) {
    %c0_i32 = arith.constant 0 : i32
    %c0_i32_0 = arith.constant 0 : i32
    %c0_i32_1 = arith.constant 0 : i32
    return %c0_i32, %c0_i32_0 : i32, i32
  }
  func.func @transform_9(%arg0: i32) -> (i32, i32) {
    %c0_i32 = arith.constant 0 : i32
    %c0_i32_0 = arith.constant 0 : i32
    %c0_i32_1 = arith.constant 0 : i32
    return %c0_i32, %c0_i32_0 : i32, i32
  }
  func.func @transform_10(%arg0: i32) -> (i32, i32) {
    %c0_i32 = arith.constant 0 : i32
    %c0_i32_0 = arith.constant 0 : i32
    %c0_i32_1 = arith.constant 0 : i32
    return %c0_i32, %c0_i32_0 : i32, i32
  }
  func.func @transform_11(%arg0: i32) -> (i32, i32) {
    %c0_i32 = arith.constant 0 : i32
    %c0_i32_0 = arith.constant 0 : i32
    %c0_i32_1 = arith.constant 0 : i32
    return %c0_i32, %c0_i32_0 : i32, i32
  }
  func.func @transform_12(%arg0: i32) -> (i32, i32) {
    %c0_i32 = arith.constant 0 : i32
    %c0_i32_0 = arith.constant 0 : i32
    %c0_i32_1 = arith.constant 0 : i32
    return %c0_i32, %c0_i32_0 : i32, i32
  }
  func.func @transform_13(%arg0: i32) -> (i32, i32) {
    %c0_i32 = arith.constant 0 : i32
    %c0_i32_0 = arith.constant 0 : i32
    %c0_i32_1 = arith.constant 0 : i32
    return %c0_i32, %c0_i32_0 : i32, i32
  }
  func.func @transform_14(%arg0: i32) -> (i32, i32, i32) {
    %c0_i32 = arith.constant 0 : i32
    %c0_i32_0 = arith.constant 0 : i32
    %c0_i32_1 = arith.constant 0 : i32
    return %arg0, %c0_i32, %c0_i32_0 : i32, i32, i32
  }
}

</mosaic_0001>

<llo_original>
// kernel: bottleneck_forward.1
$region0: #{bottleneck_forward.1}
  #allocation0 [shape = 'u32[]', space=smem, size = 0x4, offset = 0x4, fixed_abs, tag = 'smem constant byte address 0x4 - core index']
  #allocation1 [shape = 'u32[144,128]{1,0:T(1,128)}', space=vmem, size = 0x12000, scoped, tag = 'internal scratch']
  #allocation2 [shape = 'bf16[288,384]{1,0:T(16,128)(2,1)}', space=vmem, size = 0x36000, scoped, tag = 'scratch operand']
  #allocation3 [shape = 'f32[256,128]{1,0:T(8,128)}', space=vmem, size = 0x20000, scoped, tag = 'scratch operand']
  %s0 = inlined_call_operand.vmem [shape: bf16[2,256,128], index: 0, kind: input, shape index: {}]
  %s1 = inlined_call_operand.vmem [shape: bf16[2,256,128], index: 1, kind: input, shape index: {}]
  %s2 = inlined_call_operand.vmem [shape: bf16[128,128], index: 2, kind: input, shape index: {}]
  %s3 = inlined_call_operand.vmem [shape: f32[1,128], index: 3, kind: input, shape index: {}]
  %s4 = inlined_call_operand.vmem [shape: f32[1,128], index: 4, kind: input, shape index: {}]
  %s5 = inlined_call_operand.vmem [shape: bf16[3,384,128], index: 5, kind: input, shape index: {}]
  %s6 = inlined_call_operand.vmem [shape: f32[1,128], index: 6, kind: input, shape index: {}]
  %s7 = inlined_call_operand.vmem [shape: f32[1,128], index: 7, kind: input, shape index: {}]
  %s8 = inlined_call_operand.vmem [shape: bf16[128,128], index: 8, kind: input, shape index: {}]
  %s9 = inlined_call_operand.vmem [shape: f32[1,128], index: 9, kind: input, shape index: {}]
  %s10 = inlined_call_operand.vmem [shape: f32[1,128], index: 10, kind: input, shape index: {}]
  %s11 = inlined_call_operand.vmem [shape: bf16[128,128], index: 11, kind: input, shape index: {}]
  %s12 = inlined_call_operand.vmem [shape: f32[1,128], index: 12, kind: input, shape index: {}]
  %s13 = inlined_call_operand.vmem [shape: f32[1,128], index: 13, kind: input, shape index: {}]
  %s14 = inlined_call_operand.vmem [shape: bf16[2,256,128], index: 14, kind: output, shape index: {}]
  %s15 = sld [smem:[#allocation0]]
  $region89: #{bottleneck_forward.1} parent=0
    _
  %s17 = ssub.s32 1, %s15
  %s18 = scalar_select 0, %s17, %s15
  loop: start=0, step=1, limit=4
  $region2: #{bottleneck_forward.1} parent=0 // loop_pre_header
    _
  $region3: #{bottleneck_forward.1} parent=0 // loop_header
    %s20 = sphi 0, %s24
    %p21 = scmp.ge.s32.totalorder %s20, 4
    %s30 = sphi 0, %s32
    %s33 = sphi 0, %s30
    %s34 = sphi 0, %s33
    %s50 = sphi 0, %s34
    %s54 = sphi 0, %s54
    %s56 = sphi 0, %s54
    %s57 = sphi 0, %s56
    %s71 = sphi 0, %s57
    %s75 = sphi 0, %s75
    %s77 = sphi 0, %s75
    %s78 = sphi 0, %s77
    %s92 = sphi 0, %s78
    %s96 = sphi 0, %s96
    %s98 = sphi 0, %s96
    %s99 = sphi 0, %s98
    %s113 = sphi 0, %s99
    %s117 = sphi 0, %s117
    %s119 = sphi 0, %s117
    %s120 = sphi 0, %s119
    %s134 = sphi 0, %s120
    %s138 = sphi 0, %s138
    %s140 = sphi 0, %s138
    %s141 = sphi 0, %s140
    %s155 = sphi 0, %s141
    %s159 = sphi 0, %s159
    %s161 = sphi 0, %s159
    %s162 = sphi 0, %s161
    %s176 = sphi 0, %s162
    %s180 = sphi 0, %s180
    %s182 = sphi 0, %s180
    %s183 = sphi 0, %s182
    %s197 = sphi 0, %s183
    %s201 = sphi 0, %s201
    %s203 = sphi 0, %s201
    %s204 = sphi 0, %s203
    %s218 = sphi 0, %s204
    %s222 = sphi 0, %s222
    %s224 = sphi 0, %s222
    %s225 = sphi 0, %s224
    %s239 = sphi 0, %s225
    %s243 = sphi 0, %s243
    %s245 = sphi 0, %s243
    %s246 = sphi 0, %s245
    %s260 = sphi 0, %s246
    %s264 = sphi 0, %s264
    %s266 = sphi 0, %s264
    %s267 = sphi 0, %s266
    %s281 = sphi 0, %s267
    %s285 = sphi 0, %s285
    %s287 = sphi 0, %s285
    %s288 = sphi 0, %s287
    %s302 = sphi 0, %s288
    %s306 = sphi 0, %s306
    %s308 = sphi 0, %s306
    %s309 = sphi 0, %s308
    %s323 = sphi 0, %s309
    %s329 = sphi 0, %s331
    %s332 = sphi 0, %s329
    %s333 = sphi 0, %s332
    %s349 = sphi 0, %s333
  $region4: #{bottleneck_forward.1} parent=0 // loop_header_branch
    %23 = sbr.rel (%p21) target = $region8
  $region5: #{bottleneck_forward.1} parent=0 // loop_body
    %s25 = ssub.s32 %s20, 1
    %s26 = ssub.s32 %s20, 2
    %s27 = sadd.s32 %s20, 1
    %s28 = ssub.s32 %s20, %s27
    %p29 = scmp.eq.s32.totalorder %s28, 0
    %s31 = sadd.s32 %s30, 1
    %s32 = scalar_select %p29, %s30, %s31
    %p35 = pneg %p29
    %p36 = scmp.eq.s32.totalorder %s20, 1
    %p37 = por %p35, %p36
    %p38 = scmp.ne.s32.totalorder %s30, %s33
    %p39 = scmp.eq.s32.totalorder %s20, 0
    %p40 = por %p38, %p39
    %p41 = scmp.ne.s32.totalorder %s30, %s33
    %p42 = scmp.eq.s32.totalorder %s25, 1
    %p43 = por %p41, %p42
    %p44 = scmp.ne.s32.totalorder %s33, %s34
    %p45 = scmp.eq.s32.totalorder %s25, 0
    %p46 = por %p44, %p45
    %p47 = scmp.ne.s32.totalorder %s33, %s34
    %p48 = scmp.eq.s32.totalorder %s26, 1
    %p49 = por %p47, %p48
    %p51 = scmp.ne.s32.totalorder %s34, %s50
    %p52 = scmp.eq.s32.totalorder %s26, 0
    %p53 = por %p51, %p52
    %s55 = sadd.s32 %s54, 1
    %p58 = scmp.eq.s32.totalorder %s20, 1
    %p59 = scmp.ne.s32.totalorder %s54, %s56
    %p60 = scmp.eq.s32.totalorder %s20, 0
    %p61 = por %p59, %p60
    %p62 = scmp.ne.s32.totalorder %s54, %s56
    %p63 = scmp.eq.s32.totalorder %s25, 1
    %p64 = por %p62, %p63
    %p65 = scmp.ne.s32.totalorder %s56, %s57
    %p66 = scmp.eq.s32.totalorder %s25, 0
    %p67 = por %p65, %p66
    %p68 = scmp.ne.s32.totalorder %s56, %s57
    %p69 = scmp.eq.s32.totalorder %s26, 1
    %p70 = por %p68, %p69
    %p72 = scmp.ne.s32.totalorder %s57, %s71
    %p73 = scmp.eq.s32.totalorder %s26, 0
    %p74 = por %p72, %p73
    %s76 = sadd.s32 %s75, 1
    %p79 = scmp.eq.s32.totalorder %s20, 1
    %p80 = scmp.ne.s32.totalorder %s75, %s77
    %p81 = scmp.eq.s32.totalorder %s20, 0
    %p82 = por %p80, %p81
    %p83 = scmp.ne.s32.totalorder %s75, %s77
    %p84 = scmp.eq.s32.totalorder %s25, 1
    %p85 = por %p83, %p84
    %p86 = scmp.ne.s32.totalorder %s77, %s78
    %p87 = scmp.eq.s32.totalorder %s25, 0
    %p88 = por %p86, %p87
    %p89 = scmp.ne.s32.totalorder %s77, %s78
    %p90 = scmp.eq.s32.totalorder %s26, 1
    %p91 = por %p89, %p90
    %p93 = scmp.ne.s32.totalorder %s78, %s92
    %p94 = scmp.eq.s32.totalorder %s26, 0
    %p95 = por %p93, %p94
    %s97 = sadd.s32 %s96, 1
    %p100 = scmp.eq.s32.totalorder %s20, 1
    %p101 = scmp.ne.s32.totalorder %s96, %s98
    %p102 = scmp.eq.s32.totalorder %s20, 0
    %p103 = por %p101, %p102
    %p104 = scmp.ne.s32.totalorder %s96, %s98
    %p105 = scmp.eq.s32.totalorder %s25, 1
    %p106 = por %p104, %p105
    %p107 = scmp.ne.s32.totalorder %s98, %s99
    %p108 = scmp.eq.s32.totalorder %s25, 0
    %p109 = por %p107, %p108
    %p110 = scmp.ne.s32.totalorder %s98, %s99
    %p111 = scmp.eq.s32.totalorder %s26, 1
    %p112 = por %p110, %p111
    %p114 = scmp.ne.s32.totalorder %s99, %s113
    %p115 = scmp.eq.s32.totalorder %s26, 0
    %p116 = por %p114, %p115
    %s118 = sadd.s32 %s117, 1
    %p121 = scmp.eq.s32.totalorder %s20, 1
    %p122 = scmp.ne.s32.totalorder %s117, %s119
    %p123 = scmp.eq.s32.totalorder %s20, 0
    %p124 = por %p122, %p123
    %p125 = scmp.ne.s32.totalorder %s117, %s119
    %p126 = scmp.eq.s32.totalorder %s25, 1
    %p127 = por %p125, %p126
    %p128 = scmp.ne.s32.totalorder %s119, %s120
    %p129 = scmp.eq.s32.totalorder %s25, 0
    %p130 = por %p128, %p129
    %p131 = scmp.ne.s32.totalorder %s119, %s120
    %p132 = scmp.eq.s32.totalorder %s26, 1
    %p133 = por %p131, %p132
    %p135 = scmp.ne.s32.totalorder %s120, %s134
    %p136 = scmp.eq.s32.totalorder %s26, 0
    %p137 = por %p135, %p136
    %s139 = sadd.s32 %s138, 1
    %p142 = scmp.eq.s32.totalorder %s20, 1
    %p143 = scmp.ne.s32.totalorder %s138, %s140
    %p144 = scmp.eq.s32.totalorder %s20, 0
    %p145 = por %p143, %p144
    %p146 = scmp.ne.s32.totalorder %s138, %s140
    %p147 = scmp.eq.s32.totalorder %s25, 1
    %p148 = por %p146, %p147
    %p149 = scmp.ne.s32.totalorder %s140, %s141
    %p150 = scmp.eq.s32.totalorder %s25, 0
    %p151 = por %p149, %p150
    %p152 = scmp.ne.s32.totalorder %s140, %s141
    %p153 = scmp.eq.s32.totalorder %s26, 1
    %p154 = por %p152, %p153
    %p156 = scmp.ne.s32.totalorder %s141, %s155
    %p157 = scmp.eq.s32.totalorder %s26, 0
    %p158 = por %p156, %p157
    %s160 = sadd.s32 %s159, 1
    %p163 = scmp.eq.s32.totalorder %s20, 1
    %p164 = scmp.ne.s32.totalorder %s159, %s161
    %p165 = scmp.eq.s32.totalorder %s20, 0
    %p166 = por %p164, %p165
    %p167 = scmp.ne.s32.totalorder %s159, %s161
    %p168 = scmp.eq.s32.totalorder %s25, 1
    %p169 = por %p167, %p168
    %p170 = scmp.ne.s32.totalorder %s161, %s162
    %p171 = scmp.eq.s32.totalorder %s25, 0
    %p172 = por %p170, %p171
    %p173 = scmp.ne.s32.totalorder %s161, %s162
    %p174 = scmp.eq.s32.totalorder %s26, 1
    %p175 = por %p173, %p174
    %p177 = scmp.ne.s32.totalorder %s162, %s176
    %p178 = scmp.eq.s32.totalorder %s26, 0
    %p179 = por %p177, %p178
    %s181 = sadd.s32 %s180, 1
    %p184 = scmp.eq.s32.totalorder %s20, 1
    %p185 = scmp.ne.s32.totalorder %s180, %s182
    %p186 = scmp.eq.s32.totalorder %s20, 0
    %p187 = por %p185, %p186
    %p188 = scmp.ne.s32.totalorder %s180, %s182
    %p189 = scmp.eq.s32.totalorder %s25, 1
    %p190 = por %p188, %p189
    %p191 = scmp.ne.s32.totalorder %s182, %s183
    %p192 = scmp.eq.s32.totalorder %s25, 0
    %p193 = por %p191, %p192
    %p194 = scmp.ne.s32.totalorder %s182, %s183
    %p195 = scmp.eq.s32.totalorder %s26, 1
    %p196 = por %p194, %p195
    %p198 = scmp.ne.s32.totalorder %s183, %s197
    %p199 = scmp.eq.s32.totalorder %s26, 0
    %p200 = por %p198, %p199
    %s202 = sadd.s32 %s201, 1
    %p205 = scmp.eq.s32.totalorder %s20, 1
    %p206 = scmp.ne.s32.totalorder %s201, %s203
    %p207 = scmp.eq.s32.totalorder %s20, 0
    %p208 = por %p206, %p207
    %p209 = scmp.ne.s32.totalorder %s201, %s203
    %p210 = scmp.eq.s32.totalorder %s25, 1
    %p211 = por %p209, %p210
    %p212 = scmp.ne.s32.totalorder %s203, %s204
    %p213 = scmp.eq.s32.totalorder %s25, 0
    %p214 = por %p212, %p213
    %p215 = scmp.ne.s32.totalorder %s203, %s204
    %p216 = scmp.eq.s32.totalorder %s26, 1
    %p217 = por %p215, %p216
    %p219 = scmp.ne.s32.totalorder %s204, %s218
    %p220 = scmp.eq.s32.totalorder %s26, 0
    %p221 = por %p219, %p220
    %s223 = sadd.s32 %s222, 1
    %p226 = scmp.eq.s32.totalorder %s20, 1
    %p227 = scmp.ne.s32.totalorder %s222, %s224
    %p228 = scmp.eq.s32.totalorder %s20, 0
    %p229 = por %p227, %p228
    %p230 = scmp.ne.s32.totalorder %s222, %s224
    %p231 = scmp.eq.s32.totalorder %s25, 1
    %p232 = por %p230, %p231
    %p233 = scmp.ne.s32.totalorder %s224, %s225
    %p234 = scmp.eq.s32.totalorder %s25, 0
    %p235 = por %p233, %p234
    %p236 = scmp.ne.s32.totalorder %s224, %s225
    %p237 = scmp.eq.s32.totalorder %s26, 1
    %p238 = por %p236, %p237
    %p240 = scmp.ne.s32.totalorder %s225, %s239
    %p241 = scmp.eq.s32.totalorder %s26, 0
    %p242 = por %p240, %p241
    %s244 = sadd.s32 %s243, 1
    %p247 = scmp.eq.s32.totalorder %s20, 1
    %p248 = scmp.ne.s32.totalorder %s243, %s245
    %p249 = scmp.eq.s32.totalorder %s20, 0
    %p250 = por %p248, %p249
    %p251 = scmp.ne.s32.totalorder %s243, %s245
    %p252 = scmp.eq.s32.totalorder %s25, 1
    %p253 = por %p251, %p252
    %p254 = scmp.ne.s32.totalorder %s245, %s246
    %p255 = scmp.eq.s32.totalorder %s25, 0
    %p256 = por %p254, %p255
    %p257 = scmp.ne.s32.totalorder %s245, %s246
    %p258 = scmp.eq.s32.totalorder %s26, 1
    %p259 = por %p257, %p258
    %p261 = scmp.ne.s32.totalorder %s246, %s260
    %p262 = scmp.eq.s32.totalorder %s26, 0
    %p263 = por %p261, %p262
    %s265 = sadd.s32 %s264, 1
    %p268 = scmp.eq.s32.totalorder %s20, 1
    %p269 = scmp.ne.s32.totalorder %s264, %s266
    %p270 = scmp.eq.s32.totalorder %s20, 0
    %p271 = por %p269, %p270
    %p272 = scmp.ne.s32.totalorder %s264, %s266
    %p273 = scmp.eq.s32.totalorder %s25, 1
    %p274 = por %p272, %p273
    %p275 = scmp.ne.s32.totalorder %s266, %s267
    %p276 = scmp.eq.s32.totalorder %s25, 0
    %p277 = por %p275, %p276
    %p278 = scmp.ne.s32.totalorder %s266, %s267
    %p279 = scmp.eq.s32.totalorder %s26, 1
    %p280 = por %p278, %p279
    %p282 = scmp.ne.s32.totalorder %s267, %s281
    %p283 = scmp.eq.s32.totalorder %s26, 0
    %p284 = por %p282, %p283
    %s286 = sadd.s32 %s285, 1
    %p289 = scmp.eq.s32.totalorder %s20, 1
    %p290 = scmp.ne.s32.totalorder %s285, %s287
    %p291 = scmp.eq.s32.totalorder %s20, 0
    %p292 = por %p290, %p291
    %p293 = scmp.ne.s32.totalorder %s285, %s287
    %p294 = scmp.eq.s32.totalorder %s25, 1
    %p295 = por %p293, %p294
    %p296 = scmp.ne.s32.totalorder %s287, %s288
    %p297 = scmp.eq.s32.totalorder %s25, 0
    %p298 = por %p296, %p297
    %p299 = scmp.ne.s32.totalorder %s287, %s288
    %p300 = scmp.eq.s32.totalorder %s26, 1
    %p301 = por %p299, %p300
    %p303 = scmp.ne.s32.totalorder %s288, %s302
    %p304 = scmp.eq.s32.totalorder %s26, 0
    %p305 = por %p303, %p304
    %s307 = sadd.s32 %s306, 1
    %p310 = scmp.eq.s32.totalorder %s20, 1
    %p311 = scmp.ne.s32.totalorder %s306, %s308
    %p312 = scmp.eq.s32.totalorder %s20, 0
    %p313 = por %p311, %p312
    %p314 = scmp.ne.s32.totalorder %s306, %s308
    %p315 = scmp.eq.s32.totalorder %s25, 1
    %p316 = por %p314, %p315
    %p317 = scmp.ne.s32.totalorder %s308, %s309
    %p318 = scmp.eq.s32.totalorder %s25, 0
    %p319 = por %p317, %p318
    %p320 = scmp.ne.s32.totalorder %s308, %s309
    %p321 = scmp.eq.s32.totalorder %s26, 1
    %p322 = por %p320, %p321
    %p324 = scmp.ne.s32.totalorder %s309, %s323
    %p325 = scmp.eq.s32.totalorder %s26, 0
    %p326 = por %p324, %p325
    %s327 = ssub.s32 %s20, %s27
    %p328 = scmp.eq.s32.totalorder %s327, 0
    %s330 = sadd.s32 %s329, 1
    %s331 = scalar_select %p328, %s329, %s330
    %p334 = pneg %p328
    %p335 = scmp.eq.s32.totalorder %s20, 1
    %p336 = por %p334, %p335
    %p337 = scmp.ne.s32.totalorder %s329, %s332
    %p338 = scmp.eq.s32.totalorder %s20, 0
    %p339 = por %p337, %p338
    %p340 = scmp.ne.s32.totalorder %s329, %s332
    %p341 = scmp.eq.s32.totalorder %s25, 1
    %p342 = por %p340, %p341
    %p343 = scmp.ne.s32.totalorder %s332, %s333
    %p344 = scmp.eq.s32.totalorder %s25, 0
    %p345 = por %p343, %p344
    %p346 = scmp.ne.s32.totalorder %s332, %s333
    %p347 = scmp.eq.s32.totalorder %s26, 1
    %p348 = por %p346, %p347
    %p350 = scmp.ne.s32.totalorder %s333, %s349
    %p351 = scmp.eq.s32.totalorder %s26, 0
    %p352 = por %p350, %p351
    %p353 = scmp.le.s32.totalorder 1, %s20
    %p354 = scmp.lt.s32.totalorder %s20, 3
    %p355 = pnand %p353, %p354
    %p356 = pneg %p355
    // Predicated region
    $region9: #{bottleneck_forward.1} parent=5 // pred_check
      _
    $region10: #{bottleneck_forward.1} parent=5 // pred_check_branch
      %358 = sbr.rel (%p355) target = $region12
    $region11: #{bottleneck_forward.1} parent=5 // pred_region
      %s359 = ssub.s32 %s20, 1
      // Predicated region
      $region13: #{bottleneck_forward.1} parent=11 // pred_check
        %p360 = pneg %p67
      $region14: #{bottleneck_forward.1} parent=11 // pred_check_branch
        %362 = sbr.rel (%p360) target = $region16
      $region15: #{bottleneck_forward.1} parent=11 // pred_region
        _
      $region16: #{bottleneck_forward.1} parent=11 // pred_fallthru
        _
      // Predicated region
      $region17: #{bottleneck_forward.1} parent=11 // pred_check
        %p363 = pneg %p88
      $region18: #{bottleneck_forward.1} parent=11 // pred_check_branch
        %365 = sbr.rel (%p363) target = $region20
      $region19: #{bottleneck_forward.1} parent=11 // pred_region
        _
      $region20: #{bottleneck_forward.1} parent=11 // pred_fallthru
        _
      // Predicated region
      $region21: #{bottleneck_forward.1} parent=11 // pred_check
        %p366 = pneg %p109
      $region22: #{bottleneck_forward.1} parent=11 // pred_check_branch
        %368 = sbr.rel (%p366) target = $region24
      $region23: #{bottleneck_forward.1} parent=11 // pred_region
        _
      $region24: #{bottleneck_forward.1} parent=11 // pred_fallthru
        _
      // Predicated region
      $region25: #{bottleneck_forward.1} parent=11 // pred_check
        %p369 = pneg %p130
      $region26: #{bottleneck_forward.1} parent=11 // pred_check_branch
        %371 = sbr.rel (%p369) target = $region28
      $region27: #{bottleneck_forward.1} parent=11 // pred_region
        _
      $region28: #{bottleneck_forward.1} parent=11 // pred_fallthru
        _
      // Predicated region
      $region29: #{bottleneck_forward.1} parent=11 // pred_check
        %p372 = pneg %p151
      $region30: #{bottleneck_forward.1} parent=11 // pred_check_branch
        %374 = sbr.rel (%p372) target = $region32
      $region31: #{bottleneck_forward.1} parent=11 // pred_region
        _
      $region32: #{bottleneck_forward.1} parent=11 // pred_fallthru
        _
      // Predicated region
      $region33: #{bottleneck_forward.1} parent=11 // pred_check
        %p375 = pneg %p172
      $region34: #{bottleneck_forward.1} parent=11 // pred_check_branch
        %377 = sbr.rel (%p375) target = $region36
      $region35: #{bottleneck_forward.1} parent=11 // pred_region
        _
      $region36: #{bottleneck_forward.1} parent=11 // pred_fallthru
        _
      // Predicated region
      $region37: #{bottleneck_forward.1} parent=11 // pred_check
        %p378 = pneg %p193
      $region38: #{bottleneck_forward.1} parent=11 // pred_check_branch
        %380 = sbr.rel (%p378) target = $region40
      $region39: #{bottleneck_forward.1} parent=11 // pred_region
        _
      $region40: #{bottleneck_forward.1} parent=11 // pred_fallthru
        _
      // Predicated region
      $region41: #{bottleneck_forward.1} parent=11 // pred_check
        %p381 = pneg %p214
      $region42: #{bottleneck_forward.1} parent=11 // pred_check_branch
        %383 = sbr.rel (%p381) target = $region44
      $region43: #{bottleneck_forward.1} parent=11 // pred_region
        _
      $region44: #{bottleneck_forward.1} parent=11 // pred_fallthru
        _
      // Predicated region
      $region45: #{bottleneck_forward.1} parent=11 // pred_check
        %p384 = pneg %p235
      $region46: #{bottleneck_forward.1} parent=11 // pred_check_branch
        %386 = sbr.rel (%p384) target = $region48
      $region47: #{bottleneck_forward.1} parent=11 // pred_region
        _
      $region48: #{bottleneck_forward.1} parent=11 // pred_fallthru
        _
      // Predicated region
      $region49: #{bottleneck_forward.1} parent=11 // pred_check
        %p387 = pneg %p256
      $region50: #{bottleneck_forward.1} parent=11 // pred_check_branch
        %389 = sbr.rel (%p387) target = $region52
      $region51: #{bottleneck_forward.1} parent=11 // pred_region
        _
      $region52: #{bottleneck_forward.1} parent=11 // pred_fallthru
        _
      // Predicated region
      $region53: #{bottleneck_forward.1} parent=11 // pred_check
        %p390 = pneg %p277
      $region54: #{bottleneck_forward.1} parent=11 // pred_check_branch
        %392 = sbr.rel (%p390) target = $region56
      $region55: #{bottleneck_forward.1} parent=11 // pred_region
        _
      $region56: #{bottleneck_forward.1} parent=11 // pred_fallthru
        _
      // Predicated region
      $region57: #{bottleneck_forward.1} parent=11 // pred_check
        %p393 = pneg %p298
      $region58: #{bottleneck_forward.1} parent=11 // pred_check_branch
        %395 = sbr.rel (%p393) target = $region60
      $region59: #{bottleneck_forward.1} parent=11 // pred_region
        _
      $region60: #{bottleneck_forward.1} parent=11 // pred_fallthru
        _
      // Predicated region
      $region61: #{bottleneck_forward.1} parent=11 // pred_check
        %p396 = pneg %p319
      $region62: #{bottleneck_forward.1} parent=11 // pred_check_branch
        %398 = sbr.rel (%p396) target = $region64
      $region63: #{bottleneck_forward.1} parent=11 // pred_region
        _
      $region64: #{bottleneck_forward.1} parent=11 // pred_fallthru
        _
    $region12: #{bottleneck_forward.1} parent=5 // pred_fallthru
      _
    %p399 = scmp.lt.s32.totalorder %s20, 2
    // Predicated region
    $region65: #{bottleneck_forward.1} parent=5 // pred_check
      %p400 = pneg %p399
    $region66: #{bottleneck_forward.1} parent=5 // pred_check_branch
      %402 = sbr.rel (%p400) target = $region68
    $region67: #{bottleneck_forward.1} parent=5 // pred_region
      // Predicated region
      $region69: #{bottleneck_forward.1} parent=67 // pred_check
        %p403 = pneg %p40
      $region70: #{bottleneck_forward.1} parent=67 // pred_check_branch
        %405 = sbr.rel (%p403) target = $region72
      $region71: #{bottleneck_forward.1} parent=67 // pred_region
        %p406 = scmp.lt.s32.totalorder %s20, 1
        %s407 = scalar_select %p406, %s20, 1
        %s408 = smul.addr %s407, 32
        %s409 = smul.addr %s408, 4
        %s410 = scalar_lea.vmem %s0, %s409
      $region72: #{bottleneck_forward.1} parent=67 // pred_fallthru
        _
    $region68: #{bottleneck_forward.1} parent=5 // pred_fallthru
      _
    %p411 = scmp.le.s32.totalorder 1, %s20
    %p412 = scmp.lt.s32.totalorder %s20, 3
    %p413 = pnand %p411, %p412
    %p414 = pneg %p413
    // Predicated region
    $region73: #{bottleneck_forward.1} parent=5 // pred_check
      _
    $region74: #{bottleneck_forward.1} parent=5 // pred_check_branch
      %416 = sbr.rel (%p413) target = $region76
    $region75: #{bottleneck_forward.1} parent=5 // pred_region
      %s417 = ssub.s32 %s20, 1
      %p418 = scmp.lt.s32.totalorder %s25, 1
      %s419 = scalar_select %p418, %s25, 1
      %s420 = smul.addr %s419, 32
      %s421 = smul.addr %s420, 4
      %s422 = scalar_lea.vmem %s0, %s421
      %p423 = pneg %p46
      %p424 = pneg %p43
      %p425 = pneg %p67
      %p426 = pneg %p64
      %p427 = pneg %p88
      %p428 = pneg %p85
      %p429 = pneg %p109
      %p430 = pneg %p106
      %p431 = pneg %p130
      %p432 = pneg %p127
      %p433 = pneg %p151
      %p434 = pneg %p148
      %p435 = pneg %p172
      %p436 = pneg %p169
      %p437 = pneg %p193
      %p438 = pneg %p190
      %p439 = pneg %p214
      %p440 = pneg %p211
      %p441 = pneg %p235
      %p442 = pneg %p232
      %p443 = pneg %p256
      %p444 = pneg %p253
      %p445 = pneg %p277
      %p446 = pneg %p274
      %p447 = pneg %p298
      %p448 = pneg %p295
      %p449 = pneg %p319
      %p450 = pneg %p316
      %p451 = pneg %p345
      %p452 = pneg %p342
      %p453 = scmp.lt.s32.totalorder %s25, 1
      %s454 = scalar_select %p453, %s25, 1
      %s455 = smul.addr %s454, 32
      %s456 = smul.addr %s455, 4
      %s457 = scalar_lea.vmem %s14, %s456
      %p458 = scmp.lt.s32.totalorder %s25, 1
      %s459 = scalar_select %p458, %s25, 1
      %s460 = smul.addr %s459, 32
      %s461 = smul.addr %s460, 4
      %s462 = scalar_lea.vmem %s0, %s461
      %p463 = scmp.lt.s32.totalorder %s25, 1
      %s464 = scalar_select %p463, %s25, 1
      %s465 = smul.addr %s464, 32
      %s466 = smul.addr %s465, 4
      %s467 = scalar_lea.vmem %s14, %s466
      %v469 = vld [vmem:[%s462] sm:$0xf]
      %v470 = vld [vmem:[%s462 + $0x4] sm:$0xf]
      %v471 = vld [vmem:[%s462 + $0x8] sm:$0xf]
      %v472 = vld [vmem:[%s462 + $0xc] sm:$0xf]
      %v473 = vld [vmem:[%s462 + $0x10] sm:$0xf]
      %v474 = vld [vmem:[%s462 + $0x14] sm:$0xf]
      %v475 = vld [vmem:[%s462 + $0x18] sm:$0xf]
      %v476 = vld [vmem:[%s462 + $0x1c] sm:$0xf]
      %v477 = vld [vmem:[%s462 + $0x20] sm:$0xf]
      %v478 = vld [vmem:[%s462 + $0x24] sm:$0xf]
      %v479 = vld [vmem:[%s462 + $0x28] sm:$0xf]
      %v480 = vld [vmem:[%s462 + $0x2c] sm:$0xf]
      %v481 = vld [vmem:[%s462 + $0x30] sm:$0xf]
      %v482 = vld [vmem:[%s462 + $0x34] sm:$0xf]
      %v483 = vld [vmem:[%s462 + $0x38] sm:$0xf]
      %v484 = vld [vmem:[%s462 + $0x3c] sm:$0xf]
      %v485 = vld [vmem:[%s462 + $0x40] sm:$0xf]
      %v486 = vld [vmem:[%s462 + $0x44] sm:$0xf]
      %v487 = vld [vmem:[%s462 + $0x48] sm:$0xf]
      %v488 = vld [vmem:[%s462 + $0x4c] sm:$0xf]
      %v489 = vld [vmem:[%s462 + $0x50] sm:$0xf]
      %v490 = vld [vmem:[%s462 + $0x54] sm:$0xf]
      %v491 = vld [vmem:[%s462 + $0x58] sm:$0xf]
      %v492 = vld [vmem:[%s462 + $0x5c] sm:$0xf]
      %v493 = vld [vmem:[%s462 + $0x60] sm:$0xf]
      %v494 = vld [vmem:[%s462 + $0x64] sm:$0xf]
      %v495 = vld [vmem:[%s462 + $0x68] sm:$0xf]
      %v496 = vld [vmem:[%s462 + $0x6c] sm:$0xf]
      %v497 = vld [vmem:[%s462 + $0x70] sm:$0xf]
      %v498 = vld [vmem:[%s462 + $0x74] sm:$0xf]
      %v499 = vld [vmem:[%s462 + $0x78] sm:$0xf]
      %v500 = vld [vmem:[%s462 + $0x7c] sm:$0xf]
      %v501 = vld [vmem:[%s2] sm:$0xf]
      %v502 = vld [vmem:[%s2 + $0x4] sm:$0xf]
      %v503 = vld [vmem:[%s2 + $0x8] sm:$0xf]
      %v504 = vld [vmem:[%s2 + $0xc] sm:$0xf]
      %v505 = vld [vmem:[%s2 + $0x10] sm:$0xf]
      %v506 = vld [vmem:[%s2 + $0x14] sm:$0xf]
      %v507 = vld [vmem:[%s2 + $0x18] sm:$0xf]
      %v508 = vld [vmem:[%s2 + $0x1c] sm:$0xf]
      %v509 = vld [vmem:[%s2 + $0x20] sm:$0xf]
      %v510 = vld [vmem:[%s2 + $0x24] sm:$0xf]
      %v511 = vld [vmem:[%s2 + $0x28] sm:$0xf]
      %v512 = vld [vmem:[%s2 + $0x2c] sm:$0xf]
      %v513 = vld [vmem:[%s2 + $0x30] sm:$0xf]
      %v514 = vld [vmem:[%s2 + $0x34] sm:$0xf]
      %v515 = vld [vmem:[%s2 + $0x38] sm:$0xf]
      %v516 = vld [vmem:[%s2 + $0x3c] sm:$0xf]
      %v549 = vunpack.c.l.b16 %v469
      %v550 = vunpack.c.l.b16 %v470
      %v551 = vunpack.c.l.b16 %v471
      %v552 = vunpack.c.l.b16 %v472
      %v553 = vunpack.c.l.b16 %v473
      %v554 = vunpack.c.l.b16 %v474
      %v555 = vunpack.c.l.b16 %v475
      %v556 = vunpack.c.l.b16 %v476
      %v557 = vunpack.c.l.b16 %v477
      %v558 = vunpack.c.l.b16 %v478
      %v559 = vunpack.c.l.b16 %v479
      %v560 = vunpack.c.l.b16 %v480
      %v561 = vunpack.c.l.b16 %v481
      %v562 = vunpack.c.l.b16 %v482
      %v563 = vunpack.c.l.b16 %v483
      %v564 = vunpack.c.l.b16 %v484
      %v565 = vunpack.c.l.b16 %v485
      %v566 = vunpack.c.l.b16 %v486
      %v567 = vunpack.c.l.b16 %v487
      %v568 = vunpack.c.l.b16 %v488
      %v569 = vunpack.c.l.b16 %v489
      %v570 = vunpack.c.l.b16 %v490
      %v571 = vunpack.c.l.b16 %v491
      %v572 = vunpack.c.l.b16 %v492
      %v573 = vunpack.c.l.b16 %v493
      %v574 = vunpack.c.l.b16 %v494
      %v575 = vunpack.c.l.b16 %v495
      %v576 = vunpack.c.l.b16 %v496
      %v577 = vunpack.c.l.b16 %v497
      %v578 = vunpack.c.l.b16 %v498
      %v579 = vunpack.c.l.b16 %v499
      %v580 = vunpack.c.l.b16 %v500
      %v581 = vpack.c.b16 %v550, %v549
      %v582 = vpack.c.b16 %v552, %v551
      %v583 = vpack.c.b16 %v554, %v553
      %v584 = vpack.c.b16 %v556, %v555
      %v585 = vpack.c.b16 %v558, %v557
      %v586 = vpack.c.b16 %v560, %v559
      %v587 = vpack.c.b16 %v562, %v561
      %v588 = vpack.c.b16 %v564, %v563
      %v589 = vpack.c.b16 %v566, %v565
      %v590 = vpack.c.b16 %v568, %v567
      %v591 = vpack.c.b16 %v570, %v569
      %v592 = vpack.c.b16 %v572, %v571
      %v593 = vpack.c.b16 %v574, %v573
      %v594 = vpack.c.b16 %v576, %v575
      %v595 = vpack.c.b16 %v578, %v577
      %v596 = vpack.c.b16 %v580, %v579
      %v629 = vunpack.c.l.b16 %v501
      %v630 = vunpack.c.l.b16 %v502
      %v631 = vunpack.c.l.b16 %v503
      %v632 = vunpack.c.l.b16 %v504
      %v633 = vunpack.c.l.b16 %v505
      %v634 = vunpack.c.l.b16 %v506
      %v635 = vunpack.c.l.b16 %v507
      %v636 = vunpack.c.l.b16 %v508
      %v637 = vunpack.c.l.b16 %v509
      %v638 = vunpack.c.l.b16 %v510
      %v639 = vunpack.c.l.b16 %v511
      %v640 = vunpack.c.l.b16 %v512
      %v641 = vunpack.c.l.b16 %v513
      %v642 = vunpack.c.l.b16 %v514
      %v643 = vunpack.c.l.b16 %v515
      %v644 = vunpack.c.l.b16 %v516
      %v645 = vpack.c.b16 %v630, %v629
      %v646 = vpack.c.b16 %v632, %v631
      %v647 = vpack.c.b16 %v634, %v633
      %v648 = vpack.c.b16 %v636, %v635
      %v649 = vpack.c.b16 %v638, %v637
      %v650 = vpack.c.b16 %v640, %v639
      %v651 = vpack.c.b16 %v642, %v641
      %v652 = vpack.c.b16 %v644, %v643
      %661 = vmatprep.subr.bf16.mxu0 0
      %662 = vmatpush1.bf16.msra.mxu0 %v645
      %663 = vmatprep.subr.bf16.mxu0 0
      %664 = vmatpush1.bf16.msra.mxu0 %v646
      %665 = vmatprep.subr.bf16.mxu0 0
      %666 = vmatpush1.bf16.msra.mxu0 %v647
      %667 = vmatprep.subr.bf16.mxu0 0
      %668 = vmatpush1.bf16.msra.mxu0 %v648
      %669 = vmatprep.subr.bf16.mxu0 0
      %670 = vmatpush1.bf16.msra.mxu0 %v649
      %671 = vmatprep.subr.bf16.mxu0 0
      %672 = vmatpush1.bf16.msra.mxu0 %v650
      %673 = vmatprep.subr.bf16.mxu0 0
      %674 = vmatpush1.bf16.msra.mxu0 %v651
      %675 = vmatprep.subr.bf16.mxu0 0
      %676 = vmatpush1.bf16.msra.mxu0 %v652
      %677 = vmatprep.subr.bf16.mxu0 0
      %678 = vmatpush1.bf16.msra.mxu0 0
      %679 = vmatprep.subr.bf16.mxu0 0
      %680 = vmatpush1.bf16.msra.mxu0 0
      %681 = vmatprep.subr.bf16.mxu0 0
      %682 = vmatpush1.bf16.msra.mxu0 0
      %683 = vmatprep.subr.bf16.mxu0 0
      %684 = vmatpush1.bf16.msra.mxu0 0
      %685 = vmatprep.subr.bf16.mxu0 0
      %686 = vmatpush1.bf16.msra.mxu0 0
      %687 = vmatprep.subr.bf16.mxu0 0
      %688 = vmatpush1.bf16.msra.mxu0 0
      %689 = vmatprep.subr.bf16.mxu0 0
      %690 = vmatpush1.bf16.msra.mxu0 0
      %691 = vmatprep.subr.bf16.mxu0 0
      %692 = vmatpush1.bf16.msra.mxu0 0
      %693 = vmatprep.mubr.bf16.mxu0 0
      %694 = vmatmul.mubr.bf16.gmra.mrb[0].mxu0 %v581
      %v695 = vpop.f32.mrb[0].mxu0
      %v696 = vadd.f32 0.0, %v695
      %v697 = vpop.f32.mrb[0].mxu0
      %v698 = vpop.f32.mrb[0].mxu0
      %v699 = vadd.f32 0.0, %v698
      %v700 = vpop.f32.mrb[0].mxu0
      %701 = vmatprep.mubr.bf16.mxu0 0
      %702 = vmatmul.mubr.bf16.gmra.mrb[0].mxu0 %v582
      %v703 = vpop.f32.mrb[0].mxu0
      %v704 = vadd.f32 0.0, %v703
      %v705 = vpop.f32.mrb[0].mxu0
      %v706 = vpop.f32.mrb[0].mxu0
      %v707 = vadd.f32 0.0, %v706
      %v708 = vpop.f32.mrb[0].mxu0
      %709 = vmatprep.mubr.bf16.mxu0 0
      %710 = vmatmul.mubr.bf16.gmra.mrb[0].mxu0 %v583
      %v711 = vpop.f32.mrb[0].mxu0
      %v712 = vadd.f32 0.0, %v711
      %v713 = vpop.f32.mrb[0].mxu0
      %v714 = vpop.f32.mrb[0].mxu0
      %v715 = vadd.f32 0.0, %v714
      %v716 = vpop.f32.mrb[0].mxu0
      %717 = vmatprep.mubr.bf16.mxu0 0
      %718 = vmatmul.mubr.bf16.gmra.mrb[0].mxu0 %v584
      %v719 = vpop.f32.mrb[0].mxu0
      %v720 = vadd.f32 0.0, %v719
      %v721 = vpop.f32.mrb[0].mxu0
      %v722 = vpop.f32.mrb[0].mxu0
      %v723 = vadd.f32 0.0, %v722
      %v724 = vpop.f32.mrb[0].mxu0
      %725 = vmatprep.mubr.bf16.mxu0 0
      %726 = vmatmul.mubr.bf16.gmra.mrb[0].mxu0 %v585
      %v727 = vpop.f32.mrb[0].mxu0
      %v728 = vadd.f32 0.0, %v727
      %v729 = vpop.f32.mrb[0].mxu0
      %v730 = vpop.f32.mrb[0].mxu0
      %v731 = vadd.f32 0.0, %v730
      %v732 = vpop.f32.mrb[0].mxu0
      %733 = vmatprep.mubr.bf16.mxu0 0
      %734 = vmatmul.mubr.bf16.gmra.mrb[0].mxu0 %v586
      %v735 = vpop.f32.mrb[0].mxu0
      %v736 = vadd.f32 0.0, %v735
      %v737 = vpop.f32.mrb[0].mxu0
      %v738 = vpop.f32.mrb[0].mxu0
      %v739 = vadd.f32 0.0, %v738
      %v740 = vpop.f32.mrb[0].mxu0
      %741 = vmatprep.mubr.bf16.mxu0 0
      %742 = vmatmul.mubr.bf16.gmra.mrb[0].mxu0 %v587
      %v743 = vpop.f32.mrb[0].mxu0
      %v744 = vadd.f32 0.0, %v743
      %v745 = vpop.f32.mrb[0].mxu0
      %v746 = vpop.f32.mrb[0].mxu0
      %v747 = vadd.f32 0.0, %v746
      %v748 = vpop.f32.mrb[0].mxu0
      %749 = vmatprep.mubr.bf16.mxu0 0
      %750 = vmatmul.mubr.bf16.gmra.mrb[0].mxu0 %v588
      %v751 = vpop.f32.mrb[0].mxu0
      %v752 = vadd.f32 0.0, %v751
      %v753 = vpop.f32.mrb[0].mxu0
      %v754 = vpop.f32.mrb[0].mxu0
      %v755 = vadd.f32 0.0, %v754
      %v756 = vpop.f32.mrb[0].mxu0
      %757 = vmatprep.mubr.bf16.mxu0 0
      %758 = vmatmul.mubr.bf16.gmra.mrb[0].mxu0 %v589
      %v759 = vpop.f32.mrb[0].mxu0
      %v760 = vadd.f32 0.0, %v759
      %v761 = vpop.f32.mrb[0].mxu0
      %v762 = vpop.f32.mrb[0].mxu0
      %v763 = vadd.f32 0.0, %v762
      %v764 = vpop.f32.mrb[0].mxu0
      %765 = vmatprep.mubr.bf16.mxu0 0
      %766 = vmatmul.mubr.bf16.gmra.mrb[0].mxu0 %v590
      %v767 = vpop.f32.mrb[0].mxu0
      %v768 = vadd.f32 0.0, %v767
      %v769 = vpop.f32.mrb[0].mxu0
      %v770 = vpop.f32.mrb[0].mxu0
      %v771 = vadd.f32 0.0, %v770
      %v772 = vpop.f32.mrb[0].mxu0
      %773 = vmatprep.mubr.bf16.mxu0 0
      %774 = vmatmul.mubr.bf16.gmra.mrb[0].mxu0 %v591
      %v775 = vpop.f32.mrb[0].mxu0
      %v776 = vadd.f32 0.0, %v775
      %v777 = vpop.f32.mrb[0].mxu0
      %v778 = vpop.f32.mrb[0].mxu0
      %v779 = vadd.f32 0.0, %v778
      %v780 = vpop.f32.mrb[0].mxu0
      %781 = vmatprep.mubr.bf16.mxu0 0
      %782 = vmatmul.mubr.bf16.gmra.mrb[0].mxu0 %v592
      %v783 = vpop.f32.mrb[0].mxu0
      %v784 = vadd.f32 0.0, %v783
      %v785 = vpop.f32.mrb[0].mxu0
      %v786 = vpop.f32.mrb[0].mxu0
      %v787 = vadd.f32 0.0, %v786
      %v788 = vpop.f32.mrb[0].mxu0
      %789 = vmatprep.mubr.bf16.mxu0 0
      %790 = vmatmul.mubr.bf16.gmra.mrb[0].mxu0 %v593
      %v791 = vpop.f32.mrb[0].mxu0
      %v792 = vadd.f32 0.0, %v791
      %v793 = vpop.f32.mrb[0].mxu0
      %v794 = vpop.f32.mrb[0].mxu0
      %v795 = vadd.f32 0.0, %v794
      %v796 = vpop.f32.mrb[0].mxu0
      %797 = vmatprep.mubr.bf16.mxu0 0
      %798 = vmatmul.mubr.bf16.gmra.mrb[0].mxu0 %v594
      %v799 = vpop.f32.mrb[0].mxu0
      %v800 = vadd.f32 0.0, %v799
      %v801 = vpop.f32.mrb[0].mxu0
      %v802 = vpop.f32.mrb[0].mxu0
      %v803 = vadd.f32 0.0, %v802
      %v804 = vpop.f32.mrb[0].mxu0
      %805 = vmatprep.mubr.bf16.mxu0 0
      %806 = vmatmul.mubr.bf16.gmra.mrb[0].mxu0 %v595
      %v807 = vpop.f32.mrb[0].mxu0
      %v808 = vadd.f32 0.0, %v807
      %v809 = vpop.f32.mrb[0].mxu0
      %v810 = vpop.f32.mrb[0].mxu0
      %v811 = vadd.f32 0.0, %v810
      %v812 = vpop.f32.mrb[0].mxu0
      %813 = vmatprep.mubr.bf16.mxu0 0
      %814 = vmatmul.mubr.bf16.gmra.mrb[0].mxu0 %v596
      %v815 = vpop.f32.mrb[0].mxu0
      %v816 = vadd.f32 0.0, %v815
      %v817 = vpop.f32.mrb[0].mxu0
      %v818 = vpop.f32.mrb[0].mxu0
      %v819 = vadd.f32 0.0, %v818
      %v820 = vpop.f32.mrb[0].mxu0
      %821 = vdwg.mxu0
      %v822 = vld [vmem:[%s3] sm:$0x1]
      %v824 = vlaneseq
      %v825 = vshrl.u32 %v824, 7
      %v826 = vsub.s32 0, %v825
      %v827 = vrot.slane %v822, %v826
      %v829 = vmul.f32 %v696, %v827
      %v830 = vmul.f32 %v699, %v827
      %v831 = vmul.f32 %v704, %v827
      %v832 = vmul.f32 %v707, %v827
      %v833 = vmul.f32 %v712, %v827
      %v834 = vmul.f32 %v715, %v827
      %v835 = vmul.f32 %v720, %v827
      %v836 = vmul.f32 %v723, %v827
      %v837 = vmul.f32 %v728, %v827
      %v838 = vmul.f32 %v731, %v827
      %v839 = vmul.f32 %v736, %v827
      %v840 = vmul.f32 %v739, %v827
      %v841 = vmul.f32 %v744, %v827
      %v842 = vmul.f32 %v747, %v827
      %v843 = vmul.f32 %v752, %v827
      %v844 = vmul.f32 %v755, %v827
      %v845 = vmul.f32 %v760, %v827
      %v846 = vmul.f32 %v763, %v827
      %v847 = vmul.f32 %v768, %v827
      %v848 = vmul.f32 %v771, %v827
      %v849 = vmul.f32 %v776, %v827
      %v850 = vmul.f32 %v779, %v827
      %v851 = vmul.f32 %v784, %v827
      %v852 = vmul.f32 %v787, %v827
      %v853 = vmul.f32 %v792, %v827
      %v854 = vmul.f32 %v795, %v827
      %v855 = vmul.f32 %v800, %v827
      %v856 = vmul.f32 %v803, %v827
      %v857 = vmul.f32 %v808, %v827
      %v858 = vmul.f32 %v811, %v827
      %v859 = vmul.f32 %v816, %v827
      %v860 = vmul.f32 %v819, %v827
      %v861 = vld [vmem:[%s4] sm:$0x1]
      %v863 = vlaneseq
      %v864 = vshrl.u32 %v863, 7
      %v865 = vsub.s32 0, %v864
      %v866 = vrot.slane %v861, %v865
      %v868 = vadd.f32 %v829, %v866
      %v869 = vadd.f32 %v830, %v866
      %v870 = vadd.f32 %v831, %v866
      %v871 = vadd.f32 %v832, %v866
      %v872 = vadd.f32 %v833, %v866
      %v873 = vadd.f32 %v834, %v866
      %v874 = vadd.f32 %v835, %v866
      %v875 = vadd.f32 %v836, %v866
      %v876 = vadd.f32 %v837, %v866
      %v877 = vadd.f32 %v838, %v866
      %v878 = vadd.f32 %v839, %v866
      %v879 = vadd.f32 %v840, %v866
      %v880 = vadd.f32 %v841, %v866
      %v881 = vadd.f32 %v842, %v866
      %v882 = vadd.f32 %v843, %v866
      %v883 = vadd.f32 %v844, %v866
      %v884 = vadd.f32 %v845, %v866
      %v885 = vadd.f32 %v846, %v866
      %v886 = vadd.f32 %v847, %v866
      %v887 = vadd.f32 %v848, %v866
      %v888 = vadd.f32 %v849, %v866
      %v889 = vadd.f32 %v850, %v866
      %v890 = vadd.f32 %v851, %v866
      %v891 = vadd.f32 %v852, %v866
      %v892 = vadd.f32 %v853, %v866
      %v893 = vadd.f32 %v854, %v866
      %v894 = vadd.f32 %v855, %v866
      %v895 = vadd.f32 %v856, %v866
      %v896 = vadd.f32 %v857, %v866
      %v897 = vadd.f32 %v858, %v866
      %v898 = vadd.f32 %v859, %v866
      %v899 = vadd.f32 %v860, %v866
      %v900 = vmax.f32 %v868, 0.0
      %v901 = vmax.f32 %v869, 0.0
      %v902 = vmax.f32 %v870, 0.0
      %v903 = vmax.f32 %v871, 0.0
      %v904 = vmax.f32 %v872, 0.0
      %v905 = vmax.f32 %v873, 0.0
      %v906 = vmax.f32 %v874, 0.0
      %v907 = vmax.f32 %v875, 0.0
      %v908 = vmax.f32 %v876, 0.0
      %v909 = vmax.f32 %v877, 0.0
      %v910 = vmax.f32 %v878, 0.0
      %v911 = vmax.f32 %v879, 0.0
      %v912 = vmax.f32 %v880, 0.0
      %v913 = vmax.f32 %v881, 0.0
      %v914 = vmax.f32 %v882, 0.0
      %v915 = vmax.f32 %v883, 0.0
      %v916 = vmax.f32 %v884, 0.0
      %v917 = vmax.f32 %v885, 0.0
      %v918 = vmax.f32 %v886, 0.0
      %v919 = vmax.f32 %v887, 0.0
      %v920 = vmax.f32 %v888, 0.0
      %v921 = vmax.f32 %v889, 0.0
      %v922 = vmax.f32 %v890, 0.0
      %v923 = vmax.f32 %v891, 0.0
      %v924 = vmax.f32 %v892, 0.0
      %v925 = vmax.f32 %v893, 0.0
      %v926 = vmax.f32 %v894, 0.0
      %v927 = vmax.f32 %v895, 0.0
      %v928 = vmax.f32 %v896, 0.0
      %v929 = vmax.f32 %v897, 0.0
      %v930 = vmax.f32 %v898, 0.0
      %v931 = vmax.f32 %v899, 0.0
      %v932 = vpack.c.bf16 %v901, %v900
      %v933 = vpack.c.bf16 %v903, %v902
      %v934 = vpack.c.bf16 %v905, %v904
      %v935 = vpack.c.bf16 %v907, %v906
      %v936 = vpack.c.bf16 %v909, %v908
      %v937 = vpack.c.bf16 %v911, %v910
      %v938 = vpack.c.bf16 %v913, %v912
      %v939 = vpack.c.bf16 %v915, %v914
      %v940 = vpack.c.bf16 %v917, %v916
      %v941 = vpack.c.bf16 %v919, %v918
      %v942 = vpack.c.bf16 %v921, %v920
      %v943 = vpack.c.bf16 %v923, %v922
      %v944 = vpack.c.bf16 %v925, %v924
      %v945 = vpack.c.bf16 %v927, %v926
      %v946 = vpack.c.bf16 %v929, %v928
      %v947 = vpack.c.bf16 %v931, %v930
      %948 = vst [vmem:[#allocation2] sm:$0xff] 0
      %949 = vst [vmem:[#allocation2 + $0x8] sm:$0xff] 0
      %950 = vst [vmem:[#allocation2 + $0x10] sm:$0xff] 0
      %vm951 = vcmask 1040384
      %vm952 = vsmask.f32 256
      %vm953 = vmand %vm951, %vm952
      %v954 = vld [vmem:[#allocation2 + $0x18] sm:$0x1]
      %v955 = vsel %vm953, 0, %v954
      %956 = vst [vmem:[#allocation2 + $0x18] sm:$0x1] %v955
      %v957 = vld [vmem:[#allocation2 + $0x20] sm:$0x1]
      %v958 = vsel %vm953, 0, %v957
      %959 = vst [vmem:[#allocation2 + $0x20] sm:$0x1] %v958
      %v960 = vld [vmem:[#allocation2 + $0x28] sm:$0x1]
      %v961 = vsel %vm953, 0, %v960
      %962 = vst [vmem:[#allocation2 + $0x28] sm:$0x1] %v961
      %vm963 = vcmask 1047559
      %vm964 = vsmask.f32 7966
      %vm965 = vmand %vm963, %vm964
      %v966 = vld [vmem:[#allocation2 + $0x180] sm:$0x80]
      %v967 = vsel %vm965, 0, %v966
      %968 = vst [vmem:[#allocation2 + $0x180] sm:$0x80] %v967
      %v969 = vld [vmem:[#allocation2 + $0x188] sm:$0x80]
      %v970 = vsel %vm965, 0, %v969
      %971 = vst [vmem:[#allocation2 + $0x188] sm:$0x80] %v970
      %v972 = vld [vmem:[#allocation2 + $0x190] sm:$0x80]
      %v973 = vsel %vm965, 0, %v972
      %974 = vst [vmem:[#allocation2 + $0x190] sm:$0x80] %v973
      %975 = vst [vmem:[#allocation2 + $0x198] sm:$0xff] 0
      %976 = vst [vmem:[#allocation2 + $0x1a0] sm:$0xff] 0
      %977 = vst [vmem:[#allocation2 + $0x1a8] sm:$0xff] 0
      %v978 = vld [vmem:[%s1] sm:$0xf]
      %v979 = vld [vmem:[%s1 + $0x4] sm:$0xf]
      %v980 = vld [vmem:[%s1 + $0x8] sm:$0xf]
      %v981 = vld [vmem:[%s1 + $0xc] sm:$0xf]
      %v982 = vld [vmem:[%s1 + $0x10] sm:$0xf]
      %v983 = vld [vmem:[%s1 + $0x14] sm:$0xf]
      %v984 = vld [vmem:[%s1 + $0x18] sm:$0xf]
      %v985 = vld [vmem:[%s1 + $0x1c] sm:$0xf]
      %v986 = vld [vmem:[%s1 + $0x20] sm:$0xf]
      %v987 = vld [vmem:[%s1 + $0x24] sm:$0xf]
      %v988 = vld [vmem:[%s1 + $0x28] sm:$0xf]
      %v989 = vld [vmem:[%s1 + $0x2c] sm:$0xf]
      %v990 = vld [vmem:[%s1 + $0x30] sm:$0xf]
      %v991 = vld [vmem:[%s1 + $0x34] sm:$0xf]
      %v992 = vld [vmem:[%s1 + $0x38] sm:$0xf]
      %v993 = vld [vmem:[%s1 + $0x3c] sm:$0xf]
      %v994 = vld [vmem:[%s1 + $0x40] sm:$0xf]
      %v995 = vld [vmem:[%s1 + $0x44] sm:$0xf]
      %v996 = vld [vmem:[%s1 + $0x48] sm:$0xf]
      %v997 = vld [vmem:[%s1 + $0x4c] sm:$0xf]
      %v998 = vld [vmem:[%s1 + $0x50] sm:$0xf]
      %v999 = vld [vmem:[%s1 + $0x54] sm:$0xf]
      %v1000 = vld [vmem:[%s1 + $0x58] sm:$0xf]
      %v1001 = vld [vmem:[%s1 + $0x5c] sm:$0xf]
      %v1002 = vld [vmem:[%s1 + $0x60] sm:$0xf]
      %v1003 = vld [vmem:[%s1 + $0x64] sm:$0xf]
      %v1004 = vld [vmem:[%s1 + $0x68] sm:$0xf]
      %v1005 = vld [vmem:[%s1 + $0x6c] sm:$0xf]
      %v1006 = vld [vmem:[%s1 + $0x70] sm:$0xf]
      %v1007 = vld [vmem:[%s1 + $0x74] sm:$0xf]
      %v1008 = vld [vmem:[%s1 + $0x78] sm:$0xf]
      %v1009 = vld [vmem:[%s1 + $0x7c] sm:$0xf]
      %v1042 = vunpack.c.l.b16 %v978
      %v1043 = vunpack.c.l.b16 %v979
      %v1044 = vunpack.c.l.b16 %v980
      %v1045 = vunpack.c.l.b16 %v981
      %v1046 = vunpack.c.l.b16 %v982
      %v1047 = vunpack.c.l.b16 %v983
      %v1048 = vunpack.c.l.b16 %v984
      %v1049 = vunpack.c.l.b16 %v985
      %v1050 = vunpack.c.l.b16 %v986
      %v1051 = vunpack.c.l.b16 %v987
      %v1052 = vunpack.c.l.b16 %v988
      %v1053 = vunpack.c.l.b16 %v989
      %v1054 = vunpack.c.l.b16 %v990
      %v1055 = vunpack.c.l.b16 %v991
      %v1056 = vunpack.c.l.b16 %v992
      %v1057 = vunpack.c.l.b16 %v993
      %v1058 = vunpack.c.l.b16 %v994
      %v1059 = vunpack.c.l.b16 %v995
      %v1060 = vunpack.c.l.b16 %v996
      %v1061 = vunpack.c.l.b16 %v997
      %v1062 = vunpack.c.l.b16 %v998
      %v1063 = vunpack.c.l.b16 %v999
      %v1064 = vunpack.c.l.b16 %v1000
      %v1065 = vunpack.c.l.b16 %v1001
      %v1066 = vunpack.c.l.b16 %v1002
      %v1067 = vunpack.c.l.b16 %v1003
      %v1068 = vunpack.c.l.b16 %v1004
      %v1069 = vunpack.c.l.b16 %v1005
      %v1070 = vunpack.c.l.b16 %v1006
      %v1071 = vunpack.c.l.b16 %v1007
      %v1072 = vunpack.c.l.b16 %v1008
      %v1073 = vunpack.c.l.b16 %v1009
      %v1074 = vpack.c.b16 %v1043, %v1042
      %v1075 = vpack.c.b16 %v1045, %v1044
      %v1076 = vpack.c.b16 %v1047, %v1046
      %v1077 = vpack.c.b16 %v1049, %v1048
      %v1078 = vpack.c.b16 %v1051, %v1050
      %v1079 = vpack.c.b16 %v1053, %v1052
      %v1080 = vpack.c.b16 %v1055, %v1054
      %v1081 = vpack.c.b16 %v1057, %v1056
      %v1082 = vpack.c.b16 %v1059, %v1058
      %v1083 = vpack.c.b16 %v1061, %v1060
      %v1084 = vpack.c.b16 %v1063, %v1062
      %v1085 = vpack.c.b16 %v1065, %v1064
      %v1086 = vpack.c.b16 %v1067, %v1066
      %v1087 = vpack.c.b16 %v1069, %v1068
      %v1088 = vpack.c.b16 %v1071, %v1070
      %v1089 = vpack.c.b16 %v1073, %v1072
      %v1106 = vmul.bf16 %v932, %v1074
      %v1107 = vmul.bf16 %v933, %v1075
      %v1108 = vmul.bf16 %v934, %v1076
      %v1109 = vmul.bf16 %v935, %v1077
      %v1110 = vmul.bf16 %v936, %v1078
      %v1111 = vmul.bf16 %v937, %v1079
      %v1112 = vmul.bf16 %v938, %v1080
      %v1113 = vmul.bf16 %v939, %v1081
      %v1114 = vmul.bf16 %v940, %v1082
      %v1115 = vmul.bf16 %v941, %v1083
      %v1116 = vmul.bf16 %v942, %v1084
      %v1117 = vmul.bf16 %v943, %v1085
      %v1118 = vmul.bf16 %v944, %v1086
      %v1119 = vmul.bf16 %v945, %v1087
      %v1120 = vmul.bf16 %v946, %v1088
      %v1121 = vmul.bf16 %v947, %v1089
      %v1123 = vshrl.u32 %v1106, 16
      %v1125 = vrot.slane %v1123, 7
      %v1126 = vshll.u32 %v1106, 16
      %v1128 = vor.u32 %v1125, %v1126
      %v1130 = vshrl.u32 %v1107, 16
      %v1132 = vrot.slane %v1130, 7
      %v1133 = vshll.u32 %v1107, 16
      %v1135 = vor.u32 %v1132, %v1133
      %v1136 = vsel %vm952, %v1125, %v1135
      %v1138 = vshrl.u32 %v1108, 16
      %v1140 = vrot.slane %v1138, 7
      %v1141 = vshll.u32 %v1108, 16
      %v1143 = vor.u32 %v1140, %v1141
      %v1144 = vsel %vm952, %v1132, %v1143
      %v1146 = vshrl.u32 %v1109, 16
      %v1148 = vrot.slane %v1146, 7
      %v1149 = vshll.u32 %v1109, 16
      %v1151 = vor.u32 %v1148, %v1149
      %v1152 = vsel %vm952, %v1140, %v1151
      %v1154 = vshrl.u32 %v1110, 16
      %v1156 = vrot.slane %v1154, 7
      %v1157 = vshll.u32 %v1110, 16
      %v1159 = vor.u32 %v1156, %v1157
      %v1160 = vsel %vm952, %v1148, %v1159
      %v1162 = vshrl.u32 %v1111, 16
      %v1164 = vrot.slane %v1162, 7
      %v1165 = vshll.u32 %v1111, 16
      %v1167 = vor.u32 %v1164, %v1165
      %v1168 = vsel %vm952, %v1156, %v1167
      %v1170 = vshrl.u32 %v1112, 16
      %v1172 = vrot.slane %v1170, 7
      %v1173 = vshll.u32 %v1112, 16
      %v1175 = vor.u32 %v1172, %v1173
      %v1176 = vsel %vm952, %v1164, %v1175
      %v1178 = vshrl.u32 %v1113, 16
      %v1180 = vrot.slane %v1178, 7
      %v1181 = vshll.u32 %v1113, 16
      %v1183 = vor.u32 %v1180, %v1181
      %v1184 = vsel %vm952, %v1172, %v1183
      %v1186 = vshrl.u32 %v1114, 16
      %v1188 = vrot.slane %v1186, 7
      %v1189 = vshll.u32 %v1114, 16
      %v1191 = vor.u32 %v1188, %v1189
      %v1192 = vsel %vm952, %v1180, %v1191
      %v1194 = vshrl.u32 %v1115, 16
      %v1196 = vrot.slane %v1194, 7
      %v1197 = vshll.u32 %v1115, 16
      %v1199 = vor.u32 %v1196, %v1197
      %v1200 = vsel %vm952, %v1188, %v1199
      %v1202 = vshrl.u32 %v1116, 16
      %v1204 = vrot.slane %v1202, 7
      %v1205 = vshll.u32 %v1116, 16
      %v1207 = vor.u32 %v1204, %v1205
      %v1208 = vsel %vm952, %v1196, %v1207
      %v1210 = vshrl.u32 %v1117, 16
      %v1212 = vrot.slane %v1210, 7
      %v1213 = vshll.u32 %v1117, 16
      %v1215 = vor.u32 %v1212, %v1213
      %v1216 = vsel %vm952, %v1204, %v1215
      %v1218 = vshrl.u32 %v1118, 16
      %v1220 = vrot.slane %v1218, 7
      %v1221 = vshll.u32 %v1118, 16
      %v1223 = vor.u32 %v1220, %v1221
      %v1224 = vsel %vm952, %v1212, %v1223
      %v1226 = vshrl.u32 %v1119, 16
      %v1228 = vrot.slane %v1226, 7
      %v1229 = vshll.u32 %v1119, 16
      %v1231 = vor.u32 %v1228, %v1229
      %v1232 = vsel %vm952, %v1220, %v1231
      %v1234 = vshrl.u32 %v1120, 16
      %v1236 = vrot.slane %v1234, 7
      %v1237 = vshll.u32 %v1120, 16
      %v1239 = vor.u32 %v1236, %v1237
      %v1240 = vsel %vm952, %v1228, %v1239
      %v1242 = vshrl.u32 %v1121, 16
      %v1244 = vrot.slane %v1242, 7
      %v1245 = vshll.u32 %v1121, 16
      %v1247 = vor.u32 %v1244, %v1245
      %v1248 = vsel %vm952, %v1236, %v1247
      %vm1266 = vcmask 1047552
      %vm1267 = vsmask.f32 7938
      %vm1268 = vmand %vm1266, %vm1267
      %v1269 = vld [vmem:[#allocation2 + $0x18] sm:$0xff]
      %v1270 = vsel %vm1268, %v1128, %v1269
      %1271 = vst [vmem:[#allocation2 + $0x18] sm:$0xff] %v1270
      %1272 = vst [vmem:[#allocation2 + $0x30] sm:$0xff] %v1136
      %1273 = vst [vmem:[#allocation2 + $0x48] sm:$0xff] %v1144
      %1274 = vst [vmem:[#allocation2 + $0x60] sm:$0xff] %v1152
      %1275 = vst [vmem:[#allocation2 + $0x78] sm:$0xff] %v1160
      %1276 = vst [vmem:[#allocation2 + $0x90] sm:$0xff] %v1168
      %1277 = vst [vmem:[#allocation2 + $0xa8] sm:$0xff] %v1176
      %1278 = vst [vmem:[#allocation2 + $0xc0] sm:$0xff] %v1184
      %1279 = vst [vmem:[#allocation2 + $0xd8] sm:$0xff] %v1192
      %1280 = vst [vmem:[#allocation2 + $0xf0] sm:$0xff] %v1200
      %1281 = vst [vmem:[#allocation2 + $0x108] sm:$0xff] %v1208
      %1282 = vst [vmem:[#allocation2 + $0x120] sm:$0xff] %v1216
      %1283 = vst [vmem:[#allocation2 + $0x138] sm:$0xff] %v1224
      %1284 = vst [vmem:[#allocation2 + $0x150] sm:$0xff] %v1232
      %1285 = vst [vmem:[#allocation2 + $0x168] sm:$0xff] %v1240
      %1286 = vst [vmem:[#allocation2 + $0x180] sm:$0xff] %v1248
      %v1287 = vld [vmem:[#allocation2 + $0x198] sm:$0x1]
      %v1288 = vsel %vm953, %v1244, %v1287
      %1289 = vst [vmem:[#allocation2 + $0x198] sm:$0x1] %v1288
      %1290 = vst [vmem:[#allocation2 + $0x20] sm:$0xff] %v932
      %1291 = vst [vmem:[#allocation2 + $0x38] sm:$0xff] %v933
      %1292 = vst [vmem:[#allocation2 + $0x50] sm:$0xff] %v934
      %1293 = vst [vmem:[#allocation2 + $0x68] sm:$0xff] %v935
      %1294 = vst [vmem:[#allocation2 + $0x80] sm:$0xff] %v936
      %1295 = vst [vmem:[#allocation2 + $0x98] sm:$0xff] %v937
      %1296 = vst [vmem:[#allocation2 + $0xb0] sm:$0xff] %v938
      %1297 = vst [vmem:[#allocation2 + $0xc8] sm:$0xff] %v939
      %1298 = vst [vmem:[#allocation2 + $0xe0] sm:$0xff] %v940
      %1299 = vst [vmem:[#allocation2 + $0xf8] sm:$0xff] %v941
      %1300 = vst [vmem:[#allocation2 + $0x110] sm:$0xff] %v942
      %1301 = vst [vmem:[#allocation2 + $0x128] sm:$0xff] %v943
      %1302 = vst [vmem:[#allocation2 + $0x140] sm:$0xff] %v944
      %1303 = vst [vmem:[#allocation2 + $0x158] sm:$0xff] %v945
      %1304 = vst [vmem:[#allocation2 + $0x170] sm:$0xff] %v946
      %1305 = vst [vmem:[#allocation2 + $0x188] sm:$0xff] %v947
      %s1306 = scalar_lea.vmem %s1, 128
      %v1307 = vld [vmem:[%s1306] sm:$0xf]
      %v1308 = vld [vmem:[%s1306 + $0x4] sm:$0xf]
      %v1309 = vld [vmem:[%s1306 + $0x8] sm:$0xf]
      %v1310 = vld [vmem:[%s1306 + $0xc] sm:$0xf]
      %v1311 = vld [vmem:[%s1306 + $0x10] sm:$0xf]
      %v1312 = vld [vmem:[%s1306 + $0x14] sm:$0xf]
      %v1313 = vld [vmem:[%s1306 + $0x18] sm:$0xf]
      %v1314 = vld [vmem:[%s1306 + $0x1c] sm:$0xf]
      %v1315 = vld [vmem:[%s1306 + $0x20] sm:$0xf]
      %v1316 = vld [vmem:[%s1306 + $0x24] sm:$0xf]
      %v1317 = vld [vmem:[%s1306 + $0x28] sm:$0xf]
      %v1318 = vld [vmem:[%s1306 + $0x2c] sm:$0xf]
      %v1319 = vld [vmem:[%s1306 + $0x30] sm:$0xf]
      %v1320 = vld [vmem:[%s1306 + $0x34] sm:$0xf]
      %v1321 = vld [vmem:[%s1306 + $0x38] sm:$0xf]
      %v1322 = vld [vmem:[%s1306 + $0x3c] sm:$0xf]
      %v1323 = vld [vmem:[%s1306 + $0x40] sm:$0xf]
      %v1324 = vld [vmem:[%s1306 + $0x44] sm:$0xf]
      %v1325 = vld [vmem:[%s1306 + $0x48] sm:$0xf]
      %v1326 = vld [vmem:[%s1306 + $0x4c] sm:$0xf]
      %v1327 = vld [vmem:[%s1306 + $0x50] sm:$0xf]
      %v1328 = vld [vmem:[%s1306 + $0x54] sm:$0xf]
      %v1329 = vld [vmem:[%s1306 + $0x58] sm:$0xf]
      %v1330 = vld [vmem:[%s1306 + $0x5c] sm:$0xf]
      %v1331 = vld [vmem:[%s1306 + $0x60] sm:$0xf]
      %v1332 = vld [vmem:[%s1306 + $0x64] sm:$0xf]
      %v1333 = vld [vmem:[%s1306 + $0x68] sm:$0xf]
      %v1334 = vld [vmem:[%s1306 + $0x6c] sm:$0xf]
      %v1335 = vld [vmem:[%s1306 + $0x70] sm:$0xf]
      %v1336 = vld [vmem:[%s1306 + $0x74] sm:$0xf]
      %v1337 = vld [vmem:[%s1306 + $0x78] sm:$0xf]
      %v1338 = vld [vmem:[%s1306 + $0x7c] sm:$0xf]
      %v1371 = vunpack.c.l.b16 %v1307
      %v1372 = vunpack.c.l.b16 %v1308
      %v1373 = vunpack.c.l.b16 %v1309
      %v1374 = vunpack.c.l.b16 %v1310
      %v1375 = vunpack.c.l.b16 %v1311
      %v1376 = vunpack.c.l.b16 %v1312
      %v1377 = vunpack.c.l.b16 %v1313
      %v1378 = vunpack.c.l.b16 %v1314
      %v1379 = vunpack.c.l.b16 %v1315
      %v1380 = vunpack.c.l.b16 %v1316
      %v1381 = vunpack.c.l.b16 %v1317
      %v1382 = vunpack.c.l.b16 %v1318
      %v1383 = vunpack.c.l.b16 %v1319
      %v1384 = vunpack.c.l.b16 %v1320
      %v1385 = vunpack.c.l.b16 %v1321
      %v1386 = vunpack.c.l.b16 %v1322
      %v1387 = vunpack.c.l.b16 %v1323
      %v1388 = vunpack.c.l.b16 %v1324
      %v1389 = vunpack.c.l.b16 %v1325
      %v1390 = vunpack.c.l.b16 %v1326
      %v1391 = vunpack.c.l.b16 %v1327
      %v1392 = vunpack.c.l.b16 %v1328
      %v1393 = vunpack.c.l.b16 %v1329
      %v1394 = vunpack.c.l.b16 %v1330
      %v1395 = vunpack.c.l.b16 %v1331
      %v1396 = vunpack.c.l.b16 %v1332
      %v1397 = vunpack.c.l.b16 %v1333
      %v1398 = vunpack.c.l.b16 %v1334
      %v1399 = vunpack.c.l.b16 %v1335
      %v1400 = vunpack.c.l.b16 %v1336
      %v1401 = vunpack.c.l.b16 %v1337
      %v1402 = vunpack.c.l.b16 %v1338
      %v1403 = vpack.c.b16 %v1372, %v1371
      %v1404 = vpack.c.b16 %v1374, %v1373
      %v1405 = vpack.c.b16 %v1376, %v1375
      %v1406 = vpack.c.b16 %v1378, %v1377
      %v1407 = vpack.c.b16 %v1380, %v1379
      %v1408 = vpack.c.b16 %v1382, %v1381
      %v1409 = vpack.c.b16 %v1384, %v1383
      %v1410 = vpack.c.b16 %v1386, %v1385
      %v1411 = vpack.c.b16 %v1388, %v1387
      %v1412 = vpack.c.b16 %v1390, %v1389
      %v1413 = vpack.c.b16 %v1392, %v1391
      %v1414 = vpack.c.b16 %v1394, %v1393
      %v1415 = vpack.c.b16 %v1396, %v1395
      %v1416 = vpack.c.b16 %v1398, %v1397
      %v1417 = vpack.c.b16 %v1400, %v1399
      %v1418 = vpack.c.b16 %v1402, %v1401
      %v1435 = vmul.bf16 %v932, %v1403
      %v1436 = vmul.bf16 %v933, %v1404
      %v1437 = vmul.bf16 %v934, %v1405
      %v1438 = vmul.bf16 %v935, %v1406
      %v1439 = vmul.bf16 %v936, %v1407
      %v1440 = vmul.bf16 %v937, %v1408
      %v1441 = vmul.bf16 %v938, %v1409
      %v1442 = vmul.bf16 %v939, %v1410
      %v1443 = vmul.bf16 %v940, %v1411
      %v1444 = vmul.bf16 %v941, %v1412
      %v1445 = vmul.bf16 %v942, %v1413
      %v1446 = vmul.bf16 %v943, %v1414
      %v1447 = vmul.bf16 %v944, %v1415
      %v1448 = vmul.bf16 %v945, %v1416
      %v1449 = vmul.bf16 %v946, %v1417
      %v1450 = vmul.bf16 %v947, %v1418
      %vm1451 = vsmask.f32 7424
      %v1453 = vshll.u32 %v1435, 16
      %v1455 = vrot.slane %v1453, 1
      %v1456 = vshrl.u32 %v1435, 16
      %v1458 = vor.u32 %v1456, %v1455
      %v1460 = vshll.u32 %v1436, 16
      %v1462 = vrot.slane %v1460, 1
      %v1463 = vsel %vm1451, %v1458, %v1462
      %v1464 = vshrl.u32 %v1436, 16
      %v1466 = vor.u32 %v1464, %v1462
      %v1468 = vshll.u32 %v1437, 16
      %v1470 = vrot.slane %v1468, 1
      %v1471 = vsel %vm1451, %v1466, %v1470
      %v1472 = vshrl.u32 %v1437, 16
      %v1474 = vor.u32 %v1472, %v1470
      %v1476 = vshll.u32 %v1438, 16
      %v1478 = vrot.slane %v1476, 1
      %v1479 = vsel %vm1451, %v1474, %v1478
      %v1480 = vshrl.u32 %v1438, 16
      %v1482 = vor.u32 %v1480, %v1478
      %v1484 = vshll.u32 %v1439, 16
      %v1486 = vrot.slane %v1484, 1
      %v1487 = vsel %vm1451, %v1482, %v1486
      %v1488 = vshrl.u32 %v1439, 16
      %v1490 = vor.u32 %v1488, %v1486
      %v1492 = vshll.u32 %v1440, 16
      %v1494 = vrot.slane %v1492, 1
      %v1495 = vsel %vm1451, %v1490, %v1494
      %v1496 = vshrl.u32 %v1440, 16
      %v1498 = vor.u32 %v1496, %v1494
      %v1500 = vshll.u32 %v1441, 16
      %v1502 = vrot.slane %v1500, 1
      %v1503 = vsel %vm1451, %v1498, %v1502
      %v1504 = vshrl.u32 %v1441, 16
      %v1506 = vor.u32 %v1504, %v1502
      %v1508 = vshll.u32 %v1442, 16
      %v1510 = vrot.slane %v1508, 1
      %v1511 = vsel %vm1451, %v1506, %v1510
      %v1512 = vshrl.u32 %v1442, 16
      %v1514 = vor.u32 %v1512, %v1510
      %v1516 = vshll.u32 %v1443, 16
      %v1518 = vrot.slane %v1516, 1
      %v1519 = vsel %vm1451, %v1514, %v1518
      %v1520 = vshrl.u32 %v1443, 16
      %v1522 = vor.u32 %v1520, %v1518
      %v1524 = vshll.u32 %v1444, 16
      %v1526 = vrot.slane %v1524, 1
      %v1527 = vsel %vm1451, %v1522, %v1526
      %v1528 = vshrl.u32 %v1444, 16
      %v1530 = vor.u32 %v1528, %v1526
      %v1532 = vshll.u32 %v1445, 16
      %v1534 = vrot.slane %v1532, 1
      %v1535 = vsel %vm1451, %v1530, %v1534
      %v1536 = vshrl.u32 %v1445, 16
      %v1538 = vor.u32 %v1536, %v1534
      %v1540 = vshll.u32 %v1446, 16
      %v1542 = vrot.slane %v1540, 1
      %v1543 = vsel %vm1451, %v1538, %v1542
      %v1544 = vshrl.u32 %v1446, 16
      %v1546 = vor.u32 %v1544, %v1542
      %v1548 = vshll.u32 %v1447, 16
      %v1550 = vrot.slane %v1548, 1
      %v1551 = vsel %vm1451, %v1546, %v1550
      %v1552 = vshrl.u32 %v1447, 16
      %v1554 = vor.u32 %v1552, %v1550
      %v1556 = vshll.u32 %v1448, 16
      %v1558 = vrot.slane %v1556, 1
      %v1559 = vsel %vm1451, %v1554, %v1558
      %v1560 = vshrl.u32 %v1448, 16
      %v1562 = vor.u32 %v1560, %v1558
      %v1564 = vshll.u32 %v1449, 16
      %v1566 = vrot.slane %v1564, 1
      %v1567 = vsel %vm1451, %v1562, %v1566
      %v1568 = vshrl.u32 %v1449, 16
      %v1570 = vor.u32 %v1568, %v1566
      %v1572 = vshll.u32 %v1450, 16
      %v1574 = vrot.slane %v1572, 1
      %v1575 = vsel %vm1451, %v1570, %v1574
      %v1576 = vshrl.u32 %v1450, 16
      %v1578 = vor.u32 %v1576, %v1574
      %v1596 = vld [vmem:[#allocation2 + $0x10] sm:$0x80]
      %v1597 = vsel %vm965, %v1455, %v1596
      %1598 = vst [vmem:[#allocation2 + $0x10] sm:$0x80] %v1597
      %1599 = vst [vmem:[#allocation2 + $0x28] sm:$0xff] %v1463
      %1600 = vst [vmem:[#allocation2 + $0x40] sm:$0xff] %v1471
      %1601 = vst [vmem:[#allocation2 + $0x58] sm:$0xff] %v1479
      %1602 = vst [vmem:[#allocation2 + $0x70] sm:$0xff] %v1487
      %1603 = vst [vmem:[#allocation2 + $0x88] sm:$0xff] %v1495
      %1604 = vst [vmem:[#allocation2 + $0xa0] sm:$0xff] %v1503
      %1605 = vst [vmem:[#allocation2 + $0xb8] sm:$0xff] %v1511
      %1606 = vst [vmem:[#allocation2 + $0xd0] sm:$0xff] %v1519
      %1607 = vst [vmem:[#allocation2 + $0xe8] sm:$0xff] %v1527
      %1608 = vst [vmem:[#allocation2 + $0x100] sm:$0xff] %v1535
      %1609 = vst [vmem:[#allocation2 + $0x118] sm:$0xff] %v1543
      %1610 = vst [vmem:[#allocation2 + $0x130] sm:$0xff] %v1551
      %1611 = vst [vmem:[#allocation2 + $0x148] sm:$0xff] %v1559
      %1612 = vst [vmem:[#allocation2 + $0x160] sm:$0xff] %v1567
      %1613 = vst [vmem:[#allocation2 + $0x178] sm:$0xff] %v1575
      %vm1614 = vmand %vm1266, %vm1451
      %v1615 = vld [vmem:[#allocation2 + $0x190] sm:$0xff]
      %v1616 = vsel %vm1614, %v1578, %v1615
      %1617 = vst [vmem:[#allocation2 + $0x190] sm:$0xff] %v1616
      %v1618 = vld [vmem:[#allocation2] sm:$0xff]
      %v1619 = vld [vmem:[#allocation2 + $0x8] sm:$0xff]
      %v1620 = vld [vmem:[#allocation2 + $0x10] sm:$0xff]
      %v1621 = vld [vmem:[#allocation2 + $0x18] sm:$0xff]
      %v1622 = vld [vmem:[#allocation2 + $0x20] sm:$0xff]
      %v1623 = vld [vmem:[#allocation2 + $0x28] sm:$0xff]
      %v1624 = vld [vmem:[#allocation2 + $0x30] sm:$0xff]
      %v1625 = vld [vmem:[#allocation2 + $0x38] sm:$0xff]
      %v1626 = vld [vmem:[#allocation2 + $0x40] sm:$0xff]
      %v1627 = vld [vmem:[#allocation2 + $0x48] sm:$0xff]
      %v1628 = vld [vmem:[#allocation2 + $0x50] sm:$0xff]
      %v1629 = vld [vmem:[#allocation2 + $0x58] sm:$0xff]
      %v1630 = vld [vmem:[#allocation2 + $0x60] sm:$0xff]
      %v1631 = vld [vmem:[#allocation2 + $0x68] sm:$0xff]
      %v1632 = vld [vmem:[#allocation2 + $0x70] sm:$0xff]
      %v1633 = vld [vmem:[#allocation2 + $0x78] sm:$0xff]
      %v1634 = vld [vmem:[#allocation2 + $0x80] sm:$0xff]
      %v1635 = vld [vmem:[#allocation2 + $0x88] sm:$0xff]
      %v1636 = vld [vmem:[#allocation2 + $0x90] sm:$0xff]
      %v1637 = vld [vmem:[#allocation2 + $0x98] sm:$0xff]
      %v1638 = vld [vmem:[#allocation2 + $0xa0] sm:$0xff]
      %v1639 = vld [vmem:[#allocation2 + $0xa8] sm:$0xff]
      %v1640 = vld [vmem:[#allocation2 + $0xb0] sm:$0xff]
      %v1641 = vld [vmem:[#allocation2 + $0xb8] sm:$0xff]
      %v1642 = vld [vmem:[#allocation2 + $0xc0] sm:$0xff]
      %v1643 = vld [vmem:[#allocation2 + $0xc8] sm:$0xff]
      %v1644 = vld [vmem:[#allocation2 + $0xd0] sm:$0xff]
      %v1645 = vld [vmem:[#allocation2 + $0xd8] sm:$0xff]
      %v1646 = vld [vmem:[#allocation2 + $0xe0] sm:$0xff]
      %v1647 = vld [vmem:[#allocation2 + $0xe8] sm:$0xff]
      %v1648 = vld [vmem:[#allocation2 + $0xf0] sm:$0xff]
      %v1649 = vld [vmem:[#allocation2 + $0xf8] sm:$0xff]
      %v1650 = vld [vmem:[#allocation2 + $0x100] sm:$0xff]
      %v1651 = vld [vmem:[#allocation2 + $0x108] sm:$0xff]
      %v1652 = vld [vmem:[#allocation2 + $0x110] sm:$0xff]
      %v1653 = vld [vmem:[#allocation2 + $0x118] sm:$0xff]
      %v1654 = vld [vmem:[#allocation2 + $0x120] sm:$0xff]
      %v1655 = vld [vmem:[#allocation2 + $0x128] sm:$0xff]
      %v1656 = vld [vmem:[#allocation2 + $0x130] sm:$0xff]
      %v1657 = vld [vmem:[#allocation2 + $0x138] sm:$0xff]
      %v1658 = vld [vmem:[#allocation2 + $0x140] sm:$0xff]
      %v1659 = vld [vmem:[#allocation2 + $0x148] sm:$0xff]
      %v1660 = vld [vmem:[#allocation2 + $0x150] sm:$0xff]
      %v1661 = vld [vmem:[#allocation2 + $0x158] sm:$0xff]
      %v1662 = vld [vmem:[#allocation2 + $0x160] sm:$0xff]
      %v1663 = vld [vmem:[#allocation2 + $0x168] sm:$0xff]
      %v1664 = vld [vmem:[#allocation2 + $0x170] sm:$0xff]
      %v1665 = vld [vmem:[#allocation2 + $0x178] sm:$0xff]
      %v1666 = vld [vmem:[%s5] sm:$0xf]
      %v1667 = vld [vmem:[%s5 + $0x4] sm:$0xf]
      %v1668 = vld [vmem:[%s5 + $0x8] sm:$0xf]
      %v1669 = vld [vmem:[%s5 + $0xc] sm:$0xf]
      %v1670 = vld [vmem:[%s5 + $0x10] sm:$0xf]
      %v1671 = vld [vmem:[%s5 + $0x14] sm:$0xf]
      %v1672 = vld [vmem:[%s5 + $0x18] sm:$0xf]
      %v1673 = vld [vmem:[%s5 + $0x1c] sm:$0xf]
      %v1674 = vld [vmem:[%s5 + $0x20] sm:$0xf]
      %v1675 = vld [vmem:[%s5 + $0x24] sm:$0xf]
      %v1676 = vld [vmem:[%s5 + $0x28] sm:$0xf]
      %v1677 = vld [vmem:[%s5 + $0x2c] sm:$0xf]
      %v1678 = vld [vmem:[%s5 + $0x30] sm:$0xf]
      %v1679 = vld [vmem:[%s5 + $0x34] sm:$0xf]
      %v1680 = vld [vmem:[%s5 + $0x38] sm:$0xf]
      %v1681 = vld [vmem:[%s5 + $0x3c] sm:$0xf]
      %v1682 = vld [vmem:[%s5 + $0x40] sm:$0xf]
      %v1683 = vld [vmem:[%s5 + $0x44] sm:$0xf]
      %v1684 = vld [vmem:[%s5 + $0x48] sm:$0xf]
      %v1685 = vld [vmem:[%s5 + $0x4c] sm:$0xf]
      %v1686 = vld [vmem:[%s5 + $0x50] sm:$0xf]
      %v1687 = vld [vmem:[%s5 + $0x54] sm:$0xf]
      %v1688 = vld [vmem:[%s5 + $0x58] sm:$0xf]
      %v1689 = vld [vmem:[%s5 + $0x5c] sm:$0xf]
      %v1690 = vld [vmem:[%s5 + $0x60] sm:$0xf]
      %v1691 = vld [vmem:[%s5 + $0x64] sm:$0xf]
      %v1692 = vld [vmem:[%s5 + $0x68] sm:$0xf]
      %v1693 = vld [vmem:[%s5 + $0x6c] sm:$0xf]
      %v1694 = vld [vmem:[%s5 + $0x70] sm:$0xf]
      %v1695 = vld [vmem:[%s5 + $0x74] sm:$0xf]
      %v1696 = vld [vmem:[%s5 + $0x78] sm:$0xf]
      %v1697 = vld [vmem:[%s5 + $0x7c] sm:$0xf]
      %v1698 = vld [vmem:[%s5 + $0x80] sm:$0xf]
      %v1699 = vld [vmem:[%s5 + $0x84] sm:$0xf]
      %v1700 = vld [vmem:[%s5 + $0x88] sm:$0xf]
      %v1701 = vld [vmem:[%s5 + $0x8c] sm:$0xf]
      %v1702 = vld [vmem:[%s5 + $0x90] sm:$0xf]
      %v1703 = vld [vmem:[%s5 + $0x94] sm:$0xf]
      %v1704 = vld [vmem:[%s5 + $0x98] sm:$0xf]
      %v1705 = vld [vmem:[%s5 + $0x9c] sm:$0xf]
      %v1706 = vld [vmem:[%s5 + $0xa0] sm:$0xf]
      %v1707 = vld [vmem:[%s5 + $0xa4] sm:$0xf]
      %v1708 = vld [vmem:[%s5 + $0xa8] sm:$0xf]
      %v1709 = vld [vmem:[%s5 + $0xac] sm:$0xf]
      %v1710 = vld [vmem:[%s5 + $0xb0] sm:$0xf]
      %v1711 = vld [vmem:[%s5 + $0xb4] sm:$0xf]
      %v1712 = vld [vmem:[%s5 + $0xb8] sm:$0xf]
      %v1713 = vld [vmem:[%s5 + $0xbc] sm:$0xf]
      %v1762 = vunpack.c.l.b16 %v1666
      %v1763 = vunpack.c.l.b16 %v1667
      %v1764 = vunpack.c.l.b16 %v1668
      %v1765 = vunpack.c.l.b16 %v1669
      %v1766 = vunpack.c.l.b16 %v1670
      %v1767 = vunpack.c.l.b16 %v1671
      %v1768 = vunpack.c.l.b16 %v1672
      %v1769 = vunpack.c.l.b16 %v1673
      %v1770 = vunpack.c.l.b16 %v1674
      %v1771 = vunpack.c.l.b16 %v1675
      %v1772 = vunpack.c.l.b16 %v1676
      %v1773 = vunpack.c.l.b16 %v1677
      %v1774 = vunpack.c.l.b16 %v1678
      %v1775 = vunpack.c.l.b16 %v1679
      %v1776 = vunpack.c.l.b16 %v1680
      %v1777 = vunpack.c.l.b16 %v1681
      %v1778 = vunpack.c.l.b16 %v1682
      %v1779 = vunpack.c.l.b16 %v1683
      %v1780 = vunpack.c.l.b16 %v1684
      %v1781 = vunpack.c.l.b16 %v1685
      %v1782 = vunpack.c.l.b16 %v1686
      %v1783 = vunpack.c.l.b16 %v1687
      %v1784 = vunpack.c.l.b16 %v1688
      %v1785 = vunpack.c.l.b16 %v1689
      %v1786 = vunpack.c.l.b16 %v1690
      %v1787 = vunpack.c.l.b16 %v1691
      %v1788 = vunpack.c.l.b16 %v1692
      %v1789 = vunpack.c.l.b16 %v1693
      %v1790 = vunpack.c.l.b16 %v1694
      %v1791 = vunpack.c.l.b16 %v1695
      %v1792 = vunpack.c.l.b16 %v1696
      %v1793 = vunpack.c.l.b16 %v1697
      %v1794 = vunpack.c.l.b16 %v1698
      %v1795 = vunpack.c.l.b16 %v1699
      %v1796 = vunpack.c.l.b16 %v1700
      %v1797 = vunpack.c.l.b16 %v1701
      %v1798 = vunpack.c.l.b16 %v1702
      %v1799 = vunpack.c.l.b16 %v1703
      %v1800 = vunpack.c.l.b16 %v1704
      %v1801 = vunpack.c.l.b16 %v1705
      %v1802 = vunpack.c.l.b16 %v1706
      %v1803 = vunpack.c.l.b16 %v1707
      %v1804 = vunpack.c.l.b16 %v1708
      %v1805 = vunpack.c.l.b16 %v1709
      %v1806 = vunpack.c.l.b16 %v1710
      %v1807 = vunpack.c.l.b16 %v1711
      %v1808 = vunpack.c.l.b16 %v1712
      %v1809 = vunpack.c.l.b16 %v1713
      %v1810 = vpack.c.b16 %v1763, %v1762
      %v1811 = vpack.c.b16 %v1765, %v1764
      %v1812 = vpack.c.b16 %v1767, %v1766
      %v1813 = vpack.c.b16 %v1769, %v1768
      %v1814 = vpack.c.b16 %v1771, %v1770
      %v1815 = vpack.c.b16 %v1773, %v1772
      %v1816 = vpack.c.b16 %v1775, %v1774
      %v1817 = vpack.c.b16 %v1777, %v1776
      %v1818 = vpack.c.b16 %v1779, %v1778
      %v1819 = vpack.c.b16 %v1781, %v1780
      %v1820 = vpack.c.b16 %v1783, %v1782
      %v1821 = vpack.c.b16 %v1785, %v1784
      %v1822 = vpack.c.b16 %v1787, %v1786
      %v1823 = vpack.c.b16 %v1789, %v1788
      %v1824 = vpack.c.b16 %v1791, %v1790
      %v1825 = vpack.c.b16 %v1793, %v1792
      %v1826 = vpack.c.b16 %v1795, %v1794
      %v1827 = vpack.c.b16 %v1797, %v1796
      %v1828 = vpack.c.b16 %v1799, %v1798
      %v1829 = vpack.c.b16 %v1801, %v1800
      %v1830 = vpack.c.b16 %v1803, %v1802
      %v1831 = vpack.c.b16 %v1805, %v1804
      %v1832 = vpack.c.b16 %v1807, %v1806
      %v1833 = vpack.c.b16 %v1809, %v1808
      %1858 = vmatprep.subr.bf16.mxu0 0
      %1859 = vmatpush1.bf16.msra.mxu0 %v1810
      %1860 = vmatprep.subr.bf16.mxu0 0
      %1861 = vmatpush1.bf16.msra.mxu0 %v1811
      %1862 = vmatprep.subr.bf16.mxu0 0
      %1863 = vmatpush1.bf16.msra.mxu0 %v1812
      %1864 = vmatprep.subr.bf16.mxu0 0
      %1865 = vmatpush1.bf16.msra.mxu0 %v1813
      %1866 = vmatprep.subr.bf16.mxu0 0
      %1867 = vmatpush1.bf16.msra.mxu0 %v1814
      %1868 = vmatprep.subr.bf16.mxu0 0
      %1869 = vmatpush1.bf16.msra.mxu0 %v1815
      %1870 = vmatprep.subr.bf16.mxu0 0
      %1871 = vmatpush1.bf16.msra.mxu0 %v1816
      %1872 = vmatprep.subr.bf16.mxu0 0
      %1873 = vmatpush1.bf16.msra.mxu0 %v1817
      %1874 = vmatprep.subr.bf16.mxu0 0
      %1875 = vmatpush1.bf16.msra.mxu0 %v1818
      %1876 = vmatprep.subr.bf16.mxu0 0
      %1877 = vmatpush1.bf16.msra.mxu0 %v1819
      %1878 = vmatprep.subr.bf16.mxu0 0
      %1879 = vmatpush1.bf16.msra.mxu0 %v1820
      %1880 = vmatprep.subr.bf16.mxu0 0
      %1881 = vmatpush1.bf16.msra.mxu0 %v1821
      %1882 = vmatprep.subr.bf16.mxu0 0
      %1883 = vmatpush1.bf16.msra.mxu0 %v1822
      %1884 = vmatprep.subr.bf16.mxu0 0
      %1885 = vmatpush1.bf16.msra.mxu0 %v1823
      %1886 = vmatprep.subr.bf16.mxu0 0
      %1887 = vmatpush1.bf16.msra.mxu0 %v1824
      %1888 = vmatprep.subr.bf16.mxu0 0
      %1889 = vmatpush1.bf16.msra.mxu0 %v1825
      %1890 = vmatprep.mubr.bf16.mxu0 %v1619
      %1891 = vmatmul.mubr.bf16.gmra.mrb[0].mxu0 %v1618
      %v1892 = vpop.f32.mrb[0].mxu0
      %v1893 = vadd.f32 0.0, %v1892
      %v1894 = vpop.f32.mrb[0].mxu0
      %v1895 = vpop.f32.mrb[0].mxu0
      %v1896 = vadd.f32 0.0, %v1895
      %v1897 = vpop.f32.mrb[0].mxu0
      %1898 = vmatprep.mubr.bf16.mxu0 %v1622
      %1899 = vmatmul.mubr.bf16.gmra.mrb[0].mxu0 %v1621
      %v1900 = vpop.f32.mrb[0].mxu0
      %v1901 = vadd.f32 0.0, %v1900
      %v1902 = vpop.f32.mrb[0].mxu0
      %v1903 = vpop.f32.mrb[0].mxu0
      %v1904 = vadd.f32 0.0, %v1903
      %v1905 = vpop.f32.mrb[0].mxu0
      %1906 = vmatprep.mubr.bf16.mxu0 %v1625
      %1907 = vmatmul.mubr.bf16.gmra.mrb[0].mxu0 %v1624
      %v1908 = vpop.f32.mrb[0].mxu0
      %v1909 = vadd.f32 0.0, %v1908
      %v1910 = vpop.f32.mrb[0].mxu0
      %v1911 = vpop.f32.mrb[0].mxu0
      %v1912 = vadd.f32 0.0, %v1911
      %v1913 = vpop.f32.mrb[0].mxu0
      %1914 = vmatprep.mubr.bf16.mxu0 %v1628
      %1915 = vmatmul.mubr.bf16.gmra.mrb[0].mxu0 %v1627
      %v1916 = vpop.f32.mrb[0].mxu0
      %v1917 = vadd.f32 0.0, %v1916
      %v1918 = vpop.f32.mrb[0].mxu0
      %v1919 = vpop.f32.mrb[0].mxu0
      %v1920 = vadd.f32 0.0, %v1919
      %v1921 = vpop.f32.mrb[0].mxu0
      %1922 = vmatprep.mubr.bf16.mxu0 %v1631
      %1923 = vmatmul.mubr.bf16.gmra.mrb[0].mxu0 %v1630
      %v1924 = vpop.f32.mrb[0].mxu0
      %v1925 = vadd.f32 0.0, %v1924
      %v1926 = vpop.f32.mrb[0].mxu0
      %v1927 = vpop.f32.mrb[0].mxu0
      %v1928 = vadd.f32 0.0, %v1927
      %v1929 = vpop.f32.mrb[0].mxu0
      %1930 = vmatprep.mubr.bf16.mxu0 %v1634
      %1931 = vmatmul.mubr.bf16.gmra.mrb[0].mxu0 %v1633
      %v1932 = vpop.f32.mrb[0].mxu0
      %v1933 = vadd.f32 0.0, %v1932
      %v1934 = vpop.f32.mrb[0].mxu0
      %v1935 = vpop.f32.mrb[0].mxu0
      %v1936 = vadd.f32 0.0, %v1935
      %v1937 = vpop.f32.mrb[0].mxu0
      %1938 = vmatprep.mubr.bf16.mxu0 %v1637
      %1939 = vmatmul.mubr.bf16.gmra.mrb[0].mxu0 %v1636
      %v1940 = vpop.f32.mrb[0].mxu0
      %v1941 = vadd.f32 0.0, %v1940
      %v1942 = vpop.f32.mrb[0].mxu0
      %v1943 = vpop.f32.mrb[0].mxu0
      %v1944 = vadd.f32 0.0, %v1943
      %v1945 = vpop.f32.mrb[0].mxu0
      %1946 = vmatprep.mubr.bf16.mxu0 %v1640
      %1947 = vmatmul.mubr.bf16.gmra.mrb[0].mxu0 %v1639
      %v1948 = vpop.f32.mrb[0].mxu0
      %v1949 = vadd.f32 0.0, %v1948
      %v1950 = vpop.f32.mrb[0].mxu0
      %v1951 = vpop.f32.mrb[0].mxu0
      %v1952 = vadd.f32 0.0, %v1951
      %v1953 = vpop.f32.mrb[0].mxu0
      %1954 = vmatprep.mubr.bf16.mxu0 %v1643
      %1955 = vmatmul.mubr.bf16.gmra.mrb[0].mxu0 %v1642
      %v1956 = vpop.f32.mrb[0].mxu0
      %v1957 = vadd.f32 0.0, %v1956
      %v1958 = vpop.f32.mrb[0].mxu0
      %v1959 = vpop.f32.mrb[0].mxu0
      %v1960 = vadd.f32 0.0, %v1959
      %v1961 = vpop.f32.mrb[0].mxu0
      %1962 = vmatprep.mubr.bf16.mxu0 %v1646
      %1963 = vmatmul.mubr.bf16.gmra.mrb[0].mxu0 %v1645
      %v1964 = vpop.f32.mrb[0].mxu0
      %v1965 = vadd.f32 0.0, %v1964
      %v1966 = vpop.f32.mrb[0].mxu0
      %v1967 = vpop.f32.mrb[0].mxu0
      %v1968 = vadd.f32 0.0, %v1967
      %v1969 = vpop.f32.mrb[0].mxu0
      %1970 = vmatprep.mubr.bf16.mxu0 %v1649
      %1971 = vmatmul.mubr.bf16.gmra.mrb[0].mxu0 %v1648
      %v1972 = vpop.f32.mrb[0].mxu0
      %v1973 = vadd.f32 0.0, %v1972
      %v1974 = vpop.f32.mrb[0].mxu0
      %v1975 = vpop.f32.mrb[0].mxu0
      %v1976 = vadd.f32 0.0, %v1975
      %v1977 = vpop.f32.mrb[0].mxu0
      %1978 = vmatprep.mubr.bf16.mxu0 %v1652
      %1979 = vmatmul.mubr.bf16.gmra.mrb[0].mxu0 %v1651
      %v1980 = vpop.f32.mrb[0].mxu0
      %v1981 = vadd.f32 0.0, %v1980
      %v1982 = vpop.f32.mrb[0].mxu0
      %v1983 = vpop.f32.mrb[0].mxu0
      %v1984 = vadd.f32 0.0, %v1983
      %v1985 = vpop.f32.mrb[0].mxu0
      %1986 = vmatprep.mubr.bf16.mxu0 %v1655
      %1987 = vmatmul.mubr.bf16.gmra.mrb[0].mxu0 %v1654
      %v1988 = vpop.f32.mrb[0].mxu0
      %v1989 = vadd.f32 0.0, %v1988
      %v1990 = vpop.f32.mrb[0].mxu0
      %v1991 = vpop.f32.mrb[0].mxu0
      %v1992 = vadd.f32 0.0, %v1991
      %v1993 = vpop.f32.mrb[0].mxu0
      %1994 = vmatprep.mubr.bf16.mxu0 %v1658
      %1995 = vmatmul.mubr.bf16.gmra.mrb[0].mxu0 %v1657
      %v1996 = vpop.f32.mrb[0].mxu0
      %v1997 = vadd.f32 0.0, %v1996
      %v1998 = vpop.f32.mrb[0].mxu0
      %v1999 = vpop.f32.mrb[0].mxu0
      %v2000 = vadd.f32 0.0, %v1999
      %v2001 = vpop.f32.mrb[0].mxu0
      %2002 = vmatprep.mubr.bf16.mxu0 %v1661
      %2003 = vmatmul.mubr.bf16.gmra.mrb[0].mxu0 %v1660
      %v2004 = vpop.f32.mrb[0].mxu0
      %v2005 = vadd.f32 0.0, %v2004
      %v2006 = vpop.f32.mrb[0].mxu0
      %v2007 = vpop.f32.mrb[0].mxu0
      %v2008 = vadd.f32 0.0, %v2007
      %v2009 = vpop.f32.mrb[0].mxu0
      %2010 = vmatprep.mubr.bf16.mxu0 %v1664
      %2011 = vmatmul.mubr.bf16.gmra.mrb[0].mxu0 %v1663
      %v2012 = vpop.f32.mrb[0].mxu0
      %v2013 = vadd.f32 0.0, %v2012
      %v2014 = vpop.f32.mrb[0].mxu0
      %v2015 = vpop.f32.mrb[0].mxu0
      %v2016 = vadd.f32 0.0, %v2015
      %v2017 = vpop.f32.mrb[0].mxu0
      %2018 = vdwg.mxu0
      %2019 = vmatprep.subr.bf16.mxu0 0
      %2020 = vmatpush1.bf16.msra.mxu0 %v1826
      %2021 = vmatprep.subr.bf16.mxu0 0
      %2022 = vmatpush1.bf16.msra.mxu0 %v1827
      %2023 = vmatprep.subr.bf16.mxu0 0
      %2024 = vmatpush1.bf16.msra.mxu0 %v1828
      %2025 = vmatprep.subr.bf16.mxu0 0
      %2026 = vmatpush1.bf16.msra.mxu0 %v1829
      %2027 = vmatprep.subr.bf16.mxu0 0
      %2028 = vmatpush1.bf16.msra.mxu0 %v1830
      %2029 = vmatprep.subr.bf16.mxu0 0
      %2030 = vmatpush1.bf16.msra.mxu0 %v1831
      %2031 = vmatprep.subr.bf16.mxu0 0
      %2032 = vmatpush1.bf16.msra.mxu0 %v1832
      %2033 = vmatprep.subr.bf16.mxu0 0
      %2034 = vmatpush1.bf16.msra.mxu0 %v1833
      %2035 = vmatprep.subr.bf16.mxu0 0
      %2036 = vmatpush1.bf16.msra.mxu0 0
      %2037 = vmatprep.subr.bf16.mxu0 0
      %2038 = vmatpush1.bf16.msra.mxu0 0
      %2039 = vmatprep.subr.bf16.mxu0 0
      %2040 = vmatpush1.bf16.msra.mxu0 0
      %2041 = vmatprep.subr.bf16.mxu0 0
      %2042 = vmatpush1.bf16.msra.mxu0 0
      %2043 = vmatprep.subr.bf16.mxu0 0
      %2044 = vmatpush1.bf16.msra.mxu0 0
      %2045 = vmatprep.subr.bf16.mxu0 0
      %2046 = vmatpush1.bf16.msra.mxu0 0
      %2047 = vmatprep.subr.bf16.mxu0 0
      %2048 = vmatpush1.bf16.msra.mxu0 0
      %2049 = vmatprep.subr.bf16.mxu0 0
      %2050 = vmatpush1.bf16.msra.mxu0 0
      %2051 = vmatprep.mubr.bf16.mxu0 0
      %2052 = vmatmul.mubr.bf16.gmra.mrb[0].mxu0 %v1620
      %v2053 = vpop.f32.mrb[0].mxu0
      %v2054 = vadd.f32 %v1893, %v2053
      %v2055 = vpop.f32.mrb[0].mxu0
      %v2056 = vpop.f32.mrb[0].mxu0
      %v2057 = vadd.f32 %v1896, %v2056
      %v2058 = vpop.f32.mrb[0].mxu0
      %2059 = vmatprep.mubr.bf16.mxu0 0
      %2060 = vmatmul.mubr.bf16.gmra.mrb[0].mxu0 %v1623
      %v2061 = vpop.f32.mrb[0].mxu0
      %v2062 = vadd.f32 %v1901, %v2061
      %v2063 = vpop.f32.mrb[0].mxu0
      %v2064 = vpop.f32.mrb[0].mxu0
      %v2065 = vadd.f32 %v1904, %v2064
      %v2066 = vpop.f32.mrb[0].mxu0
      %2067 = vmatprep.mubr.bf16.mxu0 0
      %2068 = vmatmul.mubr.bf16.gmra.mrb[0].mxu0 %v1626
      %v2069 = vpop.f32.mrb[0].mxu0
      %v2070 = vadd.f32 %v1909, %v2069
      %v2071 = vpop.f32.mrb[0].mxu0
      %v2072 = vpop.f32.mrb[0].mxu0
      %v2073 = vadd.f32 %v1912, %v2072
      %v2074 = vpop.f32.mrb[0].mxu0
      %2075 = vmatprep.mubr.bf16.mxu0 0
      %2076 = vmatmul.mubr.bf16.gmra.mrb[0].mxu0 %v1629
      %v2077 = vpop.f32.mrb[0].mxu0
      %v2078 = vadd.f32 %v1917, %v2077
      %v2079 = vpop.f32.mrb[0].mxu0
      %v2080 = vpop.f32.mrb[0].mxu0
      %v2081 = vadd.f32 %v1920, %v2080
      %v2082 = vpop.f32.mrb[0].mxu0
      %2083 = vmatprep.mubr.bf16.mxu0 0
      %2084 = vmatmul.mubr.bf16.gmra.mrb[0].mxu0 %v1632
      %v2085 = vpop.f32.mrb[0].mxu0
      %v2086 = vadd.f32 %v1925, %v2085
      %v2087 = vpop.f32.mrb[0].mxu0
      %v2088 = vpop.f32.mrb[0].mxu0
      %v2089 = vadd.f32 %v1928, %v2088
      %v2090 = vpop.f32.mrb[0].mxu0
      %2091 = vmatprep.mubr.bf16.mxu0 0
      %2092 = vmatmul.mubr.bf16.gmra.mrb[0].mxu0 %v1635
      %v2093 = vpop.f32.mrb[0].mxu0
      %v2094 = vadd.f32 %v1933, %v2093
      %v2095 = vpop.f32.mrb[0].mxu0
      %v2096 = vpop.f32.mrb[0].mxu0
      %v2097 = vadd.f32 %v1936, %v2096
      %v2098 = vpop.f32.mrb[0].mxu0
      %2099 = vmatprep.mubr.bf16.mxu0 0
      %2100 = vmatmul.mubr.bf16.gmra.mrb[0].mxu0 %v1638
      %v2101 = vpop.f32.mrb[0].mxu0
      %v2102 = vadd.f32 %v1941, %v2101
      %v2103 = vpop.f32.mrb[0].mxu0
      %v2104 = vpop.f32.mrb[0].mxu0
      %v2105 = vadd.f32 %v1944, %v2104
      %v2106 = vpop.f32.mrb[0].mxu0
      %2107 = vmatprep.mubr.bf16.mxu0 0
      %2108 = vmatmul.mubr.bf16.gmra.mrb[0].mxu0 %v1641
      %v2109 = vpop.f32.mrb[0].mxu0
      %v2110 = vadd.f32 %v1949, %v2109
      %v2111 = vpop.f32.mrb[0].mxu0
      %v2112 = vpop.f32.mrb[0].mxu0
      %v2113 = vadd.f32 %v1952, %v2112
      %v2114 = vpop.f32.mrb[0].mxu0
      %2115 = vmatprep.mubr.bf16.mxu0 0
      %2116 = vmatmul.mubr.bf16.gmra.mrb[0].mxu0 %v1644
      %v2117 = vpop.f32.mrb[0].mxu0
      %v2118 = vadd.f32 %v1957, %v2117
      %v2119 = vpop.f32.mrb[0].mxu0
      %v2120 = vpop.f32.mrb[0].mxu0
      %v2121 = vadd.f32 %v1960, %v2120
      %v2122 = vpop.f32.mrb[0].mxu0
      %2123 = vmatprep.mubr.bf16.mxu0 0
      %2124 = vmatmul.mubr.bf16.gmra.mrb[0].mxu0 %v1647
      %v2125 = vpop.f32.mrb[0].mxu0
      %v2126 = vadd.f32 %v1965, %v2125
      %v2127 = vpop.f32.mrb[0].mxu0
      %v2128 = vpop.f32.mrb[0].mxu0
      %v2129 = vadd.f32 %v1968, %v2128
      %v2130 = vpop.f32.mrb[0].mxu0
      %2131 = vmatprep.mubr.bf16.mxu0 0
      %2132 = vmatmul.mubr.bf16.gmra.mrb[0].mxu0 %v1650
      %v2133 = vpop.f32.mrb[0].mxu0
      %v2134 = vadd.f32 %v1973, %v2133
      %v2135 = vpop.f32.mrb[0].mxu0
      %v2136 = vpop.f32.mrb[0].mxu0
      %v2137 = vadd.f32 %v1976, %v2136
      %v2138 = vpop.f32.mrb[0].mxu0
      %2139 = vmatprep.mubr.bf16.mxu0 0
      %2140 = vmatmul.mubr.bf16.gmra.mrb[0].mxu0 %v1653
      %v2141 = vpop.f32.mrb[0].mxu0
      %v2142 = vadd.f32 %v1981, %v2141
      %v2143 = vpop.f32.mrb[0].mxu0
      %v2144 = vpop.f32.mrb[0].mxu0
      %v2145 = vadd.f32 %v1984, %v2144
      %v2146 = vpop.f32.mrb[0].mxu0
      %2147 = vmatprep.mubr.bf16.mxu0 0
      %2148 = vmatmul.mubr.bf16.gmra.mrb[0].mxu0 %v1656
      %v2149 = vpop.f32.mrb[0].mxu0
      %v2150 = vadd.f32 %v1989, %v2149
      %v2151 = vpop.f32.mrb[0].mxu0
      %v2152 = vpop.f32.mrb[0].mxu0
      %v2153 = vadd.f32 %v1992, %v2152
      %v2154 = vpop.f32.mrb[0].mxu0
      %2155 = vmatprep.mubr.bf16.mxu0 0
      %2156 = vmatmul.mubr.bf16.gmra.mrb[0].mxu0 %v1659
      %v2157 = vpop.f32.mrb[0].mxu0
      %v2158 = vadd.f32 %v1997, %v2157
      %v2159 = vpop.f32.mrb[0].mxu0
      %v2160 = vpop.f32.mrb[0].mxu0
      %v2161 = vadd.f32 %v2000, %v2160
      %v2162 = vpop.f32.mrb[0].mxu0
      %2163 = vmatprep.mubr.bf16.mxu0 0
      %2164 = vmatmul.mubr.bf16.gmra.mrb[0].mxu0 %v1662
      %v2165 = vpop.f32.mrb[0].mxu0
      %v2166 = vadd.f32 %v2005, %v2165
      %v2167 = vpop.f32.mrb[0].mxu0
      %v2168 = vpop.f32.mrb[0].mxu0
      %v2169 = vadd.f32 %v2008, %v2168
      %v2170 = vpop.f32.mrb[0].mxu0
      %2171 = vmatprep.mubr.bf16.mxu0 0
      %2172 = vmatmul.mubr.bf16.gmra.mrb[0].mxu0 %v1665
      %v2173 = vpop.f32.mrb[0].mxu0
      %v2174 = vadd.f32 %v2013, %v2173
      %v2175 = vpop.f32.mrb[0].mxu0
      %v2176 = vpop.f32.mrb[0].mxu0
      %v2177 = vadd.f32 %v2016, %v2176
      %v2178 = vpop.f32.mrb[0].mxu0
      %2179 = vdwg.mxu0
      %2180 = vst [vmem:[#allocation3] sm:$0xff] %v2054
      %2181 = vst [vmem:[#allocation3 + $0x8] sm:$0xff] %v2057
      %2182 = vst [vmem:[#allocation3 + $0x10] sm:$0xff] %v2062
      %2183 = vst [vmem:[#allocation3 + $0x18] sm:$0xff] %v2065
      %2184 = vst [vmem:[#allocation3 + $0x20] sm:$0xff] %v2070
      %2185 = vst [vmem:[#allocation3 + $0x28] sm:$0xff] %v2073
      %2186 = vst [vmem:[#allocation3 + $0x30] sm:$0xff] %v2078
      %2187 = vst [vmem:[#allocation3 + $0x38] sm:$0xff] %v2081
      %2188 = vst [vmem:[#allocation3 + $0x40] sm:$0xff] %v2086
      %2189 = vst [vmem:[#allocation3 + $0x48] sm:$0xff] %v2089
      %2190 = vst [vmem:[#allocation3 + $0x50] sm:$0xff] %v2094
      %2191 = vst [vmem:[#allocation3 + $0x58] sm:$0xff] %v2097
      %2192 = vst [vmem:[#allocation3 + $0x60] sm:$0xff] %v2102
      %2193 = vst [vmem:[#allocation3 + $0x68] sm:$0xff] %v2105
      %2194 = vst [vmem:[#allocation3 + $0x70] sm:$0xff] %v2110
      %2195 = vst [vmem:[#allocation3 + $0x78] sm:$0xff] %v2113
      %2196 = vst [vmem:[#allocation3 + $0x80] sm:$0xff] %v2118
      %2197 = vst [vmem:[#allocation3 + $0x88] sm:$0xff] %v2121
      %2198 = vst [vmem:[#allocation3 + $0x90] sm:$0xff] %v2126
      %2199 = vst [vmem:[#allocation3 + $0x98] sm:$0xff] %v2129
      %2200 = vst [vmem:[#allocation3 + $0xa0] sm:$0xff] %v2134
      %2201 = vst [vmem:[#allocation3 + $0xa8] sm:$0xff] %v2137
      %2202 = vst [vmem:[#allocation3 + $0xb0] sm:$0xff] %v2142
      %2203 = vst [vmem:[#allocation3 + $0xb8] sm:$0xff] %v2145
      %2204 = vst [vmem:[#allocation3 + $0xc0] sm:$0xff] %v2150
      %2205 = vst [vmem:[#allocation3 + $0xc8] sm:$0xff] %v2153
      %2206 = vst [vmem:[#allocation3 + $0xd0] sm:$0xff] %v2158
      %2207 = vst [vmem:[#allocation3 + $0xd8] sm:$0xff] %v2161
      %2208 = vst [vmem:[#allocation3 + $0xe0] sm:$0xff] %v2166
      %2209 = vst [vmem:[#allocation3 + $0xe8] sm:$0xff] %v2169
      %2210 = vst [vmem:[#allocation3 + $0xf0] sm:$0xff] %v2174
      %2211 = vst [vmem:[#allocation3 + $0xf8] sm:$0xff] %v2177
      %v2212 = vld [vmem:[#allocation2 + $0x18] sm:$0xff]
      %v2213 = vld [vmem:[#allocation2 + $0x20] sm:$0xff]
      %v2214 = vld [vmem:[#allocation2 + $0x28] sm:$0xff]
      %v2215 = vld [vmem:[#allocation2 + $0x30] sm:$0xff]
      %v2216 = vld [vmem:[#allocation2 + $0x38] sm:$0xff]
      %v2217 = vld [vmem:[#allocation2 + $0x40] sm:$0xff]
      %v2218 = vld [vmem:[#allocation2 + $0x48] sm:$0xff]
      %v2219 = vld [vmem:[#allocation2 + $0x50] sm:$0xff]
      %v2220 = vld [vmem:[#allocation2 + $0x58] sm:$0xff]
      %v2221 = vld [vmem:[#allocation2 + $0x60] sm:$0xff]
      %v2222 = vld [vmem:[#allocation2 + $0x68] sm:$0xff]
      %v2223 = vld [vmem:[#allocation2 + $0x70] sm:$0xff]
      %v2224 = vld [vmem:[#allocation2 + $0x78] sm:$0xff]
      %v2225 = vld [vmem:[#allocation2 + $0x80] sm:$0xff]
      %v2226 = vld [vmem:[#allocation2 + $0x88] sm:$0xff]
      %v2227 = vld [vmem:[#allocation2 + $0x90] sm:$0xff]
      %v2228 = vld [vmem:[#allocation2 + $0x98] sm:$0xff]
      %v2229 = vld [vmem:[#allocation2 + $0xa0] sm:$0xff]
      %v2230 = vld [vmem:[#allocation2 + $0xa8] sm:$0xff]
      %v2231 = vld [vmem:[#allocation2 + $0xb0] sm:$0xff]
      %v2232 = vld [vmem:[#allocation2 + $0xb8] sm:$0xff]
      %v2233 = vld [vmem:[#allocation2 + $0xc0] sm:$0xff]
      %v2234 = vld [vmem:[#allocation2 + $0xc8] sm:$0xff]
      %v2235 = vld [vmem:[#allocation2 + $0xd0] sm:$0xff]
      %v2236 = vld [vmem:[#allocation2 + $0xd8] sm:$0xff]
      %v2237 = vld [vmem:[#allocation2 + $0xe0] sm:$0xff]
      %v2238 = vld [vmem:[#allocation2 + $0xe8] sm:$0xff]
      %v2239 = vld [vmem:[#allocation2 + $0xf0] sm:$0xff]
      %v2240 = vld [vmem:[#allocation2 + $0xf8] sm:$0xff]
      %v2241 = vld [vmem:[#allocation2 + $0x100] sm:$0xff]
      %v2242 = vld [vmem:[#allocation2 + $0x108] sm:$0xff]
      %v2243 = vld [vmem:[#allocation2 + $0x110] sm:$0xff]
      %v2244 = vld [vmem:[#allocation2 + $0x118] sm:$0xff]
      %v2245 = vld [vmem:[#allocation2 + $0x120] sm:$0xff]
      %v2246 = vld [vmem:[#allocation2 + $0x128] sm:$0xff]
      %v2247 = vld [vmem:[#allocation2 + $0x130] sm:$0xff]
      %v2248 = vld [vmem:[#allocation2 + $0x138] sm:$0xff]
      %v2249 = vld [vmem:[#allocation2 + $0x140] sm:$0xff]
      %v2250 = vld [vmem:[#allocation2 + $0x148] sm:$0xff]
      %v2251 = vld [vmem:[#allocation2 + $0x150] sm:$0xff]
      %v2252 = vld [vmem:[#allocation2 + $0x158] sm:$0xff]
      %v2253 = vld [vmem:[#allocation2 + $0x160] sm:$0xff]
      %v2254 = vld [vmem:[#allocation2 + $0x168] sm:$0xff]
      %v2255 = vld [vmem:[#allocation2 + $0x170] sm:$0xff]
      %v2256 = vld [vmem:[#allocation2 + $0x178] sm:$0xff]
      %v2257 = vld [vmem:[#allocation2 + $0x180] sm:$0xff]
      %v2258 = vld [vmem:[#allocation2 + $0x188] sm:$0xff]
      %v2259 = vld [vmem:[#allocation2 + $0x190] sm:$0xff]
      %s2260 = scalar_lea.vmem %s5, 192
      %v2261 = vld [vmem:[%s2260] sm:$0xf]
      %v2262 = vld [vmem:[%s2260 + $0x4] sm:$0xf]
      %v2263 = vld [vmem:[%s2260 + $0x8] sm:$0xf]
      %v2264 = vld [vmem:[%s2260 + $0xc] sm:$0xf]
      %v2265 = vld [vmem:[%s2260 + $0x10] sm:$0xf]
      %v2266 = vld [vmem:[%s2260 + $0x14] sm:$0xf]
      %v2267 = vld [vmem:[%s2260 + $0x18] sm:$0xf]
      %v2268 = vld [vmem:[%s2260 + $0x1c] sm:$0xf]
      %v2269 = vld [vmem:[%s2260 + $0x20] sm:$0xf]
      %v2270 = vld [vmem:[%s2260 + $0x24] sm:$0xf]
      %v2271 = vld [vmem:[%s2260 + $0x28] sm:$0xf]
      %v2272 = vld [vmem:[%s2260 + $0x2c] sm:$0xf]
      %v2273 = vld [vmem:[%s2260 + $0x30] sm:$0xf]
      %v2274 = vld [vmem:[%s2260 + $0x34] sm:$0xf]
      %v2275 = vld [vmem:[%s2260 + $0x38] sm:$0xf]
      %v2276 = vld [vmem:[%s2260 + $0x3c] sm:$0xf]
      %v2277 = vld [vmem:[%s2260 + $0x40] sm:$0xf]
      %v2278 = vld [vmem:[%s2260 + $0x44] sm:$0xf]
      %v2279 = vld [vmem:[%s2260 + $0x48] sm:$0xf]
      %v2280 = vld [vmem:[%s2260 + $0x4c] sm:$0xf]
      %v2281 = vld [vmem:[%s2260 + $0x50] sm:$0xf]
      %v2282 = vld [vmem:[%s2260 + $0x54] sm:$0xf]
      %v2283 = vld [vmem:[%s2260 + $0x58] sm:$0xf]
      %v2284 = vld [vmem:[%s2260 + $0x5c] sm:$0xf]
      %v2285 = vld [vmem:[%s2260 + $0x60] sm:$0xf]
      %v2286 = vld [vmem:[%s2260 + $0x64] sm:$0xf]
      %v2287 = vld [vmem:[%s2260 + $0x68] sm:$0xf]
      %v2288 = vld [vmem:[%s2260 + $0x6c] sm:$0xf]
      %v2289 = vld [vmem:[%s2260 + $0x70] sm:$0xf]
      %v2290 = vld [vmem:[%s2260 + $0x74] sm:$0xf]
      %v2291 = vld [vmem:[%s2260 + $0x78] sm:$0xf]
      %v2292 = vld [vmem:[%s2260 + $0x7c] sm:$0xf]
      %v2293 = vld [vmem:[%s2260 + $0x80] sm:$0xf]
      %v2294 = vld [vmem:[%s2260 + $0x84] sm:$0xf]
      %v2295 = vld [vmem:[%s2260 + $0x88] sm:$0xf]
      %v2296 = vld [vmem:[%s2260 + $0x8c] sm:$0xf]
      %v2297 = vld [vmem:[%s2260 + $0x90] sm:$0xf]
      %v2298 = vld [vmem:[%s2260 + $0x94] sm:$0xf]
      %v2299 = vld [vmem:[%s2260 + $0x98] sm:$0xf]
      %v2300 = vld [vmem:[%s2260 + $0x9c] sm:$0xf]
      %v2301 = vld [vmem:[%s2260 + $0xa0] sm:$0xf]
      %v2302 = vld [vmem:[%s2260 + $0xa4] sm:$0xf]
      %v2303 = vld [vmem:[%s2260 + $0xa8] sm:$0xf]
      %v2304 = vld [vmem:[%s2260 + $0xac] sm:$0xf]
      %v2305 = vld [vmem:[%s2260 + $0xb0] sm:$0xf]
      %v2306 = vld [vmem:[%s2260 + $0xb4] sm:$0xf]
      %v2307 = vld [vmem:[%s2260 + $0xb8] sm:$0xf]
      %v2308 = vld [vmem:[%s2260 + $0xbc] sm:$0xf]
      %v2357 = vunpack.c.l.b16 %v2261
      %v2358 = vunpack.c.l.b16 %v2262
      %v2359 = vunpack.c.l.b16 %v2263
      %v2360 = vunpack.c.l.b16 %v2264
      %v2361 = vunpack.c.l.b16 %v2265
      %v2362 = vunpack.c.l.b16 %v2266
      %v2363 = vunpack.c.l.b16 %v2267
      %v2364 = vunpack.c.l.b16 %v2268
      %v2365 = vunpack.c.l.b16 %v2269
      %v2366 = vunpack.c.l.b16 %v2270
      %v2367 = vunpack.c.l.b16 %v2271
      %v2368 = vunpack.c.l.b16 %v2272
      %v2369 = vunpack.c.l.b16 %v2273
      %v2370 = vunpack.c.l.b16 %v2274
      %v2371 = vunpack.c.l.b16 %v2275
      %v2372 = vunpack.c.l.b16 %v2276
      %v2373 = vunpack.c.l.b16 %v2277
      %v2374 = vunpack.c.l.b16 %v2278
      %v2375 = vunpack.c.l.b16 %v2279
      %v2376 = vunpack.c.l.b16 %v2280
      %v2377 = vunpack.c.l.b16 %v2281
      %v2378 = vunpack.c.l.b16 %v2282
      %v2379 = vunpack.c.l.b16 %v2283
      %v2380 = vunpack.c.l.b16 %v2284
      %v2381 = vunpack.c.l.b16 %v2285
      %v2382 = vunpack.c.l.b16 %v2286
      %v2383 = vunpack.c.l.b16 %v2287
      %v2384 = vunpack.c.l.b16 %v2288
      %v2385 = vunpack.c.l.b16 %v2289
      %v2386 = vunpack.c.l.b16 %v2290
      %v2387 = vunpack.c.l.b16 %v2291
      %v2388 = vunpack.c.l.b16 %v2292
      %v2389 = vunpack.c.l.b16 %v2293
      %v2390 = vunpack.c.l.b16 %v2294
      %v2391 = vunpack.c.l.b16 %v2295
      %v2392 = vunpack.c.l.b16 %v2296
      %v2393 = vunpack.c.l.b16 %v2297
      %v2394 = vunpack.c.l.b16 %v2298
      %v2395 = vunpack.c.l.b16 %v2299
      %v2396 = vunpack.c.l.b16 %v2300
      %v2397 = vunpack.c.l.b16 %v2301
      %v2398 = vunpack.c.l.b16 %v2302
      %v2399 = vunpack.c.l.b16 %v2303
      %v2400 = vunpack.c.l.b16 %v2304
      %v2401 = vunpack.c.l.b16 %v2305
      %v2402 = vunpack.c.l.b16 %v2306
      %v2403 = vunpack.c.l.b16 %v2307
      %v2404 = vunpack.c.l.b16 %v2308
      %v2405 = vpack.c.b16 %v2358, %v2357
      %v2406 = vpack.c.b16 %v2360, %v2359
      %v2407 = vpack.c.b16 %v2362, %v2361
      %v2408 = vpack.c.b16 %v2364, %v2363
      %v2409 = vpack.c.b16 %v2366, %v2365
      %v2410 = vpack.c.b16 %v2368, %v2367
      %v2411 = vpack.c.b16 %v2370, %v2369
      %v2412 = vpack.c.b16 %v2372, %v2371
      %v2413 = vpack.c.b16 %v2374, %v2373
      %v2414 = vpack.c.b16 %v2376, %v2375
      %v2415 = vpack.c.b16 %v2378, %v2377
      %v2416 = vpack.c.b16 %v2380, %v2379
      %v2417 = vpack.c.b16 %v2382, %v2381
      %v2418 = vpack.c.b16 %v2384, %v2383
      %v2419 = vpack.c.b16 %v2386, %v2385
      %v2420 = vpack.c.b16 %v2388, %v2387
      %v2421 = vpack.c.b16 %v2390, %v2389
      %v2422 = vpack.c.b16 %v2392, %v2391
      %v2423 = vpack.c.b16 %v2394, %v2393
      %v2424 = vpack.c.b16 %v2396, %v2395
      %v2425 = vpack.c.b16 %v2398, %v2397
      %v2426 = vpack.c.b16 %v2400, %v2399
      %v2427 = vpack.c.b16 %v2402, %v2401
      %v2428 = vpack.c.b16 %v2404, %v2403
      %2453 = vmatprep.subr.bf16.mxu0 0
      %2454 = vmatpush1.bf16.msra.mxu0 %v2405
      %2455 = vmatprep.subr.bf16.mxu0 0
      %2456 = vmatpush1.bf16.msra.mxu0 %v2406
      %2457 = vmatprep.subr.bf16.mxu0 0
      %2458 = vmatpush1.bf16.msra.mxu0 %v2407
      %2459 = vmatprep.subr.bf16.mxu0 0
      %2460 = vmatpush1.bf16.msra.mxu0 %v2408
      %2461 = vmatprep.subr.bf16.mxu0 0
      %2462 = vmatpush1.bf16.msra.mxu0 %v2409
      %2463 = vmatprep.subr.bf16.mxu0 0
      %2464 = vmatpush1.bf16.msra.mxu0 %v2410
      %2465 = vmatprep.subr.bf16.mxu0 0
      %2466 = vmatpush1.bf16.msra.mxu0 %v2411
      %2467 = vmatprep.subr.bf16.mxu0 0
      %2468 = vmatpush1.bf16.msra.mxu0 %v2412
      %2469 = vmatprep.subr.bf16.mxu0 0
      %2470 = vmatpush1.bf16.msra.mxu0 %v2413
      %2471 = vmatprep.subr.bf16.mxu0 0
      %2472 = vmatpush1.bf16.msra.mxu0 %v2414
      %2473 = vmatprep.subr.bf16.mxu0 0
      %2474 = vmatpush1.bf16.msra.mxu0 %v2415
      %2475 = vmatprep.subr.bf16.mxu0 0
      %2476 = vmatpush1.bf16.msra.mxu0 %v2416
      %2477 = vmatprep.subr.bf16.mxu0 0
      %2478 = vmatpush1.bf16.msra.mxu0 %v2417
      %2479 = vmatprep.subr.bf16.mxu0 0
      %2480 = vmatpush1.bf16.msra.mxu0 %v2418
      %2481 = vmatprep.subr.bf16.mxu0 0
      %2482 = vmatpush1.bf16.msra.mxu0 %v2419
      %2483 = vmatprep.subr.bf16.mxu0 0
      %2484 = vmatpush1.bf16.msra.mxu0 %v2420
      %2485 = vmatprep.mubr.bf16.mxu0 %v2213
      %2486 = vmatmul.mubr.bf16.gmra.mrb[0].mxu0 %v2212
      %v2487 = vpop.f32.mrb[0].mxu0
      %v2488 = vadd.f32 0.0, %v2487
      %v2489 = vpop.f32.mrb[0].mxu0
      %v2490 = vpop.f32.mrb[0].mxu0
      %v2491 = vadd.f32 0.0, %v2490
      %v2492 = vpop.f32.mrb[0].mxu0
      %2493 = vmatprep.mubr.bf16.mxu0 %v2216
      %2494 = vmatmul.mubr.bf16.gmra.mrb[0].mxu0 %v2215
      %v2495 = vpop.f32.mrb[0].mxu0
      %v2496 = vadd.f32 0.0, %v2495
      %v2497 = vpop.f32.mrb[0].mxu0
      %v2498 = vpop.f32.mrb[0].mxu0
      %v2499 = vadd.f32 0.0, %v2498
      %v2500 = vpop.f32.mrb[0].mxu0
      %2501 = vmatprep.mubr.bf16.mxu0 %v2219
      %2502 = vmatmul.mubr.bf16.gmra.mrb[0].mxu0 %v2218
      %v2503 = vpop.f32.mrb[0].mxu0
      %v2504 = vadd.f32 0.0, %v2503
      %v2505 = vpop.f32.mrb[0].mxu0
      %v2506 = vpop.f32.mrb[0].mxu0
      %v2507 = vadd.f32 0.0, %v2506
      %v2508 = vpop.f32.mrb[0].mxu0
      %2509 = vmatprep.mubr.bf16.mxu0 %v2222
      %2510 = vmatmul.mubr.bf16.gmra.mrb[0].mxu0 %v2221
      %v2511 = vpop.f32.mrb[0].mxu0
      %v2512 = vadd.f32 0.0, %v2511
      %v2513 = vpop.f32.mrb[0].mxu0
      %v2514 = vpop.f32.mrb[0].mxu0
      %v2515 = vadd.f32 0.0, %v2514
      %v2516 = vpop.f32.mrb[0].mxu0
      %2517 = vmatprep.mubr.bf16.mxu0 %v2225
      %2518 = vmatmul.mubr.bf16.gmra.mrb[0].mxu0 %v2224
      %v2519 = vpop.f32.mrb[0].mxu0
      %v2520 = vadd.f32 0.0, %v2519
      %v2521 = vpop.f32.mrb[0].mxu0
      %v2522 = vpop.f32.mrb[0].mxu0
      %v2523 = vadd.f32 0.0, %v2522
      %v2524 = vpop.f32.mrb[0].mxu0
      %2525 = vmatprep.mubr.bf16.mxu0 %v2228
      %2526 = vmatmul.mubr.bf16.gmra.mrb[0].mxu0 %v2227
      %v2527 = vpop.f32.mrb[0].mxu0
      %v2528 = vadd.f32 0.0, %v2527
      %v2529 = vpop.f32.mrb[0].mxu0
      %v2530 = vpop.f32.mrb[0].mxu0
      %v2531 = vadd.f32 0.0, %v2530
      %v2532 = vpop.f32.mrb[0].mxu0
      %2533 = vmatprep.mubr.bf16.mxu0 %v2231
      %2534 = vmatmul.mubr.bf16.gmra.mrb[0].mxu0 %v2230
      %v2535 = vpop.f32.mrb[0].mxu0
      %v2536 = vadd.f32 0.0, %v2535
      %v2537 = vpop.f32.mrb[0].mxu0
      %v2538 = vpop.f32.mrb[0].mxu0
      %v2539 = vadd.f32 0.0, %v2538
      %v2540 = vpop.f32.mrb[0].mxu0
      %2541 = vmatprep.mubr.bf16.mxu0 %v2234
      %2542 = vmatmul.mubr.bf16.gmra.mrb[0].mxu0 %v2233
      %v2543 = vpop.f32.mrb[0].mxu0
      %v2544 = vadd.f32 0.0, %v2543
      %v2545 = vpop.f32.mrb[0].mxu0
      %v2546 = vpop.f32.mrb[0].mxu0
      %v2547 = vadd.f32 0.0, %v2546
      %v2548 = vpop.f32.mrb[0].mxu0
      %2549 = vmatprep.mubr.bf16.mxu0 %v2237
      %2550 = vmatmul.mubr.bf16.gmra.mrb[0].mxu0 %v2236
      %v2551 = vpop.f32.mrb[0].mxu0
      %v2552 = vadd.f32 0.0, %v2551
      %v2553 = vpop.f32.mrb[0].mxu0
      %v2554 = vpop.f32.mrb[0].mxu0
      %v2555 = vadd.f32 0.0, %v2554
      %v2556 = vpop.f32.mrb[0].mxu0
      %2557 = vmatprep.mubr.bf16.mxu0 %v2240
      %2558 = vmatmul.mubr.bf16.gmra.mrb[0].mxu0 %v2239
      %v2559 = vpop.f32.mrb[0].mxu0
      %v2560 = vadd.f32 0.0, %v2559
      %v2561 = vpop.f32.mrb[0].mxu0
      %v2562 = vpop.f32.mrb[0].mxu0
      %v2563 = vadd.f32 0.0, %v2562
      %v2564 = vpop.f32.mrb[0].mxu0
      %2565 = vmatprep.mubr.bf16.mxu0 %v2243
      %2566 = vmatmul.mubr.bf16.gmra.mrb[0].mxu0 %v2242
      %v2567 = vpop.f32.mrb[0].mxu0
      %v2568 = vadd.f32 0.0, %v2567
      %v2569 = vpop.f32.mrb[0].mxu0
      %v2570 = vpop.f32.mrb[0].mxu0
      %v2571 = vadd.f32 0.0, %v2570
      %v2572 = vpop.f32.mrb[0].mxu0
      %2573 = vmatprep.mubr.bf16.mxu0 %v2246
      %2574 = vmatmul.mubr.bf16.gmra.mrb[0].mxu0 %v2245
      %v2575 = vpop.f32.mrb[0].mxu0
      %v2576 = vadd.f32 0.0, %v2575
      %v2577 = vpop.f32.mrb[0].mxu0
      %v2578 = vpop.f32.mrb[0].mxu0
      %v2579 = vadd.f32 0.0, %v2578
      %v2580 = vpop.f32.mrb[0].mxu0
      %2581 = vmatprep.mubr.bf16.mxu0 %v2249
      %2582 = vmatmul.mubr.bf16.gmra.mrb[0].mxu0 %v2248
      %v2583 = vpop.f32.mrb[0].mxu0
      %v2584 = vadd.f32 0.0, %v2583
      %v2585 = vpop.f32.mrb[0].mxu0
      %v2586 = vpop.f32.mrb[0].mxu0
      %v2587 = vadd.f32 0.0, %v2586
      %v2588 = vpop.f32.mrb[0].mxu0
      %2589 = vmatprep.mubr.bf16.mxu0 %v2252
      %2590 = vmatmul.mubr.bf16.gmra.mrb[0].mxu0 %v2251
      %v2591 = vpop.f32.mrb[0].mxu0
      %v2592 = vadd.f32 0.0, %v2591
      %v2593 = vpop.f32.mrb[0].mxu0
      %v2594 = vpop.f32.mrb[0].mxu0
      %v2595 = vadd.f32 0.0, %v2594
      %v2596 = vpop.f32.mrb[0].mxu0
      %2597 = vmatprep.mubr.bf16.mxu0 %v2255
      %2598 = vmatmul.mubr.bf16.gmra.mrb[0].mxu0 %v2254
      %v2599 = vpop.f32.mrb[0].mxu0
      %v2600 = vadd.f32 0.0, %v2599
      %v2601 = vpop.f32.mrb[0].mxu0
      %v2602 = vpop.f32.mrb[0].mxu0
      %v2603 = vadd.f32 0.0, %v2602
      %v2604 = vpop.f32.mrb[0].mxu0
      %2605 = vmatprep.mubr.bf16.mxu0 %v2258
      %2606 = vmatmul.mubr.bf16.gmra.mrb[0].mxu0 %v2257
      %v2607 = vpop.f32.mrb[0].mxu0
      %v2608 = vadd.f32 0.0, %v2607
      %v2609 = vpop.f32.mrb[0].mxu0
      %v2610 = vpop.f32.mrb[0].mxu0
      %v2611 = vadd.f32 0.0, %v2610
      %v2612 = vpop.f32.mrb[0].mxu0
      %2613 = vdwg.mxu0
      %2614 = vmatprep.subr.bf16.mxu0 0
      %2615 = vmatpush1.bf16.msra.mxu0 %v2421
      %2616 = vmatprep.subr.bf16.mxu0 0
      %2617 = vmatpush1.bf16.msra.mxu0 %v2422
      %2618 = vmatprep.subr.bf16.mxu0 0
      %2619 = vmatpush1.bf16.msra.mxu0 %v2423
      %2620 = vmatprep.subr.bf16.mxu0 0
      %2621 = vmatpush1.bf16.msra.mxu0 %v2424
      %2622 = vmatprep.subr.bf16.mxu0 0
      %2623 = vmatpush1.bf16.msra.mxu0 %v2425
      %2624 = vmatprep.subr.bf16.mxu0 0
      %2625 = vmatpush1.bf16.msra.mxu0 %v2426
      %2626 = vmatprep.subr.bf16.mxu0 0
      %2627 = vmatpush1.bf16.msra.mxu0 %v2427
      %2628 = vmatprep.subr.bf16.mxu0 0
      %2629 = vmatpush1.bf16.msra.mxu0 %v2428
      %2630 = vmatprep.subr.bf16.mxu0 0
      %2631 = vmatpush1.bf16.msra.mxu0 0
      %2632 = vmatprep.subr.bf16.mxu0 0
      %2633 = vmatpush1.bf16.msra.mxu0 0
      %2634 = vmatprep.subr.bf16.mxu0 0
      %2635 = vmatpush1.bf16.msra.mxu0 0
      %2636 = vmatprep.subr.bf16.mxu0 0
      %2637 = vmatpush1.bf16.msra.mxu0 0
      %2638 = vmatprep.subr.bf16.mxu0 0
      %2639 = vmatpush1.bf16.msra.mxu0 0
      %2640 = vmatprep.subr.bf16.mxu0 0
      %2641 = vmatpush1.bf16.msra.mxu0 0
      %2642 = vmatprep.subr.bf16.mxu0 0
      %2643 = vmatpush1.bf16.msra.mxu0 0
      %2644 = vmatprep.subr.bf16.mxu0 0
      %2645 = vmatpush1.bf16.msra.mxu0 0
      %2646 = vmatprep.mubr.bf16.mxu0 0
      %2647 = vmatmul.mubr.bf16.gmra.mrb[0].mxu0 %v2214
      %v2648 = vpop.f32.mrb[0].mxu0
      %v2649 = vadd.f32 %v2488, %v2648
      %v2650 = vpop.f32.mrb[0].mxu0
      %v2651 = vpop.f32.mrb[0].mxu0
      %v2652 = vadd.f32 %v2491, %v2651
      %v2653 = vpop.f32.mrb[0].mxu0
      %2654 = vmatprep.mubr.bf16.mxu0 0
      %2655 = vmatmul.mubr.bf16.gmra.mrb[0].mxu0 %v2217
      %v2656 = vpop.f32.mrb[0].mxu0
      %v2657 = vadd.f32 %v2496, %v2656
      %v2658 = vpop.f32.mrb[0].mxu0
      %v2659 = vpop.f32.mrb[0].mxu0
      %v2660 = vadd.f32 %v2499, %v2659
      %v2661 = vpop.f32.mrb[0].mxu0
      %2662 = vmatprep.mubr.bf16.mxu0 0
      %2663 = vmatmul.mubr.bf16.gmra.mrb[0].mxu0 %v2220
      %v2664 = vpop.f32.mrb[0].mxu0
      %v2665 = vadd.f32 %v2504, %v2664
      %v2666 = vpop.f32.mrb[0].mxu0
      %v2667 = vpop.f32.mrb[0].mxu0
      %v2668 = vadd.f32 %v2507, %v2667
      %v2669 = vpop.f32.mrb[0].mxu0
      %2670 = vmatprep.mubr.bf16.mxu0 0
      %2671 = vmatmul.mubr.bf16.gmra.mrb[0].mxu0 %v2223
      %v2672 = vpop.f32.mrb[0].mxu0
      %v2673 = vadd.f32 %v2512, %v2672
      %v2674 = vpop.f32.mrb[0].mxu0
      %v2675 = vpop.f32.mrb[0].mxu0
      %v2676 = vadd.f32 %v2515, %v2675
      %v2677 = vpop.f32.mrb[0].mxu0
      %2678 = vmatprep.mubr.bf16.mxu0 0
      %2679 = vmatmul.mubr.bf16.gmra.mrb[0].mxu0 %v2226
      %v2680 = vpop.f32.mrb[0].mxu0
      %v2681 = vadd.f32 %v2520, %v2680
      %v2682 = vpop.f32.mrb[0].mxu0
      %v2683 = vpop.f32.mrb[0].mxu0
      %v2684 = vadd.f32 %v2523, %v2683
      %v2685 = vpop.f32.mrb[0].mxu0
      %2686 = vmatprep.mubr.bf16.mxu0 0
      %2687 = vmatmul.mubr.bf16.gmra.mrb[0].mxu0 %v2229
      %v2688 = vpop.f32.mrb[0].mxu0
      %v2689 = vadd.f32 %v2528, %v2688
      %v2690 = vpop.f32.mrb[0].mxu0
      %v2691 = vpop.f32.mrb[0].mxu0
      %v2692 = vadd.f32 %v2531, %v2691
      %v2693 = vpop.f32.mrb[0].mxu0
      %2694 = vmatprep.mubr.bf16.mxu0 0
      %2695 = vmatmul.mubr.bf16.gmra.mrb[0].mxu0 %v2232
      %v2696 = vpop.f32.mrb[0].mxu0
      %v2697 = vadd.f32 %v2536, %v2696
      %v2698 = vpop.f32.mrb[0].mxu0
      %v2699 = vpop.f32.mrb[0].mxu0
      %v2700 = vadd.f32 %v2539, %v2699
      %v2701 = vpop.f32.mrb[0].mxu0
      %2702 = vmatprep.mubr.bf16.mxu0 0
      %2703 = vmatmul.mubr.bf16.gmra.mrb[0].mxu0 %v2235
      %v2704 = vpop.f32.mrb[0].mxu0
      %v2705 = vadd.f32 %v2544, %v2704
      %v2706 = vpop.f32.mrb[0].mxu0
      %v2707 = vpop.f32.mrb[0].mxu0
      %v2708 = vadd.f32 %v2547, %v2707
      %v2709 = vpop.f32.mrb[0].mxu0
      %2710 = vmatprep.mubr.bf16.mxu0 0
      %2711 = vmatmul.mubr.bf16.gmra.mrb[0].mxu0 %v2238
      %v2712 = vpop.f32.mrb[0].mxu0
      %v2713 = vadd.f32 %v2552, %v2712
      %v2714 = vpop.f32.mrb[0].mxu0
      %v2715 = vpop.f32.mrb[0].mxu0
      %v2716 = vadd.f32 %v2555, %v2715
      %v2717 = vpop.f32.mrb[0].mxu0
      %2718 = vmatprep.mubr.bf16.mxu0 0
      %2719 = vmatmul.mubr.bf16.gmra.mrb[0].mxu0 %v2241
      %v2720 = vpop.f32.mrb[0].mxu0
      %v2721 = vadd.f32 %v2560, %v2720
      %v2722 = vpop.f32.mrb[0].mxu0
      %v2723 = vpop.f32.mrb[0].mxu0
      %v2724 = vadd.f32 %v2563, %v2723
      %v2725 = vpop.f32.mrb[0].mxu0
      %2726 = vmatprep.mubr.bf16.mxu0 0
      %2727 = vmatmul.mubr.bf16.gmra.mrb[0].mxu0 %v2244
      %v2728 = vpop.f32.mrb[0].mxu0
      %v2729 = vadd.f32 %v2568, %v2728
      %v2730 = vpop.f32.mrb[0].mxu0
      %v2731 = vpop.f32.mrb[0].mxu0
      %v2732 = vadd.f32 %v2571, %v2731
      %v2733 = vpop.f32.mrb[0].mxu0
      %2734 = vmatprep.mubr.bf16.mxu0 0
      %2735 = vmatmul.mubr.bf16.gmra.mrb[0].mxu0 %v2247
      %v2736 = vpop.f32.mrb[0].mxu0
      %v2737 = vadd.f32 %v2576, %v2736
      %v2738 = vpop.f32.mrb[0].mxu0
      %v2739 = vpop.f32.mrb[0].mxu0
      %v2740 = vadd.f32 %v2579, %v2739
      %v2741 = vpop.f32.mrb[0].mxu0
      %2742 = vmatprep.mubr.bf16.mxu0 0
      %2743 = vmatmul.mubr.bf16.gmra.mrb[0].mxu0 %v2250
      %v2744 = vpop.f32.mrb[0].mxu0
      %v2745 = vadd.f32 %v2584, %v2744
      %v2746 = vpop.f32.mrb[0].mxu0
      %v2747 = vpop.f32.mrb[0].mxu0
      %v2748 = vadd.f32 %v2587, %v2747
      %v2749 = vpop.f32.mrb[0].mxu0
      %2750 = vmatprep.mubr.bf16.mxu0 0
      %2751 = vmatmul.mubr.bf16.gmra.mrb[0].mxu0 %v2253
      %v2752 = vpop.f32.mrb[0].mxu0
      %v2753 = vadd.f32 %v2592, %v2752
      %v2754 = vpop.f32.mrb[0].mxu0
      %v2755 = vpop.f32.mrb[0].mxu0
      %v2756 = vadd.f32 %v2595, %v2755
      %v2757 = vpop.f32.mrb[0].mxu0
      %2758 = vmatprep.mubr.bf16.mxu0 0
      %2759 = vmatmul.mubr.bf16.gmra.mrb[0].mxu0 %v2256
      %v2760 = vpop.f32.mrb[0].mxu0
      %v2761 = vadd.f32 %v2600, %v2760
      %v2762 = vpop.f32.mrb[0].mxu0
      %v2763 = vpop.f32.mrb[0].mxu0
      %v2764 = vadd.f32 %v2603, %v2763
      %v2765 = vpop.f32.mrb[0].mxu0
      %2766 = vmatprep.mubr.bf16.mxu0 0
      %2767 = vmatmul.mubr.bf16.gmra.mrb[0].mxu0 %v2259
      %v2768 = vpop.f32.mrb[0].mxu0
      %v2769 = vadd.f32 %v2608, %v2768
      %v2770 = vpop.f32.mrb[0].mxu0
      %v2771 = vpop.f32.mrb[0].mxu0
      %v2772 = vadd.f32 %v2611, %v2771
      %v2773 = vpop.f32.mrb[0].mxu0
      %2774 = vdwg.mxu0
      %v2775 = vld [vmem:[#allocation3] sm:$0xff]
      %v2776 = vld [vmem:[#allocation3 + $0x8] sm:$0xff]
      %v2777 = vld [vmem:[#allocation3 + $0x10] sm:$0xff]
      %v2778 = vld [vmem:[#allocation3 + $0x18] sm:$0xff]
      %v2779 = vld [vmem:[#allocation3 + $0x20] sm:$0xff]
      %v2780 = vld [vmem:[#allocation3 + $0x28] sm:$0xff]
      %v2781 = vld [vmem:[#allocation3 + $0x30] sm:$0xff]
      %v2782 = vld [vmem:[#allocation3 + $0x38] sm:$0xff]
      %v2783 = vld [vmem:[#allocation3 + $0x40] sm:$0xff]
      %v2784 = vld [vmem:[#allocation3 + $0x48] sm:$0xff]
      %v2785 = vld [vmem:[#allocation3 + $0x50] sm:$0xff]
      %v2786 = vld [vmem:[#allocation3 + $0x58] sm:$0xff]
      %v2787 = vld [vmem:[#allocation3 + $0x60] sm:$0xff]
      %v2788 = vld [vmem:[#allocation3 + $0x68] sm:$0xff]
      %v2789 = vld [vmem:[#allocation3 + $0x70] sm:$0xff]
      %v2790 = vld [vmem:[#allocation3 + $0x78] sm:$0xff]
      %v2791 = vld [vmem:[#allocation3 + $0x80] sm:$0xff]
      %v2792 = vld [vmem:[#allocation3 + $0x88] sm:$0xff]
      %v2793 = vld [vmem:[#allocation3 + $0x90] sm:$0xff]
      %v2794 = vld [vmem:[#allocation3 + $0x98] sm:$0xff]
      %v2795 = vld [vmem:[#allocation3 + $0xa0] sm:$0xff]
      %v2796 = vld [vmem:[#allocation3 + $0xa8] sm:$0xff]
      %v2797 = vld [vmem:[#allocation3 + $0xb0] sm:$0xff]
      %v2798 = vld [vmem:[#allocation3 + $0xb8] sm:$0xff]
      %v2799 = vld [vmem:[#allocation3 + $0xc0] sm:$0xff]
      %v2800 = vld [vmem:[#allocation3 + $0xc8] sm:$0xff]
      %v2801 = vld [vmem:[#allocation3 + $0xd0] sm:$0xff]
      %v2802 = vld [vmem:[#allocation3 + $0xd8] sm:$0xff]
      %v2803 = vld [vmem:[#allocation3 + $0xe0] sm:$0xff]
      %v2804 = vld [vmem:[#allocation3 + $0xe8] sm:$0xff]
      %v2805 = vld [vmem:[#allocation3 + $0xf0] sm:$0xff]
      %v2806 = vld [vmem:[#allocation3 + $0xf8] sm:$0xff]
      %v2807 = vadd.f32 %v2775, %v2649
      %v2808 = vadd.f32 %v2776, %v2652
      %v2809 = vadd.f32 %v2777, %v2657
      %v2810 = vadd.f32 %v2778, %v2660
      %v2811 = vadd.f32 %v2779, %v2665
      %v2812 = vadd.f32 %v2780, %v2668
      %v2813 = vadd.f32 %v2781, %v2673
      %v2814 = vadd.f32 %v2782, %v2676
      %v2815 = vadd.f32 %v2783, %v2681
      %v2816 = vadd.f32 %v2784, %v2684
      %v2817 = vadd.f32 %v2785, %v2689
      %v2818 = vadd.f32 %v2786, %v2692
      %v2819 = vadd.f32 %v2787, %v2697
      %v2820 = vadd.f32 %v2788, %v2700
      %v2821 = vadd.f32 %v2789, %v2705
      %v2822 = vadd.f32 %v2790, %v2708
      %v2823 = vadd.f32 %v2791, %v2713
      %v2824 = vadd.f32 %v2792, %v2716
      %v2825 = vadd.f32 %v2793, %v2721
      %v2826 = vadd.f32 %v2794, %v2724
      %v2827 = vadd.f32 %v2795, %v2729
      %v2828 = vadd.f32 %v2796, %v2732
      %v2829 = vadd.f32 %v2797, %v2737
      %v2830 = vadd.f32 %v2798, %v2740
      %v2831 = vadd.f32 %v2799, %v2745
      %v2832 = vadd.f32 %v2800, %v2748
      %v2833 = vadd.f32 %v2801, %v2753
      %v2834 = vadd.f32 %v2802, %v2756
      %v2835 = vadd.f32 %v2803, %v2761
      %v2836 = vadd.f32 %v2804, %v2764
      %v2837 = vadd.f32 %v2805, %v2769
      %v2838 = vadd.f32 %v2806, %v2772
      %2839 = vst [vmem:[#allocation3] sm:$0xff] %v2807
      %2840 = vst [vmem:[#allocation3 + $0x8] sm:$0xff] %v2808
      %2841 = vst [vmem:[#allocation3 + $0x10] sm:$0xff] %v2809
      %2842 = vst [vmem:[#allocation3 + $0x18] sm:$0xff] %v2810
      %2843 = vst [vmem:[#allocation3 + $0x20] sm:$0xff] %v2811
      %2844 = vst [vmem:[#allocation3 + $0x28] sm:$0xff] %v2812
      %2845 = vst [vmem:[#allocation3 + $0x30] sm:$0xff] %v2813
      %2846 = vst [vmem:[#allocation3 + $0x38] sm:$0xff] %v2814
      %2847 = vst [vmem:[#allocation3 + $0x40] sm:$0xff] %v2815
      %2848 = vst [vmem:[#allocation3 + $0x48] sm:$0xff] %v2816
      %2849 = vst [vmem:[#allocation3 + $0x50] sm:$0xff] %v2817
      %2850 = vst [vmem:[#allocation3 + $0x58] sm:$0xff] %v2818
      %2851 = vst [vmem:[#allocation3 + $0x60] sm:$0xff] %v2819
      %2852 = vst [vmem:[#allocation3 + $0x68] sm:$0xff] %v2820
      %2853 = vst [vmem:[#allocation3 + $0x70] sm:$0xff] %v2821
      %2854 = vst [vmem:[#allocation3 + $0x78] sm:$0xff] %v2822
      %2855 = vst [vmem:[#allocation3 + $0x80] sm:$0xff] %v2823
      %2856 = vst [vmem:[#allocation3 + $0x88] sm:$0xff] %v2824
      %2857 = vst [vmem:[#allocation3 + $0x90] sm:$0xff] %v2825
      %2858 = vst [vmem:[#allocation3 + $0x98] sm:$0xff] %v2826
      %2859 = vst [vmem:[#allocation3 + $0xa0] sm:$0xff] %v2827
      %2860 = vst [vmem:[#allocation3 + $0xa8] sm:$0xff] %v2828
      %2861 = vst [vmem:[#allocation3 + $0xb0] sm:$0xff] %v2829
      %2862 = vst [vmem:[#allocation3 + $0xb8] sm:$0xff] %v2830
      %2863 = vst [vmem:[#allocation3 + $0xc0] sm:$0xff] %v2831
      %2864 = vst [vmem:[#allocation3 + $0xc8] sm:$0xff] %v2832
      %2865 = vst [vmem:[#allocation3 + $0xd0] sm:$0xff] %v2833
      %2866 = vst [vmem:[#allocation3 + $0xd8] sm:$0xff] %v2834
      %2867 = vst [vmem:[#allocation3 + $0xe0] sm:$0xff] %v2835
      %2868 = vst [vmem:[#allocation3 + $0xe8] sm:$0xff] %v2836
      %2869 = vst [vmem:[#allocation3 + $0xf0] sm:$0xff] %v2837
      %2870 = vst [vmem:[#allocation3 + $0xf8] sm:$0xff] %v2838
      %v2871 = vld [vmem:[#allocation2 + $0x30] sm:$0xff]
      %v2872 = vld [vmem:[#allocation2 + $0x38] sm:$0xff]
      %v2873 = vld [vmem:[#allocation2 + $0x40] sm:$0xff]
      %v2874 = vld [vmem:[#allocation2 + $0x48] sm:$0xff]
      %v2875 = vld [vmem:[#allocation2 + $0x50] sm:$0xff]
      %v2876 = vld [vmem:[#allocation2 + $0x58] sm:$0xff]
      %v2877 = vld [vmem:[#allocation2 + $0x60] sm:$0xff]
      %v2878 = vld [vmem:[#allocation2 + $0x68] sm:$0xff]
      %v2879 = vld [vmem:[#allocation2 + $0x70] sm:$0xff]
      %v2880 = vld [vmem:[#allocation2 + $0x78] sm:$0xff]
      %v2881 = vld [vmem:[#allocation2 + $0x80] sm:$0xff]
      %v2882 = vld [vmem:[#allocation2 + $0x88] sm:$0xff]
      %v2883 = vld [vmem:[#allocation2 + $0x90] sm:$0xff]
      %v2884 = vld [vmem:[#allocation2 + $0x98] sm:$0xff]
      %v2885 = vld [vmem:[#allocation2 + $0xa0] sm:$0xff]
      %v2886 = vld [vmem:[#allocation2 + $0xa8] sm:$0xff]
      %v2887 = vld [vmem:[#allocation2 + $0xb0] sm:$0xff]
      %v2888 = vld [vmem:[#allocation2 + $0xb8] sm:$0xff]
      %v2889 = vld [vmem:[#allocation2 + $0xc0] sm:$0xff]
      %v2890 = vld [vmem:[#allocation2 + $0xc8] sm:$0xff]
      %v2891 = vld [vmem:[#allocation2 + $0xd0] sm:$0xff]
      %v2892 = vld [vmem:[#allocation2 + $0xd8] sm:$0xff]
      %v2893 = vld [vmem:[#allocation2 + $0xe0] sm:$0xff]
      %v2894 = vld [vmem:[#allocation2 + $0xe8] sm:$0xff]
      %v2895 = vld [vmem:[#allocation2 + $0xf0] sm:$0xff]
      %v2896 = vld [vmem:[#allocation2 + $0xf8] sm:$0xff]
      %v2897 = vld [vmem:[#allocation2 + $0x100] sm:$0xff]
      %v2898 = vld [vmem:[#allocation2 + $0x108] sm:$0xff]
      %v2899 = vld [vmem:[#allocation2 + $0x110] sm:$0xff]
      %v2900 = vld [vmem:[#allocation2 + $0x118] sm:$0xff]
      %v2901 = vld [vmem:[#allocation2 + $0x120] sm:$0xff]
      %v2902 = vld [vmem:[#allocation2 + $0x128] sm:$0xff]
      %v2903 = vld [vmem:[#allocation2 + $0x130] sm:$0xff]
      %v2904 = vld [vmem:[#allocation2 + $0x138] sm:$0xff]
      %v2905 = vld [vmem:[#allocation2 + $0x140] sm:$0xff]
      %v2906 = vld [vmem:[#allocation2 + $0x148] sm:$0xff]
      %v2907 = vld [vmem:[#allocation2 + $0x150] sm:$0xff]
      %v2908 = vld [vmem:[#allocation2 + $0x158] sm:$0xff]
      %v2909 = vld [vmem:[#allocation2 + $0x160] sm:$0xff]
      %v2910 = vld [vmem:[#allocation2 + $0x168] sm:$0xff]
      %v2911 = vld [vmem:[#allocation2 + $0x170] sm:$0xff]
      %v2912 = vld [vmem:[#allocation2 + $0x178] sm:$0xff]
      %v2913 = vld [vmem:[#allocation2 + $0x180] sm:$0xff]
      %v2914 = vld [vmem:[#allocation2 + $0x188] sm:$0xff]
      %v2915 = vld [vmem:[#allocation2 + $0x190] sm:$0xff]
      %v2916 = vld [vmem:[#allocation2 + $0x198] sm:$0xff]
      %v2917 = vld [vmem:[#allocation2 + $0x1a0] sm:$0xff]
      %v2918 = vld [vmem:[#allocation2 + $0x1a8] sm:$0xff]
      %s2919 = scalar_lea.vmem %s5, 384
      %v2920 = vld [vmem:[%s2919] sm:$0xf]
      %v2921 = vld [vmem:[%s2919 + $0x4] sm:$0xf]
      %v2922 = vld [vmem:[%s2919 + $0x8] sm:$0xf]
      %v2923 = vld [vmem:[%s2919 + $0xc] sm:$0xf]
      %v2924 = vld [vmem:[%s2919 + $0x10] sm:$0xf]
      %v2925 = vld [vmem:[%s2919 + $0x14] sm:$0xf]
      %v2926 = vld [vmem:[%s2919 + $0x18] sm:$0xf]
      %v2927 = vld [vmem:[%s2919 + $0x1c] sm:$0xf]
      %v2928 = vld [vmem:[%s2919 + $0x20] sm:$0xf]
      %v2929 = vld [vmem:[%s2919 + $0x24] sm:$0xf]
      %v2930 = vld [vmem:[%s2919 + $0x28] sm:$0xf]
      %v2931 = vld [vmem:[%s2919 + $0x2c] sm:$0xf]
      %v2932 = vld [vmem:[%s2919 + $0x30] sm:$0xf]
      %v2933 = vld [vmem:[%s2919 + $0x34] sm:$0xf]
      %v2934 = vld [vmem:[%s2919 + $0x38] sm:$0xf]
      %v2935 = vld [vmem:[%s2919 + $0x3c] sm:$0xf]
      %v2936 = vld [vmem:[%s2919 + $0x40] sm:$0xf]
      %v2937 = vld [vmem:[%s2919 + $0x44] sm:$0xf]
      %v2938 = vld [vmem:[%s2919 + $0x48] sm:$0xf]
      %v2939 = vld [vmem:[%s2919 + $0x4c] sm:$0xf]
      %v2940 = vld [vmem:[%s2919 + $0x50] sm:$0xf]
      %v2941 = vld [vmem:[%s2919 + $0x54] sm:$0xf]
      %v2942 = vld [vmem:[%s2919 + $0x58] sm:$0xf]
      %v2943 = vld [vmem:[%s2919 + $0x5c] sm:$0xf]
      %v2944 = vld [vmem:[%s2919 + $0x60] sm:$0xf]
      %v2945 = vld [vmem:[%s2919 + $0x64] sm:$0xf]
      %v2946 = vld [vmem:[%s2919 + $0x68] sm:$0xf]
      %v2947 = vld [vmem:[%s2919 + $0x6c] sm:$0xf]
      %v2948 = vld [vmem:[%s2919 + $0x70] sm:$0xf]
      %v2949 = vld [vmem:[%s2919 + $0x74] sm:$0xf]
      %v2950 = vld [vmem:[%s2919 + $0x78] sm:$0xf]
      %v2951 = vld [vmem:[%s2919 + $0x7c] sm:$0xf]
      %v2952 = vld [vmem:[%s2919 + $0x80] sm:$0xf]
      %v2953 = vld [vmem:[%s2919 + $0x84] sm:$0xf]
      %v2954 = vld [vmem:[%s2919 + $0x88] sm:$0xf]
      %v2955 = vld [vmem:[%s2919 + $0x8c] sm:$0xf]
      %v2956 = vld [vmem:[%s2919 + $0x90] sm:$0xf]
      %v2957 = vld [vmem:[%s2919 + $0x94] sm:$0xf]
      %v2958 = vld [vmem:[%s2919 + $0x98] sm:$0xf]
      %v2959 = vld [vmem:[%s2919 + $0x9c] sm:$0xf]
      %v2960 = vld [vmem:[%s2919 + $0xa0] sm:$0xf]
      %v2961 = vld [vmem:[%s2919 + $0xa4] sm:$0xf]
      %v2962 = vld [vmem:[%s2919 + $0xa8] sm:$0xf]
      %v2963 = vld [vmem:[%s2919 + $0xac] sm:$0xf]
      %v2964 = vld [vmem:[%s2919 + $0xb0] sm:$0xf]
      %v2965 = vld [vmem:[%s2919 + $0xb4] sm:$0xf]
      %v2966 = vld [vmem:[%s2919 + $0xb8] sm:$0xf]
      %v2967 = vld [vmem:[%s2919 + $0xbc] sm:$0xf]
      %v3016 = vunpack.c.l.b16 %v2920
      %v3017 = vunpack.c.l.b16 %v2921
      %v3018 = vunpack.c.l.b16 %v2922
      %v3019 = vunpack.c.l.b16 %v2923
      %v3020 = vunpack.c.l.b16 %v2924
      %v3021 = vunpack.c.l.b16 %v2925
      %v3022 = vunpack.c.l.b16 %v2926
      %v3023 = vunpack.c.l.b16 %v2927
      %v3024 = vunpack.c.l.b16 %v2928
      %v3025 = vunpack.c.l.b16 %v2929
      %v3026 = vunpack.c.l.b16 %v2930
      %v3027 = vunpack.c.l.b16 %v2931
      %v3028 = vunpack.c.l.b16 %v2932
      %v3029 = vunpack.c.l.b16 %v2933
      %v3030 = vunpack.c.l.b16 %v2934
      %v3031 = vunpack.c.l.b16 %v2935
      %v3032 = vunpack.c.l.b16 %v2936
      %v3033 = vunpack.c.l.b16 %v2937
      %v3034 = vunpack.c.l.b16 %v2938
      %v3035 = vunpack.c.l.b16 %v2939
      %v3036 = vunpack.c.l.b16 %v2940
      %v3037 = vunpack.c.l.b16 %v2941
      %v3038 = vunpack.c.l.b16 %v2942
      %v3039 = vunpack.c.l.b16 %v2943
      %v3040 = vunpack.c.l.b16 %v2944
      %v3041 = vunpack.c.l.b16 %v2945
      %v3042 = vunpack.c.l.b16 %v2946
      %v3043 = vunpack.c.l.b16 %v2947
      %v3044 = vunpack.c.l.b16 %v2948
      %v3045 = vunpack.c.l.b16 %v2949
      %v3046 = vunpack.c.l.b16 %v2950
      %v3047 = vunpack.c.l.b16 %v2951
      %v3048 = vunpack.c.l.b16 %v2952
      %v3049 = vunpack.c.l.b16 %v2953
      %v3050 = vunpack.c.l.b16 %v2954
      %v3051 = vunpack.c.l.b16 %v2955
      %v3052 = vunpack.c.l.b16 %v2956
      %v3053 = vunpack.c.l.b16 %v2957
      %v3054 = vunpack.c.l.b16 %v2958
      %v3055 = vunpack.c.l.b16 %v2959
      %v3056 = vunpack.c.l.b16 %v2960
      %v3057 = vunpack.c.l.b16 %v2961
      %v3058 = vunpack.c.l.b16 %v2962
      %v3059 = vunpack.c.l.b16 %v2963
      %v3060 = vunpack.c.l.b16 %v2964
      %v3061 = vunpack.c.l.b16 %v2965
      %v3062 = vunpack.c.l.b16 %v2966
      %v3063 = vunpack.c.l.b16 %v2967
      %v3064 = vpack.c.b16 %v3017, %v3016
      %v3065 = vpack.c.b16 %v3019, %v3018
      %v3066 = vpack.c.b16 %v3021, %v3020
      %v3067 = vpack.c.b16 %v3023, %v3022
      %v3068 = vpack.c.b16 %v3025, %v3024
      %v3069 = vpack.c.b16 %v3027, %v3026
      %v3070 = vpack.c.b16 %v3029, %v3028
      %v3071 = vpack.c.b16 %v3031, %v3030
      %v3072 = vpack.c.b16 %v3033, %v3032
      %v3073 = vpack.c.b16 %v3035, %v3034
      %v3074 = vpack.c.b16 %v3037, %v3036
      %v3075 = vpack.c.b16 %v3039, %v3038
      %v3076 = vpack.c.b16 %v3041, %v3040
      %v3077 = vpack.c.b16 %v3043, %v3042
      %v3078 = vpack.c.b16 %v3045, %v3044
      %v3079 = vpack.c.b16 %v3047, %v3046
      %v3080 = vpack.c.b16 %v3049, %v3048
      %v3081 = vpack.c.b16 %v3051, %v3050
      %v3082 = vpack.c.b16 %v3053, %v3052
      %v3083 = vpack.c.b16 %v3055, %v3054
      %v3084 = vpack.c.b16 %v3057, %v3056
      %v3085 = vpack.c.b16 %v3059, %v3058
      %v3086 = vpack.c.b16 %v3061, %v3060
      %v3087 = vpack.c.b16 %v3063, %v3062
      %3112 = vmatprep.subr.bf16.mxu0 0
      %3113 = vmatpush1.bf16.msra.mxu0 %v3064
      %3114 = vmatprep.subr.bf16.mxu0 0
      %3115 = vmatpush1.bf16.msra.mxu0 %v3065
      %3116 = vmatprep.subr.bf16.mxu0 0
      %3117 = vmatpush1.bf16.msra.mxu0 %v3066
      %3118 = vmatprep.subr.bf16.mxu0 0
      %3119 = vmatpush1.bf16.msra.mxu0 %v3067
      %3120 = vmatprep.subr.bf16.mxu0 0
      %3121 = vmatpush1.bf16.msra.mxu0 %v3068
      %3122 = vmatprep.subr.bf16.mxu0 0
      %3123 = vmatpush1.bf16.msra.mxu0 %v3069
      %3124 = vmatprep.subr.bf16.mxu0 0
      %3125 = vmatpush1.bf16.msra.mxu0 %v3070
      %3126 = vmatprep.subr.bf16.mxu0 0
      %3127 = vmatpush1.bf16.msra.mxu0 %v3071
      %3128 = vmatprep.subr.bf16.mxu0 0
      %3129 = vmatpush1.bf16.msra.mxu0 %v3072
      %3130 = vmatprep.subr.bf16.mxu0 0
      %3131 = vmatpush1.bf16.msra.mxu0 %v3073
      %3132 = vmatprep.subr.bf16.mxu0 0
      %3133 = vmatpush1.bf16.msra.mxu0 %v3074
      %3134 = vmatprep.subr.bf16.mxu0 0
      %3135 = vmatpush1.bf16.msra.mxu0 %v3075
      %3136 = vmatprep.subr.bf16.mxu0 0
      %3137 = vmatpush1.bf16.msra.mxu0 %v3076
      %3138 = vmatprep.subr.bf16.mxu0 0
      %3139 = vmatpush1.bf16.msra.mxu0 %v3077
      %3140 = vmatprep.subr.bf16.mxu0 0
      %3141 = vmatpush1.bf16.msra.mxu0 %v3078
      %3142 = vmatprep.subr.bf16.mxu0 0
      %3143 = vmatpush1.bf16.msra.mxu0 %v3079
      %3144 = vmatprep.mubr.bf16.mxu0 %v2872
      %3145 = vmatmul.mubr.bf16.gmra.mrb[0].mxu0 %v2871
      %v3146 = vpop.f32.mrb[0].mxu0
      %v3147 = vadd.f32 0.0, %v3146
      %v3148 = vpop.f32.mrb[0].mxu0
      %v3149 = vpop.f32.mrb[0].mxu0
      %v3150 = vadd.f32 0.0, %v3149
      %v3151 = vpop.f32.mrb[0].mxu0
      %3152 = vmatprep.mubr.bf16.mxu0 %v2875
      %3153 = vmatmul.mubr.bf16.gmra.mrb[0].mxu0 %v2874
      %v3154 = vpop.f32.mrb[0].mxu0
      %v3155 = vadd.f32 0.0, %v3154
      %v3156 = vpop.f32.mrb[0].mxu0
      %v3157 = vpop.f32.mrb[0].mxu0
      %v3158 = vadd.f32 0.0, %v3157
      %v3159 = vpop.f32.mrb[0].mxu0
      %3160 = vmatprep.mubr.bf16.mxu0 %v2878
      %3161 = vmatmul.mubr.bf16.gmra.mrb[0].mxu0 %v2877
      %v3162 = vpop.f32.mrb[0].mxu0
      %v3163 = vadd.f32 0.0, %v3162
      %v3164 = vpop.f32.mrb[0].mxu0
      %v3165 = vpop.f32.mrb[0].mxu0
      %v3166 = vadd.f32 0.0, %v3165
      %v3167 = vpop.f32.mrb[0].mxu0
      %3168 = vmatprep.mubr.bf16.mxu0 %v2881
      %3169 = vmatmul.mubr.bf16.gmra.mrb[0].mxu0 %v2880
      %v3170 = vpop.f32.mrb[0].mxu0
      %v3171 = vadd.f32 0.0, %v3170
      %v3172 = vpop.f32.mrb[0].mxu0
      %v3173 = vpop.f32.mrb[0].mxu0
      %v3174 = vadd.f32 0.0, %v3173
      %v3175 = vpop.f32.mrb[0].mxu0
      %3176 = vmatprep.mubr.bf16.mxu0 %v2884
      %3177 = vmatmul.mubr.bf16.gmra.mrb[0].mxu0 %v2883
      %v3178 = vpop.f32.mrb[0].mxu0
      %v3179 = vadd.f32 0.0, %v3178
      %v3180 = vpop.f32.mrb[0].mxu0
      %v3181 = vpop.f32.mrb[0].mxu0
      %v3182 = vadd.f32 0.0, %v3181
      %v3183 = vpop.f32.mrb[0].mxu0
      %3184 = vmatprep.mubr.bf16.mxu0 %v2887
      %3185 = vmatmul.mubr.bf16.gmra.mrb[0].mxu0 %v2886
      %v3186 = vpop.f32.mrb[0].mxu0
      %v3187 = vadd.f32 0.0, %v3186
      %v3188 = vpop.f32.mrb[0].mxu0
      %v3189 = vpop.f32.mrb[0].mxu0
      %v3190 = vadd.f32 0.0, %v3189
      %v3191 = vpop.f32.mrb[0].mxu0
      %3192 = vmatprep.mubr.bf16.mxu0 %v2890
      %3193 = vmatmul.mubr.bf16.gmra.mrb[0].mxu0 %v2889
      %v3194 = vpop.f32.mrb[0].mxu0
      %v3195 = vadd.f32 0.0, %v3194
      %v3196 = vpop.f32.mrb[0].mxu0
      %v3197 = vpop.f32.mrb[0].mxu0
      %v3198 = vadd.f32 0.0, %v3197
      %v3199 = vpop.f32.mrb[0].mxu0
      %3200 = vmatprep.mubr.bf16.mxu0 %v2893
      %3201 = vmatmul.mubr.bf16.gmra.mrb[0].mxu0 %v2892
      %v3202 = vpop.f32.mrb[0].mxu0
      %v3203 = vadd.f32 0.0, %v3202
      %v3204 = vpop.f32.mrb[0].mxu0
      %v3205 = vpop.f32.mrb[0].mxu0
      %v3206 = vadd.f32 0.0, %v3205
      %v3207 = vpop.f32.mrb[0].mxu0
      %3208 = vmatprep.mubr.bf16.mxu0 %v2896
      %3209 = vmatmul.mubr.bf16.gmra.mrb[0].mxu0 %v2895
      %v3210 = vpop.f32.mrb[0].mxu0
      %v3211 = vadd.f32 0.0, %v3210
      %v3212 = vpop.f32.mrb[0].mxu0
      %v3213 = vpop.f32.mrb[0].mxu0
      %v3214 = vadd.f32 0.0, %v3213
      %v3215 = vpop.f32.mrb[0].mxu0
      %3216 = vmatprep.mubr.bf16.mxu0 %v2899
      %3217 = vmatmul.mubr.bf16.gmra.mrb[0].mxu0 %v2898
      %v3218 = vpop.f32.mrb[0].mxu0
      %v3219 = vadd.f32 0.0, %v3218
      %v3220 = vpop.f32.mrb[0].mxu0
      %v3221 = vpop.f32.mrb[0].mxu0
      %v3222 = vadd.f32 0.0, %v3221
      %v3223 = vpop.f32.mrb[0].mxu0
      %3224 = vmatprep.mubr.bf16.mxu0 %v2902
      %3225 = vmatmul.mubr.bf16.gmra.mrb[0].mxu0 %v2901
      %v3226 = vpop.f32.mrb[0].mxu0
      %v3227 = vadd.f32 0.0, %v3226
      %v3228 = vpop.f32.mrb[0].mxu0
      %v3229 = vpop.f32.mrb[0].mxu0
      %v3230 = vadd.f32 0.0, %v3229
      %v3231 = vpop.f32.mrb[0].mxu0
      %3232 = vmatprep.mubr.bf16.mxu0 %v2905
      %3233 = vmatmul.mubr.bf16.gmra.mrb[0].mxu0 %v2904
      %v3234 = vpop.f32.mrb[0].mxu0
      %v3235 = vadd.f32 0.0, %v3234
      %v3236 = vpop.f32.mrb[0].mxu0
      %v3237 = vpop.f32.mrb[0].mxu0
      %v3238 = vadd.f32 0.0, %v3237
      %v3239 = vpop.f32.mrb[0].mxu0
      %3240 = vmatprep.mubr.bf16.mxu0 %v2908
      %3241 = vmatmul.mubr.bf16.gmra.mrb[0].mxu0 %v2907
      %v3242 = vpop.f32.mrb[0].mxu0
      %v3243 = vadd.f32 0.0, %v3242
      %v3244 = vpop.f32.mrb[0].mxu0
      %v3245 = vpop.f32.mrb[0].mxu0
      %v3246 = vadd.f32 0.0, %v3245
      %v3247 = vpop.f32.mrb[0].mxu0
      %3248 = vmatprep.mubr.bf16.mxu0 %v2911
      %3249 = vmatmul.mubr.bf16.gmra.mrb[0].mxu0 %v2910
      %v3250 = vpop.f32.mrb[0].mxu0
      %v3251 = vadd.f32 0.0, %v3250
      %v3252 = vpop.f32.mrb[0].mxu0
      %v3253 = vpop.f32.mrb[0].mxu0
      %v3254 = vadd.f32 0.0, %v3253
      %v3255 = vpop.f32.mrb[0].mxu0
      %3256 = vmatprep.mubr.bf16.mxu0 %v2914
      %3257 = vmatmul.mubr.bf16.gmra.mrb[0].mxu0 %v2913
      %v3258 = vpop.f32.mrb[0].mxu0
      %v3259 = vadd.f32 0.0, %v3258
      %v3260 = vpop.f32.mrb[0].mxu0
      %v3261 = vpop.f32.mrb[0].mxu0
      %v3262 = vadd.f32 0.0, %v3261
      %v3263 = vpop.f32.mrb[0].mxu0
      %3264 = vmatprep.mubr.bf16.mxu0 %v2917
      %3265 = vmatmul.mubr.bf16.gmra.mrb[0].mxu0 %v2916
      %v3266 = vpop.f32.mrb[0].mxu0
      %v3267 = vadd.f32 0.0, %v3266
      %v3268 = vpop.f32.mrb[0].mxu0
      %v3269 = vpop.f32.mrb[0].mxu0
      %v3270 = vadd.f32 0.0, %v3269
      %v3271 = vpop.f32.mrb[0].mxu0
      %3272 = vdwg.mxu0
      %3273 = vmatprep.subr.bf16.mxu0 0
      %3274 = vmatpush1.bf16.msra.mxu0 %v3080
      %3275 = vmatprep.subr.bf16.mxu0 0
      %3276 = vmatpush1.bf16.msra.mxu0 %v3081
      %3277 = vmatprep.subr.bf16.mxu0 0
      %3278 = vmatpush1.bf16.msra.mxu0 %v3082
      %3279 = vmatprep.subr.bf16.mxu0 0
      %3280 = vmatpush1.bf16.msra.mxu0 %v3083
      %3281 = vmatprep.subr.bf16.mxu0 0
      %3282 = vmatpush1.bf16.msra.mxu0 %v3084
      %3283 = vmatprep.subr.bf16.mxu0 0
      %3284 = vmatpush1.bf16.msra.mxu0 %v3085
      %3285 = vmatprep.subr.bf16.mxu0 0
      %3286 = vmatpush1.bf16.msra.mxu0 %v3086
      %3287 = vmatprep.subr.bf16.mxu0 0
      %3288 = vmatpush1.bf16.msra.mxu0 %v3087
      %3289 = vmatprep.subr.bf16.mxu0 0
      %3290 = vmatpush1.bf16.msra.mxu0 0
      %3291 = vmatprep.subr.bf16.mxu0 0
      %3292 = vmatpush1.bf16.msra.mxu0 0
      %3293 = vmatprep.subr.bf16.mxu0 0
      %3294 = vmatpush1.bf16.msra.mxu0 0
      %3295 = vmatprep.subr.bf16.mxu0 0
      %3296 = vmatpush1.bf16.msra.mxu0 0
      %3297 = vmatprep.subr.bf16.mxu0 0
      %3298 = vmatpush1.bf16.msra.mxu0 0
      %3299 = vmatprep.subr.bf16.mxu0 0
      %3300 = vmatpush1.bf16.msra.mxu0 0
      %3301 = vmatprep.subr.bf16.mxu0 0
      %3302 = vmatpush1.bf16.msra.mxu0 0
      %3303 = vmatprep.subr.bf16.mxu0 0
      %3304 = vmatpush1.bf16.msra.mxu0 0
      %3305 = vmatprep.mubr.bf16.mxu0 0
      %3306 = vmatmul.mubr.bf16.gmra.mrb[0].mxu0 %v2873
      %v3307 = vpop.f32.mrb[0].mxu0
      %v3308 = vadd.f32 %v3147, %v3307
      %v3309 = vpop.f32.mrb[0].mxu0
      %v3310 = vpop.f32.mrb[0].mxu0
      %v3311 = vadd.f32 %v3150, %v3310
      %v3312 = vpop.f32.mrb[0].mxu0
      %3313 = vmatprep.mubr.bf16.mxu0 0
      %3314 = vmatmul.mubr.bf16.gmra.mrb[0].mxu0 %v2876
      %v3315 = vpop.f32.mrb[0].mxu0
      %v3316 = vadd.f32 %v3155, %v3315
      %v3317 = vpop.f32.mrb[0].mxu0
      %v3318 = vpop.f32.mrb[0].mxu0
      %v3319 = vadd.f32 %v3158, %v3318
      %v3320 = vpop.f32.mrb[0].mxu0
      %3321 = vmatprep.mubr.bf16.mxu0 0
      %3322 = vmatmul.mubr.bf16.gmra.mrb[0].mxu0 %v2879
      %v3323 = vpop.f32.mrb[0].mxu0
      %v3324 = vadd.f32 %v3163, %v3323
      %v3325 = vpop.f32.mrb[0].mxu0
      %v3326 = vpop.f32.mrb[0].mxu0
      %v3327 = vadd.f32 %v3166, %v3326
      %v3328 = vpop.f32.mrb[0].mxu0
      %3329 = vmatprep.mubr.bf16.mxu0 0
      %3330 = vmatmul.mubr.bf16.gmra.mrb[0].mxu0 %v2882
      %v3331 = vpop.f32.mrb[0].mxu0
      %v3332 = vadd.f32 %v3171, %v3331
      %v3333 = vpop.f32.mrb[0].mxu0
      %v3334 = vpop.f32.mrb[0].mxu0
      %v3335 = vadd.f32 %v3174, %v3334
      %v3336 = vpop.f32.mrb[0].mxu0
      %3337 = vmatprep.mubr.bf16.mxu0 0
      %3338 = vmatmul.mubr.bf16.gmra.mrb[0].mxu0 %v2885
      %v3339 = vpop.f32.mrb[0].mxu0
      %v3340 = vadd.f32 %v3179, %v3339
      %v3341 = vpop.f32.mrb[0].mxu0
      %v3342 = vpop.f32.mrb[0].mxu0
      %v3343 = vadd.f32 %v3182, %v3342
      %v3344 = vpop.f32.mrb[0].mxu0
      %3345 = vmatprep.mubr.bf16.mxu0 0
      %3346 = vmatmul.mubr.bf16.gmra.mrb[0].mxu0 %v2888
      %v3347 = vpop.f32.mrb[0].mxu0
      %v3348 = vadd.f32 %v3187, %v3347
      %v3349 = vpop.f32.mrb[0].mxu0
      %v3350 = vpop.f32.mrb[0].mxu0
      %v3351 = vadd.f32 %v3190, %v3350
      %v3352 = vpop.f32.mrb[0].mxu0
      %3353 = vmatprep.mubr.bf16.mxu0 0
      %3354 = vmatmul.mubr.bf16.gmra.mrb[0].mxu0 %v2891
      %v3355 = vpop.f32.mrb[0].mxu0
      %v3356 = vadd.f32 %v3195, %v3355
      %v3357 = vpop.f32.mrb[0].mxu0
      %v3358 = vpop.f32.mrb[0].mxu0
      %v3359 = vadd.f32 %v3198, %v3358
      %v3360 = vpop.f32.mrb[0].mxu0
      %3361 = vmatprep.mubr.bf16.mxu0 0
      %3362 = vmatmul.mubr.bf16.gmra.mrb[0].mxu0 %v2894
      %v3363 = vpop.f32.mrb[0].mxu0
      %v3364 = vadd.f32 %v3203, %v3363
      %v3365 = vpop.f32.mrb[0].mxu0
      %v3366 = vpop.f32.mrb[0].mxu0
      %v3367 = vadd.f32 %v3206, %v3366
      %v3368 = vpop.f32.mrb[0].mxu0
      %3369 = vmatprep.mubr.bf16.mxu0 0
      %3370 = vmatmul.mubr.bf16.gmra.mrb[0].mxu0 %v2897
      %v3371 = vpop.f32.mrb[0].mxu0
      %v3372 = vadd.f32 %v3211, %v3371
      %v3373 = vpop.f32.mrb[0].mxu0
      %v3374 = vpop.f32.mrb[0].mxu0
      %v3375 = vadd.f32 %v3214, %v3374
      %v3376 = vpop.f32.mrb[0].mxu0
      %3377 = vmatprep.mubr.bf16.mxu0 0
      %3378 = vmatmul.mubr.bf16.gmra.mrb[0].mxu0 %v2900
      %v3379 = vpop.f32.mrb[0].mxu0
      %v3380 = vadd.f32 %v3219, %v3379
      %v3381 = vpop.f32.mrb[0].mxu0
      %v3382 = vpop.f32.mrb[0].mxu0
      %v3383 = vadd.f32 %v3222, %v3382
      %v3384 = vpop.f32.mrb[0].mxu0
      %3385 = vmatprep.mubr.bf16.mxu0 0
      %3386 = vmatmul.mubr.bf16.gmra.mrb[0].mxu0 %v2903
      %v3387 = vpop.f32.mrb[0].mxu0
      %v3388 = vadd.f32 %v3227, %v3387
      %v3389 = vpop.f32.mrb[0].mxu0
      %v3390 = vpop.f32.mrb[0].mxu0
      %v3391 = vadd.f32 %v3230, %v3390
      %v3392 = vpop.f32.mrb[0].mxu0
      %3393 = vmatprep.mubr.bf16.mxu0 0
      %3394 = vmatmul.mubr.bf16.gmra.mrb[0].mxu0 %v2906
      %v3395 = vpop.f32.mrb[0].mxu0
      %v3396 = vadd.f32 %v3235, %v3395
      %v3397 = vpop.f32.mrb[0].mxu0
      %v3398 = vpop.f32.mrb[0].mxu0
      %v3399 = vadd.f32 %v3238, %v3398
      %v3400 = vpop.f32.mrb[0].mxu0
      %3401 = vmatprep.mubr.bf16.mxu0 0
      %3402 = vmatmul.mubr.bf16.gmra.mrb[0].mxu0 %v2909
      %v3403 = vpop.f32.mrb[0].mxu0
      %v3404 = vadd.f32 %v3243, %v3403
      %v3405 = vpop.f32.mrb[0].mxu0
      %v3406 = vpop.f32.mrb[0].mxu0
      %v3407 = vadd.f32 %v3246, %v3406
      %v3408 = vpop.f32.mrb[0].mxu0
      %3409 = vmatprep.mubr.bf16.mxu0 0
      %3410 = vmatmul.mubr.bf16.gmra.mrb[0].mxu0 %v2912
      %v3411 = vpop.f32.mrb[0].mxu0
      %v3412 = vadd.f32 %v3251, %v3411
      %v3413 = vpop.f32.mrb[0].mxu0
      %v3414 = vpop.f32.mrb[0].mxu0
      %v3415 = vadd.f32 %v3254, %v3414
      %v3416 = vpop.f32.mrb[0].mxu0
      %3417 = vmatprep.mubr.bf16.mxu0 0
      %3418 = vmatmul.mubr.bf16.gmra.mrb[0].mxu0 %v2915
      %v3419 = vpop.f32.mrb[0].mxu0
      %v3420 = vadd.f32 %v3259, %v3419
      %v3421 = vpop.f32.mrb[0].mxu0
      %v3422 = vpop.f32.mrb[0].mxu0
      %v3423 = vadd.f32 %v3262, %v3422
      %v3424 = vpop.f32.mrb[0].mxu0
      %3425 = vmatprep.mubr.bf16.mxu0 0
      %3426 = vmatmul.mubr.bf16.gmra.mrb[0].mxu0 %v2918
      %v3427 = vpop.f32.mrb[0].mxu0
      %v3428 = vadd.f32 %v3267, %v3427
      %v3429 = vpop.f32.mrb[0].mxu0
      %v3430 = vpop.f32.mrb[0].mxu0
      %v3431 = vadd.f32 %v3270, %v3430
      %v3432 = vpop.f32.mrb[0].mxu0
      %3433 = vdwg.mxu0
      %v3434 = vld [vmem:[#allocation3] sm:$0xff]
      %v3435 = vld [vmem:[#allocation3 + $0x8] sm:$0xff]
      %v3436 = vld [vmem:[#allocation3 + $0x10] sm:$0xff]
      %v3437 = vld [vmem:[#allocation3 + $0x18] sm:$0xff]
      %v3438 = vld [vmem:[#allocation3 + $0x20] sm:$0xff]
      %v3439 = vld [vmem:[#allocation3 + $0x28] sm:$0xff]
      %v3440 = vld [vmem:[#allocation3 + $0x30] sm:$0xff]
      %v3441 = vld [vmem:[#allocation3 + $0x38] sm:$0xff]
      %v3442 = vld [vmem:[#allocation3 + $0x40] sm:$0xff]
      %v3443 = vld [vmem:[#allocation3 + $0x48] sm:$0xff]
      %v3444 = vld [vmem:[#allocation3 + $0x50] sm:$0xff]
      %v3445 = vld [vmem:[#allocation3 + $0x58] sm:$0xff]
      %v3446 = vld [vmem:[#allocation3 + $0x60] sm:$0xff]
      %v3447 = vld [vmem:[#allocation3 + $0x68] sm:$0xff]
      %v3448 = vld [vmem:[#allocation3 + $0x70] sm:$0xff]
      %v3449 = vld [vmem:[#allocation3 + $0x78] sm:$0xff]
      %v3450 = vld [vmem:[#allocation3 + $0x80] sm:$0xff]
      %v3451 = vld [vmem:[#allocation3 + $0x88] sm:$0xff]
      %v3452 = vld [vmem:[#allocation3 + $0x90] sm:$0xff]
      %v3453 = vld [vmem:[#allocation3 + $0x98] sm:$0xff]
      %v3454 = vld [vmem:[#allocation3 + $0xa0] sm:$0xff]
      %v3455 = vld [vmem:[#allocation3 + $0xa8] sm:$0xff]
      %v3456 = vld [vmem:[#allocation3 + $0xb0] sm:$0xff]
      %v3457 = vld [vmem:[#allocation3 + $0xb8] sm:$0xff]
      %v3458 = vld [vmem:[#allocation3 + $0xc0] sm:$0xff]
      %v3459 = vld [vmem:[#allocation3 + $0xc8] sm:$0xff]
      %v3460 = vld [vmem:[#allocation3 + $0xd0] sm:$0xff]
      %v3461 = vld [vmem:[#allocation3 + $0xd8] sm:$0xff]
      %v3462 = vld [vmem:[#allocation3 + $0xe0] sm:$0xff]
      %v3463 = vld [vmem:[#allocation3 + $0xe8] sm:$0xff]
      %v3464 = vld [vmem:[#allocation3 + $0xf0] sm:$0xff]
      %v3465 = vld [vmem:[#allocation3 + $0xf8] sm:$0xff]
      %v3466 = vadd.f32 %v3434, %v3308
      %v3467 = vadd.f32 %v3435, %v3311
      %v3468 = vadd.f32 %v3436, %v3316
      %v3469 = vadd.f32 %v3437, %v3319
      %v3470 = vadd.f32 %v3438, %v3324
      %v3471 = vadd.f32 %v3439, %v3327
      %v3472 = vadd.f32 %v3440, %v3332
      %v3473 = vadd.f32 %v3441, %v3335
      %v3474 = vadd.f32 %v3442, %v3340
      %v3475 = vadd.f32 %v3443, %v3343
      %v3476 = vadd.f32 %v3444, %v3348
      %v3477 = vadd.f32 %v3445, %v3351
      %v3478 = vadd.f32 %v3446, %v3356
      %v3479 = vadd.f32 %v3447, %v3359
      %v3480 = vadd.f32 %v3448, %v3364
      %v3481 = vadd.f32 %v3449, %v3367
      %v3482 = vadd.f32 %v3450, %v3372
      %v3483 = vadd.f32 %v3451, %v3375
      %v3484 = vadd.f32 %v3452, %v3380
      %v3485 = vadd.f32 %v3453, %v3383
      %v3486 = vadd.f32 %v3454, %v3388
      %v3487 = vadd.f32 %v3455, %v3391
      %v3488 = vadd.f32 %v3456, %v3396
      %v3489 = vadd.f32 %v3457, %v3399
      %v3490 = vadd.f32 %v3458, %v3404
      %v3491 = vadd.f32 %v3459, %v3407
      %v3492 = vadd.f32 %v3460, %v3412
      %v3493 = vadd.f32 %v3461, %v3415
      %v3494 = vadd.f32 %v3462, %v3420
      %v3495 = vadd.f32 %v3463, %v3423
      %v3496 = vadd.f32 %v3464, %v3428
      %v3497 = vadd.f32 %v3465, %v3431
      %3498 = vst [vmem:[#allocation3] sm:$0xff] %v3466
      %3499 = vst [vmem:[#allocation3 + $0x8] sm:$0xff] %v3467
      %3500 = vst [vmem:[#allocation3 + $0x10] sm:$0xff] %v3468
      %3501 = vst [vmem:[#allocation3 + $0x18] sm:$0xff] %v3469
      %3502 = vst [vmem:[#allocation3 + $0x20] sm:$0xff] %v3470
      %3503 = vst [vmem:[#allocation3 + $0x28] sm:$0xff] %v3471
      %3504 = vst [vmem:[#allocation3 + $0x30] sm:$0xff] %v3472
      %3505 = vst [vmem:[#allocation3 + $0x38] sm:$0xff] %v3473
      %3506 = vst [vmem:[#allocation3 + $0x40] sm:$0xff] %v3474
      %3507 = vst [vmem:[#allocation3 + $0x48] sm:$0xff] %v3475
      %3508 = vst [vmem:[#allocation3 + $0x50] sm:$0xff] %v3476
      %3509 = vst [vmem:[#allocation3 + $0x58] sm:$0xff] %v3477
      %3510 = vst [vmem:[#allocation3 + $0x60] sm:$0xff] %v3478
      %3511 = vst [vmem:[#allocation3 + $0x68] sm:$0xff] %v3479
      %3512 = vst [vmem:[#allocation3 + $0x70] sm:$0xff] %v3480
      %3513 = vst [vmem:[#allocation3 + $0x78] sm:$0xff] %v3481
      %3514 = vst [vmem:[#allocation3 + $0x80] sm:$0xff] %v3482
      %3515 = vst [vmem:[#allocation3 + $0x88] sm:$0xff] %v3483
      %3516 = vst [vmem:[#allocation3 + $0x90] sm:$0xff] %v3484
      %3517 = vst [vmem:[#allocation3 + $0x98] sm:$0xff] %v3485
      %3518 = vst [vmem:[#allocation3 + $0xa0] sm:$0xff] %v3486
      %3519 = vst [vmem:[#allocation3 + $0xa8] sm:$0xff] %v3487
      %3520 = vst [vmem:[#allocation3 + $0xb0] sm:$0xff] %v3488
      %3521 = vst [vmem:[#allocation3 + $0xb8] sm:$0xff] %v3489
      %3522 = vst [vmem:[#allocation3 + $0xc0] sm:$0xff] %v3490
      %3523 = vst [vmem:[#allocation3 + $0xc8] sm:$0xff] %v3491
      %3524 = vst [vmem:[#allocation3 + $0xd0] sm:$0xff] %v3492
      %3525 = vst [vmem:[#allocation3 + $0xd8] sm:$0xff] %v3493
      %3526 = vst [vmem:[#allocation3 + $0xe0] sm:$0xff] %v3494
      %3527 = vst [vmem:[#allocation3 + $0xe8] sm:$0xff] %v3495
      %3528 = vst [vmem:[#allocation3 + $0xf0] sm:$0xff] %v3496
      %3529 = vst [vmem:[#allocation3 + $0xf8] sm:$0xff] %v3497
      %v3530 = vld [vmem:[#allocation3] sm:$0xff]
      %v3531 = vld [vmem:[#allocation3 + $0x8] sm:$0xff]
      %v3532 = vld [vmem:[#allocation3 + $0x10] sm:$0xff]
      %v3533 = vld [vmem:[#allocation3 + $0x18] sm:$0xff]
      %v3534 = vld [vmem:[#allocation3 + $0x20] sm:$0xff]
      %v3535 = vld [vmem:[#allocation3 + $0x28] sm:$0xff]
      %v3536 = vld [vmem:[#allocation3 + $0x30] sm:$0xff]
      %v3537 = vld [vmem:[#allocation3 + $0x38] sm:$0xff]
      %v3538 = vld [vmem:[#allocation3 + $0x40] sm:$0xff]
      %v3539 = vld [vmem:[#allocation3 + $0x48] sm:$0xff]
      %v3540 = vld [vmem:[#allocation3 + $0x50] sm:$0xff]
      %v3541 = vld [vmem:[#allocation3 + $0x58] sm:$0xff]
      %v3542 = vld [vmem:[#allocation3 + $0x60] sm:$0xff]
      %v3543 = vld [vmem:[#allocation3 + $0x68] sm:$0xff]
      %v3544 = vld [vmem:[#allocation3 + $0x70] sm:$0xff]
      %v3545 = vld [vmem:[#allocation3 + $0x78] sm:$0xff]
      %v3546 = vld [vmem:[#allocation3 + $0x80] sm:$0xff]
      %v3547 = vld [vmem:[#allocation3 + $0x88] sm:$0xff]
      %v3548 = vld [vmem:[#allocation3 + $0x90] sm:$0xff]
      %v3549 = vld [vmem:[#allocation3 + $0x98] sm:$0xff]
      %v3550 = vld [vmem:[#allocation3 + $0xa0] sm:$0xff]
      %v3551 = vld [vmem:[#allocation3 + $0xa8] sm:$0xff]
      %v3552 = vld [vmem:[#allocation3 + $0xb0] sm:$0xff]
      %v3553 = vld [vmem:[#allocation3 + $0xb8] sm:$0xff]
      %v3554 = vld [vmem:[#allocation3 + $0xc0] sm:$0xff]
      %v3555 = vld [vmem:[#allocation3 + $0xc8] sm:$0xff]
      %v3556 = vld [vmem:[#allocation3 + $0xd0] sm:$0xff]
      %v3557 = vld [vmem:[#allocation3 + $0xd8] sm:$0xff]
      %v3558 = vld [vmem:[#allocation3 + $0xe0] sm:$0xff]
      %v3559 = vld [vmem:[#allocation3 + $0xe8] sm:$0xff]
      %v3560 = vld [vmem:[#allocation3 + $0xf0] sm:$0xff]
      %v3561 = vld [vmem:[#allocation3 + $0xf8] sm:$0xff]
      %v3562 = vld [vmem:[%s6] sm:$0x1]
      %v3564 = vlaneseq
      %v3565 = vshrl.u32 %v3564, 7
      %v3566 = vsub.s32 0, %v3565
      %v3567 = vrot.slane %v3562, %v3566
      %v3569 = vmul.f32 %v3530, %v3567
      %v3570 = vmul.f32 %v3531, %v3567
      %v3571 = vmul.f32 %v3532, %v3567
      %v3572 = vmul.f32 %v3533, %v3567
      %v3573 = vmul.f32 %v3534, %v3567
      %v3574 = vmul.f32 %v3535, %v3567
      %v3575 = vmul.f32 %v3536, %v3567
      %v3576 = vmul.f32 %v3537, %v3567
      %v3577 = vmul.f32 %v3538, %v3567
      %v3578 = vmul.f32 %v3539, %v3567
      %v3579 = vmul.f32 %v3540, %v3567
      %v3580 = vmul.f32 %v3541, %v3567
      %v3581 = vmul.f32 %v3542, %v3567
      %v3582 = vmul.f32 %v3543, %v3567
      %v3583 = vmul.f32 %v3544, %v3567
      %v3584 = vmul.f32 %v3545, %v3567
      %v3585 = vmul.f32 %v3546, %v3567
      %v3586 = vmul.f32 %v3547, %v3567
      %v3587 = vmul.f32 %v3548, %v3567
      %v3588 = vmul.f32 %v3549, %v3567
      %v3589 = vmul.f32 %v3550, %v3567
      %v3590 = vmul.f32 %v3551, %v3567
      %v3591 = vmul.f32 %v3552, %v3567
      %v3592 = vmul.f32 %v3553, %v3567
      %v3593 = vmul.f32 %v3554, %v3567
      %v3594 = vmul.f32 %v3555, %v3567
      %v3595 = vmul.f32 %v3556, %v3567
      %v3596 = vmul.f32 %v3557, %v3567
      %v3597 = vmul.f32 %v3558, %v3567
      %v3598 = vmul.f32 %v3559, %v3567
      %v3599 = vmul.f32 %v3560, %v3567
      %v3600 = vmul.f32 %v3561, %v3567
      %v3601 = vld [vmem:[%s7] sm:$0x1]
      %v3603 = vlaneseq
      %v3604 = vshrl.u32 %v3603, 7
      %v3605 = vsub.s32 0, %v3604
      %v3606 = vrot.slane %v3601, %v3605
      %v3608 = vadd.f32 %v3569, %v3606
      %v3609 = vadd.f32 %v3570, %v3606
      %v3610 = vadd.f32 %v3571, %v3606
      %v3611 = vadd.f32 %v3572, %v3606
      %v3612 = vadd.f32 %v3573, %v3606
      %v3613 = vadd.f32 %v3574, %v3606
      %v3614 = vadd.f32 %v3575, %v3606
      %v3615 = vadd.f32 %v3576, %v3606
      %v3616 = vadd.f32 %v3577, %v3606
      %v3617 = vadd.f32 %v3578, %v3606
      %v3618 = vadd.f32 %v3579, %v3606
      %v3619 = vadd.f32 %v3580, %v3606
      %v3620 = vadd.f32 %v3581, %v3606
      %v3621 = vadd.f32 %v3582, %v3606
      %v3622 = vadd.f32 %v3583, %v3606
      %v3623 = vadd.f32 %v3584, %v3606
      %v3624 = vadd.f32 %v3585, %v3606
      %v3625 = vadd.f32 %v3586, %v3606
      %v3626 = vadd.f32 %v3587, %v3606
      %v3627 = vadd.f32 %v3588, %v3606
      %v3628 = vadd.f32 %v3589, %v3606
      %v3629 = vadd.f32 %v3590, %v3606
      %v3630 = vadd.f32 %v3591, %v3606
      %v3631 = vadd.f32 %v3592, %v3606
      %v3632 = vadd.f32 %v3593, %v3606
      %v3633 = vadd.f32 %v3594, %v3606
      %v3634 = vadd.f32 %v3595, %v3606
      %v3635 = vadd.f32 %v3596, %v3606
      %v3636 = vadd.f32 %v3597, %v3606
      %v3637 = vadd.f32 %v3598, %v3606
      %v3638 = vadd.f32 %v3599, %v3606
      %v3639 = vadd.f32 %v3600, %v3606
      %v3640 = vmax.f32 %v3608, 0.0
      %v3641 = vmax.f32 %v3609, 0.0
      %v3642 = vmax.f32 %v3610, 0.0
      %v3643 = vmax.f32 %v3611, 0.0
      %v3644 = vmax.f32 %v3612, 0.0
      %v3645 = vmax.f32 %v3613, 0.0
      %v3646 = vmax.f32 %v3614, 0.0
      %v3647 = vmax.f32 %v3615, 0.0
      %v3648 = vmax.f32 %v3616, 0.0
      %v3649 = vmax.f32 %v3617, 0.0
      %v3650 = vmax.f32 %v3618, 0.0
      %v3651 = vmax.f32 %v3619, 0.0
      %v3652 = vmax.f32 %v3620, 0.0
      %v3653 = vmax.f32 %v3621, 0.0
      %v3654 = vmax.f32 %v3622, 0.0
      %v3655 = vmax.f32 %v3623, 0.0
      %v3656 = vmax.f32 %v3624, 0.0
      %v3657 = vmax.f32 %v3625, 0.0
      %v3658 = vmax.f32 %v3626, 0.0
      %v3659 = vmax.f32 %v3627, 0.0
      %v3660 = vmax.f32 %v3628, 0.0
      %v3661 = vmax.f32 %v3629, 0.0
      %v3662 = vmax.f32 %v3630, 0.0
      %v3663 = vmax.f32 %v3631, 0.0
      %v3664 = vmax.f32 %v3632, 0.0
      %v3665 = vmax.f32 %v3633, 0.0
      %v3666 = vmax.f32 %v3634, 0.0
      %v3667 = vmax.f32 %v3635, 0.0
      %v3668 = vmax.f32 %v3636, 0.0
      %v3669 = vmax.f32 %v3637, 0.0
      %v3670 = vmax.f32 %v3638, 0.0
      %v3671 = vmax.f32 %v3639, 0.0
      %v3672 = vpack.c.bf16 %v3641, %v3640
      %v3673 = vpack.c.bf16 %v3643, %v3642
      %v3674 = vpack.c.bf16 %v3645, %v3644
      %v3675 = vpack.c.bf16 %v3647, %v3646
      %v3676 = vpack.c.bf16 %v3649, %v3648
      %v3677 = vpack.c.bf16 %v3651, %v3650
      %v3678 = vpack.c.bf16 %v3653, %v3652
      %v3679 = vpack.c.bf16 %v3655, %v3654
      %v3680 = vpack.c.bf16 %v3657, %v3656
      %v3681 = vpack.c.bf16 %v3659, %v3658
      %v3682 = vpack.c.bf16 %v3661, %v3660
      %v3683 = vpack.c.bf16 %v3663, %v3662
      %v3684 = vpack.c.bf16 %v3665, %v3664
      %v3685 = vpack.c.bf16 %v3667, %v3666
      %v3686 = vpack.c.bf16 %v3669, %v3668
      %v3687 = vpack.c.bf16 %v3671, %v3670
      %v3688 = vld [vmem:[%s8] sm:$0xf]
      %v3689 = vld [vmem:[%s8 + $0x4] sm:$0xf]
      %v3690 = vld [vmem:[%s8 + $0x8] sm:$0xf]
      %v3691 = vld [vmem:[%s8 + $0xc] sm:$0xf]
      %v3692 = vld [vmem:[%s8 + $0x10] sm:$0xf]
      %v3693 = vld [vmem:[%s8 + $0x14] sm:$0xf]
      %v3694 = vld [vmem:[%s8 + $0x18] sm:$0xf]
      %v3695 = vld [vmem:[%s8 + $0x1c] sm:$0xf]
      %v3696 = vld [vmem:[%s8 + $0x20] sm:$0xf]
      %v3697 = vld [vmem:[%s8 + $0x24] sm:$0xf]
      %v3698 = vld [vmem:[%s8 + $0x28] sm:$0xf]
      %v3699 = vld [vmem:[%s8 + $0x2c] sm:$0xf]
      %v3700 = vld [vmem:[%s8 + $0x30] sm:$0xf]
      %v3701 = vld [vmem:[%s8 + $0x34] sm:$0xf]
      %v3702 = vld [vmem:[%s8 + $0x38] sm:$0xf]
      %v3703 = vld [vmem:[%s8 + $0x3c] sm:$0xf]
      %v3720 = vunpack.c.l.b16 %v3688
      %v3721 = vunpack.c.l.b16 %v3689
      %v3722 = vunpack.c.l.b16 %v3690
      %v3723 = vunpack.c.l.b16 %v3691
      %v3724 = vunpack.c.l.b16 %v3692
      %v3725 = vunpack.c.l.b16 %v3693
      %v3726 = vunpack.c.l.b16 %v3694
      %v3727 = vunpack.c.l.b16 %v3695
      %v3728 = vunpack.c.l.b16 %v3696
      %v3729 = vunpack.c.l.b16 %v3697
      %v3730 = vunpack.c.l.b16 %v3698
      %v3731 = vunpack.c.l.b16 %v3699
      %v3732 = vunpack.c.l.b16 %v3700
      %v3733 = vunpack.c.l.b16 %v3701
      %v3734 = vunpack.c.l.b16 %v3702
      %v3735 = vunpack.c.l.b16 %v3703
      %v3736 = vpack.c.b16 %v3721, %v3720
      %v3737 = vpack.c.b16 %v3723, %v3722
      %v3738 = vpack.c.b16 %v3725, %v3724
      %v3739 = vpack.c.b16 %v3727, %v3726
      %v3740 = vpack.c.b16 %v3729, %v3728
      %v3741 = vpack.c.b16 %v3731, %v3730
      %v3742 = vpack.c.b16 %v3733, %v3732
      %v3743 = vpack.c.b16 %v3735, %v3734
      %3752 = vmatprep.subr.bf16.mxu0 0
      %3753 = vmatpush1.bf16.msra.mxu0 %v3736
      %3754 = vmatprep.subr.bf16.mxu0 0
      %3755 = vmatpush1.bf16.msra.mxu0 %v3737
      %3756 = vmatprep.subr.bf16.mxu0 0
      %3757 = vmatpush1.bf16.msra.mxu0 %v3738
      %3758 = vmatprep.subr.bf16.mxu0 0
      %3759 = vmatpush1.bf16.msra.mxu0 %v3739
      %3760 = vmatprep.subr.bf16.mxu0 0
      %3761 = vmatpush1.bf16.msra.mxu0 %v3740
      %3762 = vmatprep.subr.bf16.mxu0 0
      %3763 = vmatpush1.bf16.msra.mxu0 %v3741
      %3764 = vmatprep.subr.bf16.mxu0 0
      %3765 = vmatpush1.bf16.msra.mxu0 %v3742
      %3766 = vmatprep.subr.bf16.mxu0 0
      %3767 = vmatpush1.bf16.msra.mxu0 %v3743
      %3768 = vmatprep.subr.bf16.mxu0 0
      %3769 = vmatpush1.bf16.msra.mxu0 0
      %3770 = vmatprep.subr.bf16.mxu0 0
      %3771 = vmatpush1.bf16.msra.mxu0 0
      %3772 = vmatprep.subr.bf16.mxu0 0
      %3773 = vmatpush1.bf16.msra.mxu0 0
      %3774 = vmatprep.subr.bf16.mxu0 0
      %3775 = vmatpush1.bf16.msra.mxu0 0
      %3776 = vmatprep.subr.bf16.mxu0 0
      %3777 = vmatpush1.bf16.msra.mxu0 0
      %3778 = vmatprep.subr.bf16.mxu0 0
      %3779 = vmatpush1.bf16.msra.mxu0 0
      %3780 = vmatprep.subr.bf16.mxu0 0
      %3781 = vmatpush1.bf16.msra.mxu0 0
      %3782 = vmatprep.subr.bf16.mxu0 0
      %3783 = vmatpush1.bf16.msra.mxu0 0
      %3784 = vmatprep.mubr.bf16.mxu0 0
      %3785 = vmatmul.mubr.bf16.gmra.mrb[0].mxu0 %v3672
      %v3786 = vpop.f32.mrb[0].mxu0
      %v3787 = vadd.f32 0.0, %v3786
      %v3788 = vpop.f32.mrb[0].mxu0
      %v3789 = vpop.f32.mrb[0].mxu0
      %v3790 = vadd.f32 0.0, %v3789
      %v3791 = vpop.f32.mrb[0].mxu0
      %3792 = vmatprep.mubr.bf16.mxu0 0
      %3793 = vmatmul.mubr.bf16.gmra.mrb[0].mxu0 %v3673
      %v3794 = vpop.f32.mrb[0].mxu0
      %v3795 = vadd.f32 0.0, %v3794
      %v3796 = vpop.f32.mrb[0].mxu0
      %v3797 = vpop.f32.mrb[0].mxu0
      %v3798 = vadd.f32 0.0, %v3797
      %v3799 = vpop.f32.mrb[0].mxu0
      %3800 = vmatprep.mubr.bf16.mxu0 0
      %3801 = vmatmul.mubr.bf16.gmra.mrb[0].mxu0 %v3674
      %v3802 = vpop.f32.mrb[0].mxu0
      %v3803 = vadd.f32 0.0, %v3802
      %v3804 = vpop.f32.mrb[0].mxu0
      %v3805 = vpop.f32.mrb[0].mxu0
      %v3806 = vadd.f32 0.0, %v3805
      %v3807 = vpop.f32.mrb[0].mxu0
      %3808 = vmatprep.mubr.bf16.mxu0 0
      %3809 = vmatmul.mubr.bf16.gmra.mrb[0].mxu0 %v3675
      %v3810 = vpop.f32.mrb[0].mxu0
      %v3811 = vadd.f32 0.0, %v3810
      %v3812 = vpop.f32.mrb[0].mxu0
      %v3813 = vpop.f32.mrb[0].mxu0
      %v3814 = vadd.f32 0.0, %v3813
      %v3815 = vpop.f32.mrb[0].mxu0
      %3816 = vmatprep.mubr.bf16.mxu0 0
      %3817 = vmatmul.mubr.bf16.gmra.mrb[0].mxu0 %v3676
      %v3818 = vpop.f32.mrb[0].mxu0
      %v3819 = vadd.f32 0.0, %v3818
      %v3820 = vpop.f32.mrb[0].mxu0
      %v3821 = vpop.f32.mrb[0].mxu0
      %v3822 = vadd.f32 0.0, %v3821
      %v3823 = vpop.f32.mrb[0].mxu0
      %3824 = vmatprep.mubr.bf16.mxu0 0
      %3825 = vmatmul.mubr.bf16.gmra.mrb[0].mxu0 %v3677
      %v3826 = vpop.f32.mrb[0].mxu0
      %v3827 = vadd.f32 0.0, %v3826
      %v3828 = vpop.f32.mrb[0].mxu0
      %v3829 = vpop.f32.mrb[0].mxu0
      %v3830 = vadd.f32 0.0, %v3829
      %v3831 = vpop.f32.mrb[0].mxu0
      %3832 = vmatprep.mubr.bf16.mxu0 0
      %3833 = vmatmul.mubr.bf16.gmra.mrb[0].mxu0 %v3678
      %v3834 = vpop.f32.mrb[0].mxu0
      %v3835 = vadd.f32 0.0, %v3834
      %v3836 = vpop.f32.mrb[0].mxu0
      %v3837 = vpop.f32.mrb[0].mxu0
      %v3838 = vadd.f32 0.0, %v3837
      %v3839 = vpop.f32.mrb[0].mxu0
      %3840 = vmatprep.mubr.bf16.mxu0 0
      %3841 = vmatmul.mubr.bf16.gmra.mrb[0].mxu0 %v3679
      %v3842 = vpop.f32.mrb[0].mxu0
      %v3843 = vadd.f32 0.0, %v3842
      %v3844 = vpop.f32.mrb[0].mxu0
      %v3845 = vpop.f32.mrb[0].mxu0
      %v3846 = vadd.f32 0.0, %v3845
      %v3847 = vpop.f32.mrb[0].mxu0
      %3848 = vmatprep.mubr.bf16.mxu0 0
      %3849 = vmatmul.mubr.bf16.gmra.mrb[0].mxu0 %v3680
      %v3850 = vpop.f32.mrb[0].mxu0
      %v3851 = vadd.f32 0.0, %v3850
      %v3852 = vpop.f32.mrb[0].mxu0
      %v3853 = vpop.f32.mrb[0].mxu0
      %v3854 = vadd.f32 0.0, %v3853
      %v3855 = vpop.f32.mrb[0].mxu0
      %3856 = vmatprep.mubr.bf16.mxu0 0
      %3857 = vmatmul.mubr.bf16.gmra.mrb[0].mxu0 %v3681
      %v3858 = vpop.f32.mrb[0].mxu0
      %v3859 = vadd.f32 0.0, %v3858
      %v3860 = vpop.f32.mrb[0].mxu0
      %v3861 = vpop.f32.mrb[0].mxu0
      %v3862 = vadd.f32 0.0, %v3861
      %v3863 = vpop.f32.mrb[0].mxu0
      %3864 = vmatprep.mubr.bf16.mxu0 0
      %3865 = vmatmul.mubr.bf16.gmra.mrb[0].mxu0 %v3682
      %v3866 = vpop.f32.mrb[0].mxu0
      %v3867 = vadd.f32 0.0, %v3866
      %v3868 = vpop.f32.mrb[0].mxu0
      %v3869 = vpop.f32.mrb[0].mxu0
      %v3870 = vadd.f32 0.0, %v3869
      %v3871 = vpop.f32.mrb[0].mxu0
      %3872 = vmatprep.mubr.bf16.mxu0 0
      %3873 = vmatmul.mubr.bf16.gmra.mrb[0].mxu0 %v3683
      %v3874 = vpop.f32.mrb[0].mxu0
      %v3875 = vadd.f32 0.0, %v3874
      %v3876 = vpop.f32.mrb[0].mxu0
      %v3877 = vpop.f32.mrb[0].mxu0
      %v3878 = vadd.f32 0.0, %v3877
      %v3879 = vpop.f32.mrb[0].mxu0
      %3880 = vmatprep.mubr.bf16.mxu0 0
      %3881 = vmatmul.mubr.bf16.gmra.mrb[0].mxu0 %v3684
      %v3882 = vpop.f32.mrb[0].mxu0
      %v3883 = vadd.f32 0.0, %v3882
      %v3884 = vpop.f32.mrb[0].mxu0
      %v3885 = vpop.f32.mrb[0].mxu0
      %v3886 = vadd.f32 0.0, %v3885
      %v3887 = vpop.f32.mrb[0].mxu0
      %3888 = vmatprep.mubr.bf16.mxu0 0
      %3889 = vmatmul.mubr.bf16.gmra.mrb[0].mxu0 %v3685
      %v3890 = vpop.f32.mrb[0].mxu0
      %v3891 = vadd.f32 0.0, %v3890
      %v3892 = vpop.f32.mrb[0].mxu0
      %v3893 = vpop.f32.mrb[0].mxu0
      %v3894 = vadd.f32 0.0, %v3893
      %v3895 = vpop.f32.mrb[0].mxu0
      %3896 = vmatprep.mubr.bf16.mxu0 0
      %3897 = vmatmul.mubr.bf16.gmra.mrb[0].mxu0 %v3686
      %v3898 = vpop.f32.mrb[0].mxu0
      %v3899 = vadd.f32 0.0, %v3898
      %v3900 = vpop.f32.mrb[0].mxu0
      %v3901 = vpop.f32.mrb[0].mxu0
      %v3902 = vadd.f32 0.0, %v3901
      %v3903 = vpop.f32.mrb[0].mxu0
      %3904 = vmatprep.mubr.bf16.mxu0 0
      %3905 = vmatmul.mubr.bf16.gmra.mrb[0].mxu0 %v3687
      %v3906 = vpop.f32.mrb[0].mxu0
      %v3907 = vadd.f32 0.0, %v3906
      %v3908 = vpop.f32.mrb[0].mxu0
      %v3909 = vpop.f32.mrb[0].mxu0
      %v3910 = vadd.f32 0.0, %v3909
      %v3911 = vpop.f32.mrb[0].mxu0
      %3912 = vdwg.mxu0
      %v3913 = vld [vmem:[%s9] sm:$0x1]
      %v3915 = vlaneseq
      %v3916 = vshrl.u32 %v3915, 7
      %v3917 = vsub.s32 0, %v3916
      %v3918 = vrot.slane %v3913, %v3917
      %v3920 = vmul.f32 %v3787, %v3918
      %v3921 = vmul.f32 %v3790, %v3918
      %v3922 = vmul.f32 %v3795, %v3918
      %v3923 = vmul.f32 %v3798, %v3918
      %v3924 = vmul.f32 %v3803, %v3918
      %v3925 = vmul.f32 %v3806, %v3918
      %v3926 = vmul.f32 %v3811, %v3918
      %v3927 = vmul.f32 %v3814, %v3918
      %v3928 = vmul.f32 %v3819, %v3918
      %v3929 = vmul.f32 %v3822, %v3918
      %v3930 = vmul.f32 %v3827, %v3918
      %v3931 = vmul.f32 %v3830, %v3918
      %v3932 = vmul.f32 %v3835, %v3918
      %v3933 = vmul.f32 %v3838, %v3918
      %v3934 = vmul.f32 %v3843, %v3918
      %v3935 = vmul.f32 %v3846, %v3918
      %v3936 = vmul.f32 %v3851, %v3918
      %v3937 = vmul.f32 %v3854, %v3918
      %v3938 = vmul.f32 %v3859, %v3918
      %v3939 = vmul.f32 %v3862, %v3918
      %v3940 = vmul.f32 %v3867, %v3918
      %v3941 = vmul.f32 %v3870, %v3918
      %v3942 = vmul.f32 %v3875, %v3918
      %v3943 = vmul.f32 %v3878, %v3918
      %v3944 = vmul.f32 %v3883, %v3918
      %v3945 = vmul.f32 %v3886, %v3918
      %v3946 = vmul.f32 %v3891, %v3918
      %v3947 = vmul.f32 %v3894, %v3918
      %v3948 = vmul.f32 %v3899, %v3918
      %v3949 = vmul.f32 %v3902, %v3918
      %v3950 = vmul.f32 %v3907, %v3918
      %v3951 = vmul.f32 %v3910, %v3918
      %v3952 = vld [vmem:[%s10] sm:$0x1]
      %v3954 = vlaneseq
      %v3955 = vshrl.u32 %v3954, 7
      %v3956 = vsub.s32 0, %v3955
      %v3957 = vrot.slane %v3952, %v3956
      %v3959 = vadd.f32 %v3920, %v3957
      %v3960 = vadd.f32 %v3921, %v3957
      %v3961 = vadd.f32 %v3922, %v3957
      %v3962 = vadd.f32 %v3923, %v3957
      %v3963 = vadd.f32 %v3924, %v3957
      %v3964 = vadd.f32 %v3925, %v3957
      %v3965 = vadd.f32 %v3926, %v3957
      %v3966 = vadd.f32 %v3927, %v3957
      %v3967 = vadd.f32 %v3928, %v3957
      %v3968 = vadd.f32 %v3929, %v3957
      %v3969 = vadd.f32 %v3930, %v3957
      %v3970 = vadd.f32 %v3931, %v3957
      %v3971 = vadd.f32 %v3932, %v3957
      %v3972 = vadd.f32 %v3933, %v3957
      %v3973 = vadd.f32 %v3934, %v3957
      %v3974 = vadd.f32 %v3935, %v3957
      %v3975 = vadd.f32 %v3936, %v3957
      %v3976 = vadd.f32 %v3937, %v3957
      %v3977 = vadd.f32 %v3938, %v3957
      %v3978 = vadd.f32 %v3939, %v3957
      %v3979 = vadd.f32 %v3940, %v3957
      %v3980 = vadd.f32 %v3941, %v3957
      %v3981 = vadd.f32 %v3942, %v3957
      %v3982 = vadd.f32 %v3943, %v3957
      %v3983 = vadd.f32 %v3944, %v3957
      %v3984 = vadd.f32 %v3945, %v3957
      %v3985 = vadd.f32 %v3946, %v3957
      %v3986 = vadd.f32 %v3947, %v3957
      %v3987 = vadd.f32 %v3948, %v3957
      %v3988 = vadd.f32 %v3949, %v3957
      %v3989 = vadd.f32 %v3950, %v3957
      %v3990 = vadd.f32 %v3951, %v3957
      %v3991 = vld [vmem:[%s11] sm:$0xf]
      %v3992 = vld [vmem:[%s11 + $0x4] sm:$0xf]
      %v3993 = vld [vmem:[%s11 + $0x8] sm:$0xf]
      %v3994 = vld [vmem:[%s11 + $0xc] sm:$0xf]
      %v3995 = vld [vmem:[%s11 + $0x10] sm:$0xf]
      %v3996 = vld [vmem:[%s11 + $0x14] sm:$0xf]
      %v3997 = vld [vmem:[%s11 + $0x18] sm:$0xf]
      %v3998 = vld [vmem:[%s11 + $0x1c] sm:$0xf]
      %v3999 = vld [vmem:[%s11 + $0x20] sm:$0xf]
      %v4000 = vld [vmem:[%s11 + $0x24] sm:$0xf]
      %v4001 = vld [vmem:[%s11 + $0x28] sm:$0xf]
      %v4002 = vld [vmem:[%s11 + $0x2c] sm:$0xf]
      %v4003 = vld [vmem:[%s11 + $0x30] sm:$0xf]
      %v4004 = vld [vmem:[%s11 + $0x34] sm:$0xf]
      %v4005 = vld [vmem:[%s11 + $0x38] sm:$0xf]
      %v4006 = vld [vmem:[%s11 + $0x3c] sm:$0xf]
      %v4023 = vunpack.c.l.b16 %v3991
      %v4024 = vunpack.c.l.b16 %v3992
      %v4025 = vunpack.c.l.b16 %v3993
      %v4026 = vunpack.c.l.b16 %v3994
      %v4027 = vunpack.c.l.b16 %v3995
      %v4028 = vunpack.c.l.b16 %v3996
      %v4029 = vunpack.c.l.b16 %v3997
      %v4030 = vunpack.c.l.b16 %v3998
      %v4031 = vunpack.c.l.b16 %v3999
      %v4032 = vunpack.c.l.b16 %v4000
      %v4033 = vunpack.c.l.b16 %v4001
      %v4034 = vunpack.c.l.b16 %v4002
      %v4035 = vunpack.c.l.b16 %v4003
      %v4036 = vunpack.c.l.b16 %v4004
      %v4037 = vunpack.c.l.b16 %v4005
      %v4038 = vunpack.c.l.b16 %v4006
      %v4039 = vpack.c.b16 %v4024, %v4023
      %v4040 = vpack.c.b16 %v4026, %v4025
      %v4041 = vpack.c.b16 %v4028, %v4027
      %v4042 = vpack.c.b16 %v4030, %v4029
      %v4043 = vpack.c.b16 %v4032, %v4031
      %v4044 = vpack.c.b16 %v4034, %v4033
      %v4045 = vpack.c.b16 %v4036, %v4035
      %v4046 = vpack.c.b16 %v4038, %v4037
      %4055 = vmatprep.subr.bf16.mxu0 0
      %4056 = vmatpush1.bf16.msra.mxu0 %v4039
      %4057 = vmatprep.subr.bf16.mxu0 0
      %4058 = vmatpush1.bf16.msra.mxu0 %v4040
      %4059 = vmatprep.subr.bf16.mxu0 0
      %4060 = vmatpush1.bf16.msra.mxu0 %v4041
      %4061 = vmatprep.subr.bf16.mxu0 0
      %4062 = vmatpush1.bf16.msra.mxu0 %v4042
      %4063 = vmatprep.subr.bf16.mxu0 0
      %4064 = vmatpush1.bf16.msra.mxu0 %v4043
      %4065 = vmatprep.subr.bf16.mxu0 0
      %4066 = vmatpush1.bf16.msra.mxu0 %v4044
      %4067 = vmatprep.subr.bf16.mxu0 0
      %4068 = vmatpush1.bf16.msra.mxu0 %v4045
      %4069 = vmatprep.subr.bf16.mxu0 0
      %4070 = vmatpush1.bf16.msra.mxu0 %v4046
      %4071 = vmatprep.subr.bf16.mxu0 0
      %4072 = vmatpush1.bf16.msra.mxu0 0
      %4073 = vmatprep.subr.bf16.mxu0 0
      %4074 = vmatpush1.bf16.msra.mxu0 0
      %4075 = vmatprep.subr.bf16.mxu0 0
      %4076 = vmatpush1.bf16.msra.mxu0 0
      %4077 = vmatprep.subr.bf16.mxu0 0
      %4078 = vmatpush1.bf16.msra.mxu0 0
      %4079 = vmatprep.subr.bf16.mxu0 0
      %4080 = vmatpush1.bf16.msra.mxu0 0
      %4081 = vmatprep.subr.bf16.mxu0 0
      %4082 = vmatpush1.bf16.msra.mxu0 0
      %4083 = vmatprep.subr.bf16.mxu0 0
      %4084 = vmatpush1.bf16.msra.mxu0 0
      %4085 = vmatprep.subr.bf16.mxu0 0
      %4086 = vmatpush1.bf16.msra.mxu0 0
      %4087 = vmatprep.mubr.bf16.mxu0 0
      %4088 = vmatmul.mubr.bf16.gmra.mrb[0].mxu0 %v581
      %v4089 = vpop.f32.mrb[0].mxu0
      %v4090 = vadd.f32 0.0, %v4089
      %v4091 = vpop.f32.mrb[0].mxu0
      %v4092 = vpop.f32.mrb[0].mxu0
      %v4093 = vadd.f32 0.0, %v4092
      %v4094 = vpop.f32.mrb[0].mxu0
      %4095 = vmatprep.mubr.bf16.mxu0 0
      %4096 = vmatmul.mubr.bf16.gmra.mrb[0].mxu0 %v582
      %v4097 = vpop.f32.mrb[0].mxu0
      %v4098 = vadd.f32 0.0, %v4097
      %v4099 = vpop.f32.mrb[0].mxu0
      %v4100 = vpop.f32.mrb[0].mxu0
      %v4101 = vadd.f32 0.0, %v4100
      %v4102 = vpop.f32.mrb[0].mxu0
      %4103 = vmatprep.mubr.bf16.mxu0 0
      %4104 = vmatmul.mubr.bf16.gmra.mrb[0].mxu0 %v583
      %v4105 = vpop.f32.mrb[0].mxu0
      %v4106 = vadd.f32 0.0, %v4105
      %v4107 = vpop.f32.mrb[0].mxu0
      %v4108 = vpop.f32.mrb[0].mxu0
      %v4109 = vadd.f32 0.0, %v4108
      %v4110 = vpop.f32.mrb[0].mxu0
      %4111 = vmatprep.mubr.bf16.mxu0 0
      %4112 = vmatmul.mubr.bf16.gmra.mrb[0].mxu0 %v584
      %v4113 = vpop.f32.mrb[0].mxu0
      %v4114 = vadd.f32 0.0, %v4113
      %v4115 = vpop.f32.mrb[0].mxu0
      %v4116 = vpop.f32.mrb[0].mxu0
      %v4117 = vadd.f32 0.0, %v4116
      %v4118 = vpop.f32.mrb[0].mxu0
      %4119 = vmatprep.mubr.bf16.mxu0 0
      %4120 = vmatmul.mubr.bf16.gmra.mrb[0].mxu0 %v585
      %v4121 = vpop.f32.mrb[0].mxu0
      %v4122 = vadd.f32 0.0, %v4121
      %v4123 = vpop.f32.mrb[0].mxu0
      %v4124 = vpop.f32.mrb[0].mxu0
      %v4125 = vadd.f32 0.0, %v4124
      %v4126 = vpop.f32.mrb[0].mxu0
      %4127 = vmatprep.mubr.bf16.mxu0 0
      %4128 = vmatmul.mubr.bf16.gmra.mrb[0].mxu0 %v586
      %v4129 = vpop.f32.mrb[0].mxu0
      %v4130 = vadd.f32 0.0, %v4129
      %v4131 = vpop.f32.mrb[0].mxu0
      %v4132 = vpop.f32.mrb[0].mxu0
      %v4133 = vadd.f32 0.0, %v4132
      %v4134 = vpop.f32.mrb[0].mxu0
      %4135 = vmatprep.mubr.bf16.mxu0 0
      %4136 = vmatmul.mubr.bf16.gmra.mrb[0].mxu0 %v587
      %v4137 = vpop.f32.mrb[0].mxu0
      %v4138 = vadd.f32 0.0, %v4137
      %v4139 = vpop.f32.mrb[0].mxu0
      %v4140 = vpop.f32.mrb[0].mxu0
      %v4141 = vadd.f32 0.0, %v4140
      %v4142 = vpop.f32.mrb[0].mxu0
      %4143 = vmatprep.mubr.bf16.mxu0 0
      %4144 = vmatmul.mubr.bf16.gmra.mrb[0].mxu0 %v588
      %v4145 = vpop.f32.mrb[0].mxu0
      %v4146 = vadd.f32 0.0, %v4145
      %v4147 = vpop.f32.mrb[0].mxu0
      %v4148 = vpop.f32.mrb[0].mxu0
      %v4149 = vadd.f32 0.0, %v4148
      %v4150 = vpop.f32.mrb[0].mxu0
      %4151 = vmatprep.mubr.bf16.mxu0 0
      %4152 = vmatmul.mubr.bf16.gmra.mrb[0].mxu0 %v589
      %v4153 = vpop.f32.mrb[0].mxu0
      %v4154 = vadd.f32 0.0, %v4153
      %v4155 = vpop.f32.mrb[0].mxu0
      %v4156 = vpop.f32.mrb[0].mxu0
      %v4157 = vadd.f32 0.0, %v4156
      %v4158 = vpop.f32.mrb[0].mxu0
      %4159 = vmatprep.mubr.bf16.mxu0 0
      %4160 = vmatmul.mubr.bf16.gmra.mrb[0].mxu0 %v590
      %v4161 = vpop.f32.mrb[0].mxu0
      %v4162 = vadd.f32 0.0, %v4161
      %v4163 = vpop.f32.mrb[0].mxu0
      %v4164 = vpop.f32.mrb[0].mxu0
      %v4165 = vadd.f32 0.0, %v4164
      %v4166 = vpop.f32.mrb[0].mxu0
      %4167 = vmatprep.mubr.bf16.mxu0 0
      %4168 = vmatmul.mubr.bf16.gmra.mrb[0].mxu0 %v591
      %v4169 = vpop.f32.mrb[0].mxu0
      %v4170 = vadd.f32 0.0, %v4169
      %v4171 = vpop.f32.mrb[0].mxu0
      %v4172 = vpop.f32.mrb[0].mxu0
      %v4173 = vadd.f32 0.0, %v4172
      %v4174 = vpop.f32.mrb[0].mxu0
      %4175 = vmatprep.mubr.bf16.mxu0 0
      %4176 = vmatmul.mubr.bf16.gmra.mrb[0].mxu0 %v592
      %v4177 = vpop.f32.mrb[0].mxu0
      %v4178 = vadd.f32 0.0, %v4177
      %v4179 = vpop.f32.mrb[0].mxu0
      %v4180 = vpop.f32.mrb[0].mxu0
      %v4181 = vadd.f32 0.0, %v4180
      %v4182 = vpop.f32.mrb[0].mxu0
      %4183 = vmatprep.mubr.bf16.mxu0 0
      %4184 = vmatmul.mubr.bf16.gmra.mrb[0].mxu0 %v593
      %v4185 = vpop.f32.mrb[0].mxu0
      %v4186 = vadd.f32 0.0, %v4185
      %v4187 = vpop.f32.mrb[0].mxu0
      %v4188 = vpop.f32.mrb[0].mxu0
      %v4189 = vadd.f32 0.0, %v4188
      %v4190 = vpop.f32.mrb[0].mxu0
      %4191 = vmatprep.mubr.bf16.mxu0 0
      %4192 = vmatmul.mubr.bf16.gmra.mrb[0].mxu0 %v594
      %v4193 = vpop.f32.mrb[0].mxu0
      %v4194 = vadd.f32 0.0, %v4193
      %v4195 = vpop.f32.mrb[0].mxu0
      %v4196 = vpop.f32.mrb[0].mxu0
      %v4197 = vadd.f32 0.0, %v4196
      %v4198 = vpop.f32.mrb[0].mxu0
      %4199 = vmatprep.mubr.bf16.mxu0 0
      %4200 = vmatmul.mubr.bf16.gmra.mrb[0].mxu0 %v595
      %v4201 = vpop.f32.mrb[0].mxu0
      %v4202 = vadd.f32 0.0, %v4201
      %v4203 = vpop.f32.mrb[0].mxu0
      %v4204 = vpop.f32.mrb[0].mxu0
      %v4205 = vadd.f32 0.0, %v4204
      %v4206 = vpop.f32.mrb[0].mxu0
      %4207 = vmatprep.mubr.bf16.mxu0 0
      %4208 = vmatmul.mubr.bf16.gmra.mrb[0].mxu0 %v596
      %v4209 = vpop.f32.mrb[0].mxu0
      %v4210 = vadd.f32 0.0, %v4209
      %v4211 = vpop.f32.mrb[0].mxu0
      %v4212 = vpop.f32.mrb[0].mxu0
      %v4213 = vadd.f32 0.0, %v4212
      %v4214 = vpop.f32.mrb[0].mxu0
      %4215 = vdwg.mxu0
      %v4216 = vld [vmem:[%s12] sm:$0x1]
      %v4218 = vlaneseq
      %v4219 = vshrl.u32 %v4218, 7
      %v4220 = vsub.s32 0, %v4219
      %v4221 = vrot.slane %v4216, %v4220
      %v4223 = vmul.f32 %v4090, %v4221
      %v4224 = vmul.f32 %v4093, %v4221
      %v4225 = vmul.f32 %v4098, %v4221
      %v4226 = vmul.f32 %v4101, %v4221
      %v4227 = vmul.f32 %v4106, %v4221
      %v4228 = vmul.f32 %v4109, %v4221
      %v4229 = vmul.f32 %v4114, %v4221
      %v4230 = vmul.f32 %v4117, %v4221
      %v4231 = vmul.f32 %v4122, %v4221
      %v4232 = vmul.f32 %v4125, %v4221
      %v4233 = vmul.f32 %v4130, %v4221
      %v4234 = vmul.f32 %v4133, %v4221
      %v4235 = vmul.f32 %v4138, %v4221
      %v4236 = vmul.f32 %v4141, %v4221
      %v4237 = vmul.f32 %v4146, %v4221
      %v4238 = vmul.f32 %v4149, %v4221
      %v4239 = vmul.f32 %v4154, %v4221
      %v4240 = vmul.f32 %v4157, %v4221
      %v4241 = vmul.f32 %v4162, %v4221
      %v4242 = vmul.f32 %v4165, %v4221
      %v4243 = vmul.f32 %v4170, %v4221
      %v4244 = vmul.f32 %v4173, %v4221
      %v4245 = vmul.f32 %v4178, %v4221
      %v4246 = vmul.f32 %v4181, %v4221
      %v4247 = vmul.f32 %v4186, %v4221
      %v4248 = vmul.f32 %v4189, %v4221
      %v4249 = vmul.f32 %v4194, %v4221
      %v4250 = vmul.f32 %v4197, %v4221
      %v4251 = vmul.f32 %v4202, %v4221
      %v4252 = vmul.f32 %v4205, %v4221
      %v4253 = vmul.f32 %v4210, %v4221
      %v4254 = vmul.f32 %v4213, %v4221
      %v4255 = vld [vmem:[%s13] sm:$0x1]
      %v4257 = vlaneseq
      %v4258 = vshrl.u32 %v4257, 7
      %v4259 = vsub.s32 0, %v4258
      %v4260 = vrot.slane %v4255, %v4259
      %v4262 = vadd.f32 %v4223, %v4260
      %v4263 = vadd.f32 %v4224, %v4260
      %v4264 = vadd.f32 %v4225, %v4260
      %v4265 = vadd.f32 %v4226, %v4260
      %v4266 = vadd.f32 %v4227, %v4260
      %v4267 = vadd.f32 %v4228, %v4260
      %v4268 = vadd.f32 %v4229, %v4260
      %v4269 = vadd.f32 %v4230, %v4260
      %v4270 = vadd.f32 %v4231, %v4260
      %v4271 = vadd.f32 %v4232, %v4260
      %v4272 = vadd.f32 %v4233, %v4260
      %v4273 = vadd.f32 %v4234, %v4260
      %v4274 = vadd.f32 %v4235, %v4260
      %v4275 = vadd.f32 %v4236, %v4260
      %v4276 = vadd.f32 %v4237, %v4260
      %v4277 = vadd.f32 %v4238, %v4260
      %v4278 = vadd.f32 %v4239, %v4260
      %v4279 = vadd.f32 %v4240, %v4260
      %v4280 = vadd.f32 %v4241, %v4260
      %v4281 = vadd.f32 %v4242, %v4260
      %v4282 = vadd.f32 %v4243, %v4260
      %v4283 = vadd.f32 %v4244, %v4260
      %v4284 = vadd.f32 %v4245, %v4260
      %v4285 = vadd.f32 %v4246, %v4260
      %v4286 = vadd.f32 %v4247, %v4260
      %v4287 = vadd.f32 %v4248, %v4260
      %v4288 = vadd.f32 %v4249, %v4260
      %v4289 = vadd.f32 %v4250, %v4260
      %v4290 = vadd.f32 %v4251, %v4260
      %v4291 = vadd.f32 %v4252, %v4260
      %v4292 = vadd.f32 %v4253, %v4260
      %v4293 = vadd.f32 %v4254, %v4260
      %v4294 = vadd.f32 %v3959, %v4262
      %v4295 = vadd.f32 %v3960, %v4263
      %v4296 = vadd.f32 %v3961, %v4264
      %v4297 = vadd.f32 %v3962, %v4265
      %v4298 = vadd.f32 %v3963, %v4266
      %v4299 = vadd.f32 %v3964, %v4267
      %v4300 = vadd.f32 %v3965, %v4268
      %v4301 = vadd.f32 %v3966, %v4269
      %v4302 = vadd.f32 %v3967, %v4270
      %v4303 = vadd.f32 %v3968, %v4271
      %v4304 = vadd.f32 %v3969, %v4272
      %v4305 = vadd.f32 %v3970, %v4273
      %v4306 = vadd.f32 %v3971, %v4274
      %v4307 = vadd.f32 %v3972, %v4275
      %v4308 = vadd.f32 %v3973, %v4276
      %v4309 = vadd.f32 %v3974, %v4277
      %v4310 = vadd.f32 %v3975, %v4278
      %v4311 = vadd.f32 %v3976, %v4279
      %v4312 = vadd.f32 %v3977, %v4280
      %v4313 = vadd.f32 %v3978, %v4281
      %v4314 = vadd.f32 %v3979, %v4282
      %v4315 = vadd.f32 %v3980, %v4283
      %v4316 = vadd.f32 %v3981, %v4284
      %v4317 = vadd.f32 %v3982, %v4285
      %v4318 = vadd.f32 %v3983, %v4286
      %v4319 = vadd.f32 %v3984, %v4287
      %v4320 = vadd.f32 %v3985, %v4288
      %v4321 = vadd.f32 %v3986, %v4289
      %v4322 = vadd.f32 %v3987, %v4290
      %v4323 = vadd.f32 %v3988, %v4291
      %v4324 = vadd.f32 %v3989, %v4292
      %v4325 = vadd.f32 %v3990, %v4293
      %v4326 = vmax.f32 %v4294, 0.0
      %v4327 = vmax.f32 %v4295, 0.0
      %v4328 = vmax.f32 %v4296, 0.0
      %v4329 = vmax.f32 %v4297, 0.0
      %v4330 = vmax.f32 %v4298, 0.0
      %v4331 = vmax.f32 %v4299, 0.0
      %v4332 = vmax.f32 %v4300, 0.0
      %v4333 = vmax.f32 %v4301, 0.0
      %v4334 = vmax.f32 %v4302, 0.0
      %v4335 = vmax.f32 %v4303, 0.0
      %v4336 = vmax.f32 %v4304, 0.0
      %v4337 = vmax.f32 %v4305, 0.0
      %v4338 = vmax.f32 %v4306, 0.0
      %v4339 = vmax.f32 %v4307, 0.0
      %v4340 = vmax.f32 %v4308, 0.0
      %v4341 = vmax.f32 %v4309, 0.0
      %v4342 = vmax.f32 %v4310, 0.0
      %v4343 = vmax.f32 %v4311, 0.0
      %v4344 = vmax.f32 %v4312, 0.0
      %v4345 = vmax.f32 %v4313, 0.0
      %v4346 = vmax.f32 %v4314, 0.0
      %v4347 = vmax.f32 %v4315, 0.0
      %v4348 = vmax.f32 %v4316, 0.0
      %v4349 = vmax.f32 %v4317, 0.0
      %v4350 = vmax.f32 %v4318, 0.0
      %v4351 = vmax.f32 %v4319, 0.0
      %v4352 = vmax.f32 %v4320, 0.0
      %v4353 = vmax.f32 %v4321, 0.0
      %v4354 = vmax.f32 %v4322, 0.0
      %v4355 = vmax.f32 %v4323, 0.0
      %v4356 = vmax.f32 %v4324, 0.0
      %v4357 = vmax.f32 %v4325, 0.0
      %v4358 = vpack.c.bf16 %v4327, %v4326
      %v4359 = vpack.c.bf16 %v4329, %v4328
      %v4360 = vpack.c.bf16 %v4331, %v4330
      %v4361 = vpack.c.bf16 %v4333, %v4332
      %v4362 = vpack.c.bf16 %v4335, %v4334
      %v4363 = vpack.c.bf16 %v4337, %v4336
      %v4364 = vpack.c.bf16 %v4339, %v4338
      %v4365 = vpack.c.bf16 %v4341, %v4340
      %v4366 = vpack.c.bf16 %v4343, %v4342
      %v4367 = vpack.c.bf16 %v4345, %v4344
      %v4368 = vpack.c.bf16 %v4347, %v4346
      %v4369 = vpack.c.bf16 %v4349, %v4348
      %v4370 = vpack.c.bf16 %v4351, %v4350
      %v4371 = vpack.c.bf16 %v4353, %v4352
      %v4372 = vpack.c.bf16 %v4355, %v4354
      %v4373 = vpack.c.bf16 %v4357, %v4356
      %v4390 = vunpack.c.l.b16 %v4358
      %v4391 = vunpack.c.h.b16 %v4358
      %v4392 = vunpack.c.l.b16 %v4359
      %v4393 = vunpack.c.h.b16 %v4359
      %v4394 = vunpack.c.l.b16 %v4360
      %v4395 = vunpack.c.h.b16 %v4360
      %v4396 = vunpack.c.l.b16 %v4361
      %v4397 = vunpack.c.h.b16 %v4361
      %v4398 = vunpack.c.l.b16 %v4362
      %v4399 = vunpack.c.h.b16 %v4362
      %v4400 = vunpack.c.l.b16 %v4363
      %v4401 = vunpack.c.h.b16 %v4363
      %v4402 = vunpack.c.l.b16 %v4364
      %v4403 = vunpack.c.h.b16 %v4364
      %v4404 = vunpack.c.l.b16 %v4365
      %v4405 = vunpack.c.h.b16 %v4365
      %v4406 = vunpack.c.l.b16 %v4366
      %v4407 = vunpack.c.h.b16 %v4366
      %v4408 = vunpack.c.l.b16 %v4367
      %v4409 = vunpack.c.h.b16 %v4367
      %v4410 = vunpack.c.l.b16 %v4368
      %v4411 = vunpack.c.h.b16 %v4368
      %v4412 = vunpack.c.l.b16 %v4369
      %v4413 = vunpack.c.h.b16 %v4369
      %v4414 = vunpack.c.l.b16 %v4370
      %v4415 = vunpack.c.h.b16 %v4370
      %v4416 = vunpack.c.l.b16 %v4371
      %v4417 = vunpack.c.h.b16 %v4371
      %v4418 = vunpack.c.l.b16 %v4372
      %v4419 = vunpack.c.h.b16 %v4372
      %v4420 = vunpack.c.l.b16 %v4373
      %v4421 = vunpack.c.h.b16 %v4373
      %v4422 = vpack.c.b16 %v4390, %v4390
      %v4423 = vpack.c.b16 %v4391, %v4391
      %v4424 = vpack.c.b16 %v4392, %v4392
      %v4425 = vpack.c.b16 %v4393, %v4393
      %v4426 = vpack.c.b16 %v4394, %v4394
      %v4427 = vpack.c.b16 %v4395, %v4395
      %v4428 = vpack.c.b16 %v4396, %v4396
      %v4429 = vpack.c.b16 %v4397, %v4397
      %v4430 = vpack.c.b16 %v4398, %v4398
      %v4431 = vpack.c.b16 %v4399, %v4399
      %v4432 = vpack.c.b16 %v4400, %v4400
      %v4433 = vpack.c.b16 %v4401, %v4401
      %v4434 = vpack.c.b16 %v4402, %v4402
      %v4435 = vpack.c.b16 %v4403, %v4403
      %v4436 = vpack.c.b16 %v4404, %v4404
      %v4437 = vpack.c.b16 %v4405, %v4405
      %v4438 = vpack.c.b16 %v4406, %v4406
      %v4439 = vpack.c.b16 %v4407, %v4407
      %v4440 = vpack.c.b16 %v4408, %v4408
      %v4441 = vpack.c.b16 %v4409, %v4409
      %v4442 = vpack.c.b16 %v4410, %v4410
      %v4443 = vpack.c.b16 %v4411, %v4411
      %v4444 = vpack.c.b16 %v4412, %v4412
      %v4445 = vpack.c.b16 %v4413, %v4413
      %v4446 = vpack.c.b16 %v4414, %v4414
      %v4447 = vpack.c.b16 %v4415, %v4415
      %v4448 = vpack.c.b16 %v4416, %v4416
      %v4449 = vpack.c.b16 %v4417, %v4417
      %v4450 = vpack.c.b16 %v4418, %v4418
      %v4451 = vpack.c.b16 %v4419, %v4419
      %v4452 = vpack.c.b16 %v4420, %v4420
      %v4453 = vpack.c.b16 %v4421, %v4421
      %4486 = vst [vmem:[%s467] sm:$0xf] %v4422
      %4487 = vst [vmem:[%s467 + $0x4] sm:$0xf] %v4423
      %4488 = vst [vmem:[%s467 + $0x8] sm:$0xf] %v4424
      %4489 = vst [vmem:[%s467 + $0xc] sm:$0xf] %v4425
      %4490 = vst [vmem:[%s467 + $0x10] sm:$0xf] %v4426
      %4491 = vst [vmem:[%s467 + $0x14] sm:$0xf] %v4427
      %4492 = vst [vmem:[%s467 + $0x18] sm:$0xf] %v4428
      %4493 = vst [vmem:[%s467 + $0x1c] sm:$0xf] %v4429
      %4494 = vst [vmem:[%s467 + $0x20] sm:$0xf] %v4430
      %4495 = vst [vmem:[%s467 + $0x24] sm:$0xf] %v4431
      %4496 = vst [vmem:[%s467 + $0x28] sm:$0xf] %v4432
      %4497 = vst [vmem:[%s467 + $0x2c] sm:$0xf] %v4433
      %4498 = vst [vmem:[%s467 + $0x30] sm:$0xf] %v4434
      %4499 = vst [vmem:[%s467 + $0x34] sm:$0xf] %v4435
      %4500 = vst [vmem:[%s467 + $0x38] sm:$0xf] %v4436
      %4501 = vst [vmem:[%s467 + $0x3c] sm:$0xf] %v4437
      %4502 = vst [vmem:[%s467 + $0x40] sm:$0xf] %v4438
      %4503 = vst [vmem:[%s467 + $0x44] sm:$0xf] %v4439
      %4504 = vst [vmem:[%s467 + $0x48] sm:$0xf] %v4440
      %4505 = vst [vmem:[%s467 + $0x4c] sm:$0xf] %v4441
      %4506 = vst [vmem:[%s467 + $0x50] sm:$0xf] %v4442
      %4507 = vst [vmem:[%s467 + $0x54] sm:$0xf] %v4443
      %4508 = vst [vmem:[%s467 + $0x58] sm:$0xf] %v4444
      %4509 = vst [vmem:[%s467 + $0x5c] sm:$0xf] %v4445
      %4510 = vst [vmem:[%s467 + $0x60] sm:$0xf] %v4446
      %4511 = vst [vmem:[%s467 + $0x64] sm:$0xf] %v4447
      %4512 = vst [vmem:[%s467 + $0x68] sm:$0xf] %v4448
      %4513 = vst [vmem:[%s467 + $0x6c] sm:$0xf] %v4449
      %4514 = vst [vmem:[%s467 + $0x70] sm:$0xf] %v4450
      %4515 = vst [vmem:[%s467 + $0x74] sm:$0xf] %v4451
      %4516 = vst [vmem:[%s467 + $0x78] sm:$0xf] %v4452
      %4517 = vst [vmem:[%s467 + $0x7c] sm:$0xf] %v4453
      %p4518 = scmp.lt.s32.totalorder %s25, 1
      %s4519 = scalar_select %p4518, %s25, 1
      %s4520 = smul.addr %s4519, 32
      %s4521 = smul.addr %s4520, 4
      %s4522 = scalar_lea.vmem %s14, %s4521
      // Predicated region
      $region77: #{bottleneck_forward.1} parent=75 // pred_check
        %p4523 = pneg %p342
      $region78: #{bottleneck_forward.1} parent=75 // pred_check_branch
        %4525 = sbr.rel (%p4523) target = $region80
      $region79: #{bottleneck_forward.1} parent=75 // pred_region
        _
      $region80: #{bottleneck_forward.1} parent=75 // pred_fallthru
        _
    $region76: #{bottleneck_forward.1} parent=5 // pred_fallthru
      _
    %p4526 = scmp.le.s32.totalorder 2, %s20
    // Predicated region
    $region81: #{bottleneck_forward.1} parent=5 // pred_check
      %p4527 = pneg %p4526
    $region82: #{bottleneck_forward.1} parent=5 // pred_check_branch
      %4529 = sbr.rel (%p4527) target = $region84
    $region83: #{bottleneck_forward.1} parent=5 // pred_region
      %s4530 = ssub.s32 %s20, 2
      // Predicated region
      $region85: #{bottleneck_forward.1} parent=83 // pred_check
        %p4531 = pneg %p348
      $region86: #{bottleneck_forward.1} parent=83 // pred_check_branch
        %4533 = sbr.rel (%p4531) target = $region88
      $region87: #{bottleneck_forward.1} parent=83 // pred_region
        %p4534 = scmp.lt.s32.totalorder %s26, 1
        %s4535 = scalar_select %p4534, %s26, 1
        %s4536 = smul.addr %s4535, 32
        %s4537 = smul.addr %s4536, 4
        %s4538 = scalar_lea.vmem %s14, %s4537
      $region88: #{bottleneck_forward.1} parent=83 // pred_fallthru
        _
    $region84: #{bottleneck_forward.1} parent=5 // pred_fallthru
      _
  $region6: #{bottleneck_forward.1} parent=0 // loop_footer
    %s24 = sadd.s32 1, %s20
  $region7: #{bottleneck_forward.1} parent=0 // loop_footer_branch
    %19 = sbr.rel target = $region3
  $region8: #{bottleneck_forward.1} parent=0 // loop_exit
    _

</llo_original>
